<compile_context>
chip_gen: v7x
topology: tpu7x:2x2x1
jax: 0.10.0
libtpu: 0.0.40
codegen_flags: <defaults>
</compile_context>

<pallas_src>
import jax
import jax.numpy as jnp
import numpy as np
from jax.experimental import pallas as pl
from jax.experimental.pallas import tpu as pltpu


def _round_up(x, m):
    return ((x + m - 1) // m) * m


def _make_kernel(k_valid, k_pad, n_bisect):
    """k_valid: real feature columns; k_pad: padded (multiple of 128)."""

    def kernel(feat_ref, pri_ref, w_ref, bns_ref, bnb_ref, out_ref):
        # fc (bias=False): bf16 x bf16 -> f32 accumulate on the MXU.
        x = jnp.dot(feat_ref[...], w_ref[...],
                    preferred_element_type=jnp.float32)
        # GhostBatchNorm folded (eval mode) -> per-feature scale/shift, then priors.
        z = (x * bns_ref[...] + bnb_ref[...]) * pri_ref[...]       # (TB, Kp) f32

        # Mask padded columns ONCE on the 2-D vector (never on a 3-D slab).
        valid = jax.lax.broadcasted_iota(jnp.int32, (1, k_pad), 1) < k_valid
        z = jnp.where(valid, z, jnp.float32(-1e30))                # (TB, Kp)

        # ---- sparsemax along the feature axis ----
        # Solve sum_j max(z_j - tau, 0) = 1 for tau by bisection on
        # [max(z)-1, max(z)] (f is monotone decreasing, f(lo)>=1, f(hi)=0),
        # then finalize exactly on the identified support.
        z_max = jnp.max(z, axis=-1, keepdims=True)                 # (TB, 1)
        lo = z_max - 1.0
        hi = z_max

        def body(_, carry):
            lo, hi = carry
            mid = 0.5 * (lo + hi)
            f = jnp.sum(jnp.maximum(z - mid, 0.0), axis=-1, keepdims=True)
            gt = f > 1.0
            return jnp.where(gt, mid, lo), jnp.where(gt, hi, mid)

        lo, hi = jax.lax.fori_loop(0, n_bisect, body, (lo, hi), unroll=True)

        # Exact finalize on the support {z > lo}: tau = (sum_support - 1) / |support|.
        # Invariant f(lo) >= 1 guarantees |support| >= 1 and tau >= lo, so
        # excluded elements stay at exactly 0 and the row sums to exactly 1.
        insup = (z > lo).astype(jnp.float32)                       # (TB, Kp)
        r = jnp.sum(insup, axis=-1, keepdims=True)                 # (TB, 1)
        s = jnp.sum(insup * z, axis=-1, keepdims=True)             # (TB, 1)
        tau = (s - 1.0) / r

        # Padded columns hold -1e30, so relu(z - tau) is already 0 there.
        out_ref[...] = jnp.maximum(z - tau, 0.0)

    return kernel


def prepare_attentive_params(w_fc, bn_scale, bn_shift):
    """One-time (per-parameter-set) padding/cast of the grid-invariant operands.

    w_fc:(D,K) stored transposed so fc(x) == x @ W; bn_scale/shift:(K,).
    Returns (w_p[bf16, D x K_pad], bn_scale_p[f32, 1 x K_pad],
             bn_shift_p[f32, 1 x K_pad], K).
    """
    D, K = w_fc.shape
    K_pad = _round_up(K, 128)
    f32 = jnp.float32
    w_p = jnp.zeros((D, K_pad), jnp.bfloat16).at[:, :K].set(
        w_fc.astype(jnp.bfloat16))
    bns_p = jnp.zeros((1, K_pad), f32).at[:, :K].set(
        bn_scale.reshape(1, K).astype(f32))
    bnb_p = jnp.zeros((1, K_pad), f32).at[:, :K].set(
        bn_shift.reshape(1, K).astype(f32))
    return w_p, bns_p, bnb_p, K


def attentive_transformer(processed_feat, priors, params, *,
                          block_b=256, n_bisect=30):
    """processed_feat:(B,D), priors:(B,K), params from prepare_attentive_params -> (B,K)."""
    w_p, bns_p, bnb_p, K = params
    B, D = processed_feat.shape
    assert w_p.shape[0] == D
    assert priors.shape == (B, K)
    K_pad = w_p.shape[1]
    f32 = jnp.float32

    # ---- batch-tile selection ----
    # 16-row granularity (native bf16 sublane tile for the feat block); prefer
    # the largest tile that yields an EVEN tile count so v7x's 2 TCs split evenly.
    block_b = max(int(block_b), 16)
    max_tb = min(_round_up(B, 16), _round_up(block_b, 16))
    TB = max_tb
    for cand in range(max_tb, 15, -16):
        if pl.cdiv(B, cand) % 2 == 0:
            TB = cand
            break
    B_pad = _round_up(B, TB)
    grid = (B_pad // TB,)

    # Per-call padding is limited to the batch dim of the activations; D is
    # left at full extent (full-array dim is exempt from the 128 rule), K is
    # padded so the compute/output slab stays lane-dense.
    feat_p = jnp.zeros((B_pad, D), jnp.bfloat16).at[:B, :].set(
        processed_feat.astype(jnp.bfloat16))
    pri_p = jnp.zeros((B_pad, K_pad), f32).at[:B, :K].set(priors.astype(f32))

    kernel = _make_kernel(K, K_pad, n_bisect)

    # Explicit VMEM budget (generous headroom; everything is O(TB*K_pad) now).
    itm_bytes = 6 * TB * K_pad * 4 + 2 * TB * D * 4
    io_bytes = (2 * TB * D * 2           # feat tile (bf16, double-buffered)
                + 2 * TB * K_pad * 4     # priors tile (f32, double-buffered)
                + 2 * TB * K_pad * 4     # output tile (f32, double-buffered)
                + 2 * D * K_pad * 2      # weight (bf16; budget 2 bufs worst case)
                + 2 * 2 * K_pad * 4)     # bn scale/shift
    vmem_limit = int(min(max(2 * (itm_bytes + io_bytes), 8 << 20), 48 << 20))

    def run(single_buffer_consts):
        ckw = dict(pipeline_mode=pl.Buffered(1)) if single_buffer_consts else {}
        in_specs = [
            # per-batch-tile activations
            pl.BlockSpec((TB, D), lambda b: (b, 0)),
            pl.BlockSpec((TB, K_pad), lambda b: (b, 0)),
            # grid-invariant operands (constant index map -> fetched once;
            # single-buffered to save VMEM when supported)
            pl.BlockSpec((D, K_pad), lambda b: (0, 0), **ckw),
            pl.BlockSpec((1, K_pad), lambda b: (0, 0), **ckw),
            pl.BlockSpec((1, K_pad), lambda b: (0, 0), **ckw),
        ]
        out = pl.pallas_call(
            kernel,
            out_shape=jax.ShapeDtypeStruct((B_pad, K_pad), f32),
            grid_spec=pltpu.PrefetchScalarGridSpec(
                num_scalar_prefetch=0,
                grid=grid,
                in_specs=in_specs,
                out_specs=pl.BlockSpec((TB, K_pad), lambda b: (b, 0)),
            ),
            compiler_params=pltpu.CompilerParams(
                dimension_semantics=("parallel",),
                vmem_limit_bytes=vmem_limit),
        )(feat_p, pri_p, w_p, bns_p, bnb_p)
        return jax.block_until_ready(out)

    try:
        out = run(True)
    except Exception:
        # pipeline_mode=pl.Buffered(1) not accepted by this jax build -> default buffering.
        out = run(False)

    return out[:B, :K]


# ----------------------------- pure-JAX reference -----------------------------

def _sparsemax_ref(z):
    K = z.shape[-1]
    z_sorted = -jnp.sort(-z, axis=-1)                  # descending
    cssv = jnp.cumsum(z_sorted, axis=-1)
    ks = jnp.arange(1, K + 1, dtype=z.dtype)
    cond = (1.0 + ks * z_sorted) > cssv
    k = jnp.sum(cond.astype(z.dtype), axis=-1, keepdims=True)
    s = jnp.sum(jnp.where(cond, z_sorted, 0.0), axis=-1, keepdims=True)
    tau = (s - 1.0) / k
    return jnp.maximum(z - tau, 0.0)


def ref_attentive_transformer(processed_feat, priors, w_fc, bn_scale, bn_shift):
    # Match the kernel's matmul semantics (bf16 inputs, f32 accumulation) so the
    # comparison tests the sparsemax/BN path rather than matmul rounding.
    x = jnp.dot(processed_feat.astype(jnp.bfloat16), w_fc.astype(jnp.bfloat16),
                preferred_element_type=jnp.float32)
    x = x * bn_scale.reshape(1, -1) + bn_shift.reshape(1, -1)
    z = x * priors
    return _sparsemax_ref(z)


if __name__ == "__main__":
    # Small module-consistent shapes: B=batch, D=attention dim (fc input),
    # K=number of features (fc output / priors / sparsemax axis).
    B, D, K = 24, 32, 24
    eps = 1e-5  # BatchNorm1d default

    key = jax.random.PRNGKey(0)
    k0, k1, k2, k3 = jax.random.split(key, 4)

    # fc: Linear(D, K, bias=False), xavier_normal with initialize_non_glu gain,
    # stored transposed as (D, K) so fc(x) == x @ W.
    gain = np.sqrt((D + K) / np.sqrt(4 * D))
    std = np.float32(gain * np.sqrt(2.0 / (D + K)))
    w_fc = std * jax.random.normal(k0, (D, K), jnp.float32)

    # GhostBatchNorm (eval mode) folded into per-feature scale/shift.
    kk = jax.random.split(k1, 4)
    gamma = 1.0 + 0.1 * jax.random.normal(kk[0], (K,), jnp.float32)
    beta = 0.1 * jax.random.normal(kk[1], (K,), jnp.float32)
    mean = 0.05 * jax.random.normal(kk[2], (K,), jnp.float32)
    var = 1.0 + 0.1 * jax.random.uniform(kk[3], (K,), dtype=jnp.float32)
    bn_scale = gamma / jnp.sqrt(var + eps)
    bn_shift = beta - mean * bn_scale

    processed_feat = jax.random.normal(k2, (B, D), jnp.float32)
    # priors are non-negative scaling masks in TabNet
    priors = jax.random.uniform(k3, (B, K), dtype=jnp.float32,
                                minval=0.2, maxval=1.0)

    # Constant operands padded/cast once, outside the per-call path.
    params = prepare_attentive_params(w_fc, bn_scale, bn_shift)

    # Tile heuristic picks TB=16 -> 2 batch tiles on the parallel axis (both TCs busy).
    out = attentive_transformer(processed_feat, priors, params)
    out = jax.block_until_ready(out)

    ref = ref_attentive_transformer(processed_feat, priors, w_fc,
                                    bn_scale, bn_shift)
    np.testing.assert_allclose(np.asarray(out), np.asarray(ref),
                               rtol=2e-3, atol=5e-4)
    # sparsemax rows must lie on the simplex
    np.testing.assert_allclose(np.asarray(out).sum(-1), np.ones(B),
                               rtol=1e-4, atol=1e-4)
    print("KERNEL_OK")
</pallas_src>

<mosaic_0001>
module attributes {stable_mosaic.version = 11 : i64} {
  func.func @kernel(%arg0: i32, %arg1: memref<16x32xbf16, #tpu.memory_space<vmem>>, %arg2: memref<16x128xf32, #tpu.memory_space<vmem>>, %arg3: memref<32x128xbf16, #tpu.memory_space<vmem>>, %arg4: memref<1x128xf32, #tpu.memory_space<vmem>>, %arg5: memref<1x128xf32, #tpu.memory_space<vmem>>, %arg6: memref<16x128xf32, #tpu.memory_space<vmem>>) attributes {dimension_semantics = [#tpu.dimension_semantics<parallel>], iteration_bounds = array<i64: 2>, scalar_prefetch = 0 : i64, scratch_operands = 0 : i64, tpu.core_type = #tpu.core_type<tc>, window_params = [{transform_indices = @transform_0, window_bounds = array<i64: 16, 32>}, {transform_indices = @transform_1, window_bounds = array<i64: 16, 128>}, {pipeline_mode = #tpu.pipeline_mode<synchronous>, transform_indices = @transform_2, window_bounds = array<i64: 32, 128>}, {pipeline_mode = #tpu.pipeline_mode<synchronous>, transform_indices = @transform_3, window_bounds = array<i64: 1, 128>}, {pipeline_mode = #tpu.pipeline_mode<synchronous>, transform_indices = @transform_4, window_bounds = array<i64: 1, 128>}, {transform_indices = @transform_5, window_bounds = array<i64: 16, 128>}]} {
    %c0 = arith.constant 0 : index
    %c0_0 = arith.constant 0 : index
    %0 = vector.load %arg1[%c0, %c0_0] : memref<16x32xbf16, #tpu.memory_space<vmem>>, vector<16x32xbf16>
    %c0_1 = arith.constant 0 : index
    %c0_2 = arith.constant 0 : index
    %1 = vector.load %arg3[%c0_1, %c0_2] : memref<32x128xbf16, #tpu.memory_space<vmem>>, vector<32x128xbf16>
    %cst = arith.constant dense<0.000000e+00> : vector<16x128xf32>
    %2 = tpu.matmul %0, %1, %cst {dimension_numbers = #tpu.dot_dimension_numbers<[1], [0], [0], [1], [0, 0, 1, 1], [], []>} : vector<16x32xbf16>, vector<32x128xbf16>, vector<16x128xf32> -> vector<16x128xf32>
    %c0_3 = arith.constant 0 : index
    %c0_4 = arith.constant 0 : index
    %3 = vector.load %arg4[%c0_3, %c0_4] : memref<1x128xf32, #tpu.memory_space<vmem>>, vector<1x128xf32>
    %4 = vector.broadcast %3 : vector<1x128xf32> to vector<16x128xf32>
    %5 = arith.mulf %2, %4 : vector<16x128xf32>
    %c0_5 = arith.constant 0 : index
    %c0_6 = arith.constant 0 : index
    %6 = vector.load %arg5[%c0_5, %c0_6] : memref<1x128xf32, #tpu.memory_space<vmem>>, vector<1x128xf32>
    %7 = vector.broadcast %6 : vector<1x128xf32> to vector<16x128xf32>
    %8 = arith.addf %5, %7 : vector<16x128xf32>
    %c0_7 = arith.constant 0 : index
    %c0_8 = arith.constant 0 : index
    %9 = vector.load %arg2[%c0_7, %c0_8] : memref<16x128xf32, #tpu.memory_space<vmem>>, vector<16x128xf32>
    %10 = arith.mulf %8, %9 : vector<16x128xf32>
    %11 = tpu.iota {dimensions = array<i32: 1>} : vector<1x128xi32>
    %c24_i32 = arith.constant 24 : i32
    %12 = vector.broadcast %c24_i32 : i32 to vector<1x128xi32>
    %13 = arith.cmpi slt, %11, %12 : vector<1x128xi32>
    %cst_9 = arith.constant -1.000000e+30 : f32
    %14 = vector.shape_cast %13 : vector<1x128xi1> to vector<1x128xi1>
    %15 = vector.broadcast %14 : vector<1x128xi1> to vector<16x128xi1>
    %16 = vector.broadcast %cst_9 : f32 to vector<16x128xf32>
    %17 = arith.select %15, %10, %16 : vector<16x128xi1>, vector<16x128xf32>
    %cst_10 = arith.constant dense<0xFF800000> : vector<16xf32>
    %18 = vector.multi_reduction <maximumf>, %17, %cst_10 [1] : vector<16x128xf32> to vector<16xf32>
    %19 = vector.shape_cast %18 : vector<16xf32> to vector<16x1xf32>
    %cst_11 = arith.constant 1.000000e+00 : f32
    %20 = vector.broadcast %cst_11 : f32 to vector<16x1xf32>
    %21 = arith.subf %19, %20 : vector<16x1xf32>
    %c0_i32 = arith.constant 0 : i32
    %22 = arith.addf %21, %19 : vector<16x1xf32>
    %cst_12 = arith.constant 5.000000e-01 : f32
    %23 = vector.broadcast %cst_12 : f32 to vector<16x1xf32>
    %24 = arith.mulf %23, %22 : vector<16x1xf32>
    %25 = vector.broadcast %24 : vector<16x1xf32> to vector<16x128xf32>
    %26 = arith.subf %17, %25 : vector<16x128xf32>
    %cst_13 = arith.constant 0.000000e+00 : f32
    %27 = vector.broadcast %cst_13 : f32 to vector<16x128xf32>
    %28 = arith.maximumf %26, %27 : vector<16x128xf32>
    %cst_14 = arith.constant dense<0.000000e+00> : vector<16xf32>
    %29 = vector.multi_reduction <add>, %28, %cst_14 [1] : vector<16x128xf32> to vector<16xf32>
    %30 = vector.shape_cast %29 : vector<16xf32> to vector<16x1xf32>
    %cst_15 = arith.constant 1.000000e+00 : f32
    %31 = vector.broadcast %cst_15 : f32 to vector<16x1xf32>
    %32 = arith.cmpf ogt, %30, %31 : vector<16x1xf32>
    %33 = arith.select %32, %24, %21 : vector<16x1xi1>, vector<16x1xf32>
    %34 = arith.select %32, %19, %24 : vector<16x1xi1>, vector<16x1xf32>
    %c1_i32 = arith.constant 1 : i32
    %35 = arith.addf %33, %34 : vector<16x1xf32>
    %cst_16 = arith.constant 5.000000e-01 : f32
    %36 = vector.broadcast %cst_16 : f32 to vector<16x1xf32>
    %37 = arith.mulf %36, %35 : vector<16x1xf32>
    %38 = vector.broadcast %37 : vector<16x1xf32> to vector<16x128xf32>
    %39 = arith.subf %17, %38 : vector<16x128xf32>
    %cst_17 = arith.constant 0.000000e+00 : f32
    %40 = vector.broadcast %cst_17 : f32 to vector<16x128xf32>
    %41 = arith.maximumf %39, %40 : vector<16x128xf32>
    %cst_18 = arith.constant dense<0.000000e+00> : vector<16xf32>
    %42 = vector.multi_reduction <add>, %41, %cst_18 [1] : vector<16x128xf32> to vector<16xf32>
    %43 = vector.shape_cast %42 : vector<16xf32> to vector<16x1xf32>
    %cst_19 = arith.constant 1.000000e+00 : f32
    %44 = vector.broadcast %cst_19 : f32 to vector<16x1xf32>
    %45 = arith.cmpf ogt, %43, %44 : vector<16x1xf32>
    %46 = arith.select %45, %37, %33 : vector<16x1xi1>, vector<16x1xf32>
    %47 = arith.select %45, %34, %37 : vector<16x1xi1>, vector<16x1xf32>
    %c2_i32 = arith.constant 2 : i32
    %48 = arith.addf %46, %47 : vector<16x1xf32>
    %cst_20 = arith.constant 5.000000e-01 : f32
    %49 = vector.broadcast %cst_20 : f32 to vector<16x1xf32>
    %50 = arith.mulf %49, %48 : vector<16x1xf32>
    %51 = vector.broadcast %50 : vector<16x1xf32> to vector<16x128xf32>
    %52 = arith.subf %17, %51 : vector<16x128xf32>
    %cst_21 = arith.constant 0.000000e+00 : f32
    %53 = vector.broadcast %cst_21 : f32 to vector<16x128xf32>
    %54 = arith.maximumf %52, %53 : vector<16x128xf32>
    %cst_22 = arith.constant dense<0.000000e+00> : vector<16xf32>
    %55 = vector.multi_reduction <add>, %54, %cst_22 [1] : vector<16x128xf32> to vector<16xf32>
    %56 = vector.shape_cast %55 : vector<16xf32> to vector<16x1xf32>
    %cst_23 = arith.constant 1.000000e+00 : f32
    %57 = vector.broadcast %cst_23 : f32 to vector<16x1xf32>
    %58 = arith.cmpf ogt, %56, %57 : vector<16x1xf32>
    %59 = arith.select %58, %50, %46 : vector<16x1xi1>, vector<16x1xf32>
    %60 = arith.select %58, %47, %50 : vector<16x1xi1>, vector<16x1xf32>
    %c3_i32 = arith.constant 3 : i32
    %61 = arith.addf %59, %60 : vector<16x1xf32>
    %cst_24 = arith.constant 5.000000e-01 : f32
    %62 = vector.broadcast %cst_24 : f32 to vector<16x1xf32>
    %63 = arith.mulf %62, %61 : vector<16x1xf32>
    %64 = vector.broadcast %63 : vector<16x1xf32> to vector<16x128xf32>
    %65 = arith.subf %17, %64 : vector<16x128xf32>
    %cst_25 = arith.constant 0.000000e+00 : f32
    %66 = vector.broadcast %cst_25 : f32 to vector<16x128xf32>
    %67 = arith.maximumf %65, %66 : vector<16x128xf32>
    %cst_26 = arith.constant dense<0.000000e+00> : vector<16xf32>
    %68 = vector.multi_reduction <add>, %67, %cst_26 [1] : vector<16x128xf32> to vector<16xf32>
    %69 = vector.shape_cast %68 : vector<16xf32> to vector<16x1xf32>
    %cst_27 = arith.constant 1.000000e+00 : f32
    %70 = vector.broadcast %cst_27 : f32 to vector<16x1xf32>
    %71 = arith.cmpf ogt, %69, %70 : vector<16x1xf32>
    %72 = arith.select %71, %63, %59 : vector<16x1xi1>, vector<16x1xf32>
    %73 = arith.select %71, %60, %63 : vector<16x1xi1>, vector<16x1xf32>
    %c4_i32 = arith.constant 4 : i32
    %74 = arith.addf %72, %73 : vector<16x1xf32>
    %cst_28 = arith.constant 5.000000e-01 : f32
    %75 = vector.broadcast %cst_28 : f32 to vector<16x1xf32>
    %76 = arith.mulf %75, %74 : vector<16x1xf32>
    %77 = vector.broadcast %76 : vector<16x1xf32> to vector<16x128xf32>
    %78 = arith.subf %17, %77 : vector<16x128xf32>
    %cst_29 = arith.constant 0.000000e+00 : f32
    %79 = vector.broadcast %cst_29 : f32 to vector<16x128xf32>
    %80 = arith.maximumf %78, %79 : vector<16x128xf32>
    %cst_30 = arith.constant dense<0.000000e+00> : vector<16xf32>
    %81 = vector.multi_reduction <add>, %80, %cst_30 [1] : vector<16x128xf32> to vector<16xf32>
    %82 = vector.shape_cast %81 : vector<16xf32> to vector<16x1xf32>
    %cst_31 = arith.constant 1.000000e+00 : f32
    %83 = vector.broadcast %cst_31 : f32 to vector<16x1xf32>
    %84 = arith.cmpf ogt, %82, %83 : vector<16x1xf32>
    %85 = arith.select %84, %76, %72 : vector<16x1xi1>, vector<16x1xf32>
    %86 = arith.select %84, %73, %76 : vector<16x1xi1>, vector<16x1xf32>
    %c5_i32 = arith.constant 5 : i32
    %87 = arith.addf %85, %86 : vector<16x1xf32>
    %cst_32 = arith.constant 5.000000e-01 : f32
    %88 = vector.broadcast %cst_32 : f32 to vector<16x1xf32>
    %89 = arith.mulf %88, %87 : vector<16x1xf32>
    %90 = vector.broadcast %89 : vector<16x1xf32> to vector<16x128xf32>
    %91 = arith.subf %17, %90 : vector<16x128xf32>
    %cst_33 = arith.constant 0.000000e+00 : f32
    %92 = vector.broadcast %cst_33 : f32 to vector<16x128xf32>
    %93 = arith.maximumf %91, %92 : vector<16x128xf32>
    %cst_34 = arith.constant dense<0.000000e+00> : vector<16xf32>
    %94 = vector.multi_reduction <add>, %93, %cst_34 [1] : vector<16x128xf32> to vector<16xf32>
    %95 = vector.shape_cast %94 : vector<16xf32> to vector<16x1xf32>
    %cst_35 = arith.constant 1.000000e+00 : f32
    %96 = vector.broadcast %cst_35 : f32 to vector<16x1xf32>
    %97 = arith.cmpf ogt, %95, %96 : vector<16x1xf32>
    %98 = arith.select %97, %89, %85 : vector<16x1xi1>, vector<16x1xf32>
    %99 = arith.select %97, %86, %89 : vector<16x1xi1>, vector<16x1xf32>
    %c6_i32 = arith.constant 6 : i32
    %100 = arith.addf %98, %99 : vector<16x1xf32>
    %cst_36 = arith.constant 5.000000e-01 : f32
    %101 = vector.broadcast %cst_36 : f32 to vector<16x1xf32>
    %102 = arith.mulf %101, %100 : vector<16x1xf32>
    %103 = vector.broadcast %102 : vector<16x1xf32> to vector<16x128xf32>
    %104 = arith.subf %17, %103 : vector<16x128xf32>
    %cst_37 = arith.constant 0.000000e+00 : f32
    %105 = vector.broadcast %cst_37 : f32 to vector<16x128xf32>
    %106 = arith.maximumf %104, %105 : vector<16x128xf32>
    %cst_38 = arith.constant dense<0.000000e+00> : vector<16xf32>
    %107 = vector.multi_reduction <add>, %106, %cst_38 [1] : vector<16x128xf32> to vector<16xf32>
    %108 = vector.shape_cast %107 : vector<16xf32> to vector<16x1xf32>
    %cst_39 = arith.constant 1.000000e+00 : f32
    %109 = vector.broadcast %cst_39 : f32 to vector<16x1xf32>
    %110 = arith.cmpf ogt, %108, %109 : vector<16x1xf32>
    %111 = arith.select %110, %102, %98 : vector<16x1xi1>, vector<16x1xf32>
    %112 = arith.select %110, %99, %102 : vector<16x1xi1>, vector<16x1xf32>
    %c7_i32 = arith.constant 7 : i32
    %113 = arith.addf %111, %112 : vector<16x1xf32>
    %cst_40 = arith.constant 5.000000e-01 : f32
    %114 = vector.broadcast %cst_40 : f32 to vector<16x1xf32>
    %115 = arith.mulf %114, %113 : vector<16x1xf32>
    %116 = vector.broadcast %115 : vector<16x1xf32> to vector<16x128xf32>
    %117 = arith.subf %17, %116 : vector<16x128xf32>
    %cst_41 = arith.constant 0.000000e+00 : f32
    %118 = vector.broadcast %cst_41 : f32 to vector<16x128xf32>
    %119 = arith.maximumf %117, %118 : vector<16x128xf32>
    %cst_42 = arith.constant dense<0.000000e+00> : vector<16xf32>
    %120 = vector.multi_reduction <add>, %119, %cst_42 [1] : vector<16x128xf32> to vector<16xf32>
    %121 = vector.shape_cast %120 : vector<16xf32> to vector<16x1xf32>
    %cst_43 = arith.constant 1.000000e+00 : f32
    %122 = vector.broadcast %cst_43 : f32 to vector<16x1xf32>
    %123 = arith.cmpf ogt, %121, %122 : vector<16x1xf32>
    %124 = arith.select %123, %115, %111 : vector<16x1xi1>, vector<16x1xf32>
    %125 = arith.select %123, %112, %115 : vector<16x1xi1>, vector<16x1xf32>
    %c8_i32 = arith.constant 8 : i32
    %126 = arith.addf %124, %125 : vector<16x1xf32>
    %cst_44 = arith.constant 5.000000e-01 : f32
    %127 = vector.broadcast %cst_44 : f32 to vector<16x1xf32>
    %128 = arith.mulf %127, %126 : vector<16x1xf32>
    %129 = vector.broadcast %128 : vector<16x1xf32> to vector<16x128xf32>
    %130 = arith.subf %17, %129 : vector<16x128xf32>
    %cst_45 = arith.constant 0.000000e+00 : f32
    %131 = vector.broadcast %cst_45 : f32 to vector<16x128xf32>
    %132 = arith.maximumf %130, %131 : vector<16x128xf32>
    %cst_46 = arith.constant dense<0.000000e+00> : vector<16xf32>
    %133 = vector.multi_reduction <add>, %132, %cst_46 [1] : vector<16x128xf32> to vector<16xf32>
    %134 = vector.shape_cast %133 : vector<16xf32> to vector<16x1xf32>
    %cst_47 = arith.constant 1.000000e+00 : f32
    %135 = vector.broadcast %cst_47 : f32 to vector<16x1xf32>
    %136 = arith.cmpf ogt, %134, %135 : vector<16x1xf32>
    %137 = arith.select %136, %128, %124 : vector<16x1xi1>, vector<16x1xf32>
    %138 = arith.select %136, %125, %128 : vector<16x1xi1>, vector<16x1xf32>
    %c9_i32 = arith.constant 9 : i32
    %139 = arith.addf %137, %138 : vector<16x1xf32>
    %cst_48 = arith.constant 5.000000e-01 : f32
    %140 = vector.broadcast %cst_48 : f32 to vector<16x1xf32>
    %141 = arith.mulf %140, %139 : vector<16x1xf32>
    %142 = vector.broadcast %141 : vector<16x1xf32> to vector<16x128xf32>
    %143 = arith.subf %17, %142 : vector<16x128xf32>
    %cst_49 = arith.constant 0.000000e+00 : f32
    %144 = vector.broadcast %cst_49 : f32 to vector<16x128xf32>
    %145 = arith.maximumf %143, %144 : vector<16x128xf32>
    %cst_50 = arith.constant dense<0.000000e+00> : vector<16xf32>
    %146 = vector.multi_reduction <add>, %145, %cst_50 [1] : vector<16x128xf32> to vector<16xf32>
    %147 = vector.shape_cast %146 : vector<16xf32> to vector<16x1xf32>
    %cst_51 = arith.constant 1.000000e+00 : f32
    %148 = vector.broadcast %cst_51 : f32 to vector<16x1xf32>
    %149 = arith.cmpf ogt, %147, %148 : vector<16x1xf32>
    %150 = arith.select %149, %141, %137 : vector<16x1xi1>, vector<16x1xf32>
    %151 = arith.select %149, %138, %141 : vector<16x1xi1>, vector<16x1xf32>
    %c10_i32 = arith.constant 10 : i32
    %152 = arith.addf %150, %151 : vector<16x1xf32>
    %cst_52 = arith.constant 5.000000e-01 : f32
    %153 = vector.broadcast %cst_52 : f32 to vector<16x1xf32>
    %154 = arith.mulf %153, %152 : vector<16x1xf32>
    %155 = vector.broadcast %154 : vector<16x1xf32> to vector<16x128xf32>
    %156 = arith.subf %17, %155 : vector<16x128xf32>
    %cst_53 = arith.constant 0.000000e+00 : f32
    %157 = vector.broadcast %cst_53 : f32 to vector<16x128xf32>
    %158 = arith.maximumf %156, %157 : vector<16x128xf32>
    %cst_54 = arith.constant dense<0.000000e+00> : vector<16xf32>
    %159 = vector.multi_reduction <add>, %158, %cst_54 [1] : vector<16x128xf32> to vector<16xf32>
    %160 = vector.shape_cast %159 : vector<16xf32> to vector<16x1xf32>
    %cst_55 = arith.constant 1.000000e+00 : f32
    %161 = vector.broadcast %cst_55 : f32 to vector<16x1xf32>
    %162 = arith.cmpf ogt, %160, %161 : vector<16x1xf32>
    %163 = arith.select %162, %154, %150 : vector<16x1xi1>, vector<16x1xf32>
    %164 = arith.select %162, %151, %154 : vector<16x1xi1>, vector<16x1xf32>
    %c11_i32 = arith.constant 11 : i32
    %165 = arith.addf %163, %164 : vector<16x1xf32>
    %cst_56 = arith.constant 5.000000e-01 : f32
    %166 = vector.broadcast %cst_56 : f32 to vector<16x1xf32>
    %167 = arith.mulf %166, %165 : vector<16x1xf32>
    %168 = vector.broadcast %167 : vector<16x1xf32> to vector<16x128xf32>
    %169 = arith.subf %17, %168 : vector<16x128xf32>
    %cst_57 = arith.constant 0.000000e+00 : f32
    %170 = vector.broadcast %cst_57 : f32 to vector<16x128xf32>
    %171 = arith.maximumf %169, %170 : vector<16x128xf32>
    %cst_58 = arith.constant dense<0.000000e+00> : vector<16xf32>
    %172 = vector.multi_reduction <add>, %171, %cst_58 [1] : vector<16x128xf32> to vector<16xf32>
    %173 = vector.shape_cast %172 : vector<16xf32> to vector<16x1xf32>
    %cst_59 = arith.constant 1.000000e+00 : f32
    %174 = vector.broadcast %cst_59 : f32 to vector<16x1xf32>
    %175 = arith.cmpf ogt, %173, %174 : vector<16x1xf32>
    %176 = arith.select %175, %167, %163 : vector<16x1xi1>, vector<16x1xf32>
    %177 = arith.select %175, %164, %167 : vector<16x1xi1>, vector<16x1xf32>
    %c12_i32 = arith.constant 12 : i32
    %178 = arith.addf %176, %177 : vector<16x1xf32>
    %cst_60 = arith.constant 5.000000e-01 : f32
    %179 = vector.broadcast %cst_60 : f32 to vector<16x1xf32>
    %180 = arith.mulf %179, %178 : vector<16x1xf32>
    %181 = vector.broadcast %180 : vector<16x1xf32> to vector<16x128xf32>
    %182 = arith.subf %17, %181 : vector<16x128xf32>
    %cst_61 = arith.constant 0.000000e+00 : f32
    %183 = vector.broadcast %cst_61 : f32 to vector<16x128xf32>
    %184 = arith.maximumf %182, %183 : vector<16x128xf32>
    %cst_62 = arith.constant dense<0.000000e+00> : vector<16xf32>
    %185 = vector.multi_reduction <add>, %184, %cst_62 [1] : vector<16x128xf32> to vector<16xf32>
    %186 = vector.shape_cast %185 : vector<16xf32> to vector<16x1xf32>
    %cst_63 = arith.constant 1.000000e+00 : f32
    %187 = vector.broadcast %cst_63 : f32 to vector<16x1xf32>
    %188 = arith.cmpf ogt, %186, %187 : vector<16x1xf32>
    %189 = arith.select %188, %180, %176 : vector<16x1xi1>, vector<16x1xf32>
    %190 = arith.select %188, %177, %180 : vector<16x1xi1>, vector<16x1xf32>
    %c13_i32 = arith.constant 13 : i32
    %191 = arith.addf %189, %190 : vector<16x1xf32>
    %cst_64 = arith.constant 5.000000e-01 : f32
    %192 = vector.broadcast %cst_64 : f32 to vector<16x1xf32>
    %193 = arith.mulf %192, %191 : vector<16x1xf32>
    %194 = vector.broadcast %193 : vector<16x1xf32> to vector<16x128xf32>
    %195 = arith.subf %17, %194 : vector<16x128xf32>
    %cst_65 = arith.constant 0.000000e+00 : f32
    %196 = vector.broadcast %cst_65 : f32 to vector<16x128xf32>
    %197 = arith.maximumf %195, %196 : vector<16x128xf32>
    %cst_66 = arith.constant dense<0.000000e+00> : vector<16xf32>
    %198 = vector.multi_reduction <add>, %197, %cst_66 [1] : vector<16x128xf32> to vector<16xf32>
    %199 = vector.shape_cast %198 : vector<16xf32> to vector<16x1xf32>
    %cst_67 = arith.constant 1.000000e+00 : f32
    %200 = vector.broadcast %cst_67 : f32 to vector<16x1xf32>
    %201 = arith.cmpf ogt, %199, %200 : vector<16x1xf32>
    %202 = arith.select %201, %193, %189 : vector<16x1xi1>, vector<16x1xf32>
    %203 = arith.select %201, %190, %193 : vector<16x1xi1>, vector<16x1xf32>
    %c14_i32 = arith.constant 14 : i32
    %204 = arith.addf %202, %203 : vector<16x1xf32>
    %cst_68 = arith.constant 5.000000e-01 : f32
    %205 = vector.broadcast %cst_68 : f32 to vector<16x1xf32>
    %206 = arith.mulf %205, %204 : vector<16x1xf32>
    %207 = vector.broadcast %206 : vector<16x1xf32> to vector<16x128xf32>
    %208 = arith.subf %17, %207 : vector<16x128xf32>
    %cst_69 = arith.constant 0.000000e+00 : f32
    %209 = vector.broadcast %cst_69 : f32 to vector<16x128xf32>
    %210 = arith.maximumf %208, %209 : vector<16x128xf32>
    %cst_70 = arith.constant dense<0.000000e+00> : vector<16xf32>
    %211 = vector.multi_reduction <add>, %210, %cst_70 [1] : vector<16x128xf32> to vector<16xf32>
    %212 = vector.shape_cast %211 : vector<16xf32> to vector<16x1xf32>
    %cst_71 = arith.constant 1.000000e+00 : f32
    %213 = vector.broadcast %cst_71 : f32 to vector<16x1xf32>
    %214 = arith.cmpf ogt, %212, %213 : vector<16x1xf32>
    %215 = arith.select %214, %206, %202 : vector<16x1xi1>, vector<16x1xf32>
    %216 = arith.select %214, %203, %206 : vector<16x1xi1>, vector<16x1xf32>
    %c15_i32 = arith.constant 15 : i32
    %217 = arith.addf %215, %216 : vector<16x1xf32>
    %cst_72 = arith.constant 5.000000e-01 : f32
    %218 = vector.broadcast %cst_72 : f32 to vector<16x1xf32>
    %219 = arith.mulf %218, %217 : vector<16x1xf32>
    %220 = vector.broadcast %219 : vector<16x1xf32> to vector<16x128xf32>
    %221 = arith.subf %17, %220 : vector<16x128xf32>
    %cst_73 = arith.constant 0.000000e+00 : f32
    %222 = vector.broadcast %cst_73 : f32 to vector<16x128xf32>
    %223 = arith.maximumf %221, %222 : vector<16x128xf32>
    %cst_74 = arith.constant dense<0.000000e+00> : vector<16xf32>
    %224 = vector.multi_reduction <add>, %223, %cst_74 [1] : vector<16x128xf32> to vector<16xf32>
    %225 = vector.shape_cast %224 : vector<16xf32> to vector<16x1xf32>
    %cst_75 = arith.constant 1.000000e+00 : f32
    %226 = vector.broadcast %cst_75 : f32 to vector<16x1xf32>
    %227 = arith.cmpf ogt, %225, %226 : vector<16x1xf32>
    %228 = arith.select %227, %219, %215 : vector<16x1xi1>, vector<16x1xf32>
    %229 = arith.select %227, %216, %219 : vector<16x1xi1>, vector<16x1xf32>
    %c16_i32 = arith.constant 16 : i32
    %230 = arith.addf %228, %229 : vector<16x1xf32>
    %cst_76 = arith.constant 5.000000e-01 : f32
    %231 = vector.broadcast %cst_76 : f32 to vector<16x1xf32>
    %232 = arith.mulf %231, %230 : vector<16x1xf32>
    %233 = vector.broadcast %232 : vector<16x1xf32> to vector<16x128xf32>
    %234 = arith.subf %17, %233 : vector<16x128xf32>
    %cst_77 = arith.constant 0.000000e+00 : f32
    %235 = vector.broadcast %cst_77 : f32 to vector<16x128xf32>
    %236 = arith.maximumf %234, %235 : vector<16x128xf32>
    %cst_78 = arith.constant dense<0.000000e+00> : vector<16xf32>
    %237 = vector.multi_reduction <add>, %236, %cst_78 [1] : vector<16x128xf32> to vector<16xf32>
    %238 = vector.shape_cast %237 : vector<16xf32> to vector<16x1xf32>
    %cst_79 = arith.constant 1.000000e+00 : f32
    %239 = vector.broadcast %cst_79 : f32 to vector<16x1xf32>
    %240 = arith.cmpf ogt, %238, %239 : vector<16x1xf32>
    %241 = arith.select %240, %232, %228 : vector<16x1xi1>, vector<16x1xf32>
    %242 = arith.select %240, %229, %232 : vector<16x1xi1>, vector<16x1xf32>
    %c17_i32 = arith.constant 17 : i32
    %243 = arith.addf %241, %242 : vector<16x1xf32>
    %cst_80 = arith.constant 5.000000e-01 : f32
    %244 = vector.broadcast %cst_80 : f32 to vector<16x1xf32>
    %245 = arith.mulf %244, %243 : vector<16x1xf32>
    %246 = vector.broadcast %245 : vector<16x1xf32> to vector<16x128xf32>
    %247 = arith.subf %17, %246 : vector<16x128xf32>
    %cst_81 = arith.constant 0.000000e+00 : f32
    %248 = vector.broadcast %cst_81 : f32 to vector<16x128xf32>
    %249 = arith.maximumf %247, %248 : vector<16x128xf32>
    %cst_82 = arith.constant dense<0.000000e+00> : vector<16xf32>
    %250 = vector.multi_reduction <add>, %249, %cst_82 [1] : vector<16x128xf32> to vector<16xf32>
    %251 = vector.shape_cast %250 : vector<16xf32> to vector<16x1xf32>
    %cst_83 = arith.constant 1.000000e+00 : f32
    %252 = vector.broadcast %cst_83 : f32 to vector<16x1xf32>
    %253 = arith.cmpf ogt, %251, %252 : vector<16x1xf32>
    %254 = arith.select %253, %245, %241 : vector<16x1xi1>, vector<16x1xf32>
    %255 = arith.select %253, %242, %245 : vector<16x1xi1>, vector<16x1xf32>
    %c18_i32 = arith.constant 18 : i32
    %256 = arith.addf %254, %255 : vector<16x1xf32>
    %cst_84 = arith.constant 5.000000e-01 : f32
    %257 = vector.broadcast %cst_84 : f32 to vector<16x1xf32>
    %258 = arith.mulf %257, %256 : vector<16x1xf32>
    %259 = vector.broadcast %258 : vector<16x1xf32> to vector<16x128xf32>
    %260 = arith.subf %17, %259 : vector<16x128xf32>
    %cst_85 = arith.constant 0.000000e+00 : f32
    %261 = vector.broadcast %cst_85 : f32 to vector<16x128xf32>
    %262 = arith.maximumf %260, %261 : vector<16x128xf32>
    %cst_86 = arith.constant dense<0.000000e+00> : vector<16xf32>
    %263 = vector.multi_reduction <add>, %262, %cst_86 [1] : vector<16x128xf32> to vector<16xf32>
    %264 = vector.shape_cast %263 : vector<16xf32> to vector<16x1xf32>
    %cst_87 = arith.constant 1.000000e+00 : f32
    %265 = vector.broadcast %cst_87 : f32 to vector<16x1xf32>
    %266 = arith.cmpf ogt, %264, %265 : vector<16x1xf32>
    %267 = arith.select %266, %258, %254 : vector<16x1xi1>, vector<16x1xf32>
    %268 = arith.select %266, %255, %258 : vector<16x1xi1>, vector<16x1xf32>
    %c19_i32 = arith.constant 19 : i32
    %269 = arith.addf %267, %268 : vector<16x1xf32>
    %cst_88 = arith.constant 5.000000e-01 : f32
    %270 = vector.broadcast %cst_88 : f32 to vector<16x1xf32>
    %271 = arith.mulf %270, %269 : vector<16x1xf32>
    %272 = vector.broadcast %271 : vector<16x1xf32> to vector<16x128xf32>
    %273 = arith.subf %17, %272 : vector<16x128xf32>
    %cst_89 = arith.constant 0.000000e+00 : f32
    %274 = vector.broadcast %cst_89 : f32 to vector<16x128xf32>
    %275 = arith.maximumf %273, %274 : vector<16x128xf32>
    %cst_90 = arith.constant dense<0.000000e+00> : vector<16xf32>
    %276 = vector.multi_reduction <add>, %275, %cst_90 [1] : vector<16x128xf32> to vector<16xf32>
    %277 = vector.shape_cast %276 : vector<16xf32> to vector<16x1xf32>
    %cst_91 = arith.constant 1.000000e+00 : f32
    %278 = vector.broadcast %cst_91 : f32 to vector<16x1xf32>
    %279 = arith.cmpf ogt, %277, %278 : vector<16x1xf32>
    %280 = arith.select %279, %271, %267 : vector<16x1xi1>, vector<16x1xf32>
    %281 = arith.select %279, %268, %271 : vector<16x1xi1>, vector<16x1xf32>
    %c20_i32 = arith.constant 20 : i32
    %282 = arith.addf %280, %281 : vector<16x1xf32>
    %cst_92 = arith.constant 5.000000e-01 : f32
    %283 = vector.broadcast %cst_92 : f32 to vector<16x1xf32>
    %284 = arith.mulf %283, %282 : vector<16x1xf32>
    %285 = vector.broadcast %284 : vector<16x1xf32> to vector<16x128xf32>
    %286 = arith.subf %17, %285 : vector<16x128xf32>
    %cst_93 = arith.constant 0.000000e+00 : f32
    %287 = vector.broadcast %cst_93 : f32 to vector<16x128xf32>
    %288 = arith.maximumf %286, %287 : vector<16x128xf32>
    %cst_94 = arith.constant dense<0.000000e+00> : vector<16xf32>
    %289 = vector.multi_reduction <add>, %288, %cst_94 [1] : vector<16x128xf32> to vector<16xf32>
    %290 = vector.shape_cast %289 : vector<16xf32> to vector<16x1xf32>
    %cst_95 = arith.constant 1.000000e+00 : f32
    %291 = vector.broadcast %cst_95 : f32 to vector<16x1xf32>
    %292 = arith.cmpf ogt, %290, %291 : vector<16x1xf32>
    %293 = arith.select %292, %284, %280 : vector<16x1xi1>, vector<16x1xf32>
    %294 = arith.select %292, %281, %284 : vector<16x1xi1>, vector<16x1xf32>
    %c21_i32 = arith.constant 21 : i32
    %295 = arith.addf %293, %294 : vector<16x1xf32>
    %cst_96 = arith.constant 5.000000e-01 : f32
    %296 = vector.broadcast %cst_96 : f32 to vector<16x1xf32>
    %297 = arith.mulf %296, %295 : vector<16x1xf32>
    %298 = vector.broadcast %297 : vector<16x1xf32> to vector<16x128xf32>
    %299 = arith.subf %17, %298 : vector<16x128xf32>
    %cst_97 = arith.constant 0.000000e+00 : f32
    %300 = vector.broadcast %cst_97 : f32 to vector<16x128xf32>
    %301 = arith.maximumf %299, %300 : vector<16x128xf32>
    %cst_98 = arith.constant dense<0.000000e+00> : vector<16xf32>
    %302 = vector.multi_reduction <add>, %301, %cst_98 [1] : vector<16x128xf32> to vector<16xf32>
    %303 = vector.shape_cast %302 : vector<16xf32> to vector<16x1xf32>
    %cst_99 = arith.constant 1.000000e+00 : f32
    %304 = vector.broadcast %cst_99 : f32 to vector<16x1xf32>
    %305 = arith.cmpf ogt, %303, %304 : vector<16x1xf32>
    %306 = arith.select %305, %297, %293 : vector<16x1xi1>, vector<16x1xf32>
    %307 = arith.select %305, %294, %297 : vector<16x1xi1>, vector<16x1xf32>
    %c22_i32 = arith.constant 22 : i32
    %308 = arith.addf %306, %307 : vector<16x1xf32>
    %cst_100 = arith.constant 5.000000e-01 : f32
    %309 = vector.broadcast %cst_100 : f32 to vector<16x1xf32>
    %310 = arith.mulf %309, %308 : vector<16x1xf32>
    %311 = vector.broadcast %310 : vector<16x1xf32> to vector<16x128xf32>
    %312 = arith.subf %17, %311 : vector<16x128xf32>
    %cst_101 = arith.constant 0.000000e+00 : f32
    %313 = vector.broadcast %cst_101 : f32 to vector<16x128xf32>
    %314 = arith.maximumf %312, %313 : vector<16x128xf32>
    %cst_102 = arith.constant dense<0.000000e+00> : vector<16xf32>
    %315 = vector.multi_reduction <add>, %314, %cst_102 [1] : vector<16x128xf32> to vector<16xf32>
    %316 = vector.shape_cast %315 : vector<16xf32> to vector<16x1xf32>
    %cst_103 = arith.constant 1.000000e+00 : f32
    %317 = vector.broadcast %cst_103 : f32 to vector<16x1xf32>
    %318 = arith.cmpf ogt, %316, %317 : vector<16x1xf32>
    %319 = arith.select %318, %310, %306 : vector<16x1xi1>, vector<16x1xf32>
    %320 = arith.select %318, %307, %310 : vector<16x1xi1>, vector<16x1xf32>
    %c23_i32 = arith.constant 23 : i32
    %321 = arith.addf %319, %320 : vector<16x1xf32>
    %cst_104 = arith.constant 5.000000e-01 : f32
    %322 = vector.broadcast %cst_104 : f32 to vector<16x1xf32>
    %323 = arith.mulf %322, %321 : vector<16x1xf32>
    %324 = vector.broadcast %323 : vector<16x1xf32> to vector<16x128xf32>
    %325 = arith.subf %17, %324 : vector<16x128xf32>
    %cst_105 = arith.constant 0.000000e+00 : f32
    %326 = vector.broadcast %cst_105 : f32 to vector<16x128xf32>
    %327 = arith.maximumf %325, %326 : vector<16x128xf32>
    %cst_106 = arith.constant dense<0.000000e+00> : vector<16xf32>
    %328 = vector.multi_reduction <add>, %327, %cst_106 [1] : vector<16x128xf32> to vector<16xf32>
    %329 = vector.shape_cast %328 : vector<16xf32> to vector<16x1xf32>
    %cst_107 = arith.constant 1.000000e+00 : f32
    %330 = vector.broadcast %cst_107 : f32 to vector<16x1xf32>
    %331 = arith.cmpf ogt, %329, %330 : vector<16x1xf32>
    %332 = arith.select %331, %323, %319 : vector<16x1xi1>, vector<16x1xf32>
    %333 = arith.select %331, %320, %323 : vector<16x1xi1>, vector<16x1xf32>
    %c24_i32_108 = arith.constant 24 : i32
    %334 = arith.addf %332, %333 : vector<16x1xf32>
    %cst_109 = arith.constant 5.000000e-01 : f32
    %335 = vector.broadcast %cst_109 : f32 to vector<16x1xf32>
    %336 = arith.mulf %335, %334 : vector<16x1xf32>
    %337 = vector.broadcast %336 : vector<16x1xf32> to vector<16x128xf32>
    %338 = arith.subf %17, %337 : vector<16x128xf32>
    %cst_110 = arith.constant 0.000000e+00 : f32
    %339 = vector.broadcast %cst_110 : f32 to vector<16x128xf32>
    %340 = arith.maximumf %338, %339 : vector<16x128xf32>
    %cst_111 = arith.constant dense<0.000000e+00> : vector<16xf32>
    %341 = vector.multi_reduction <add>, %340, %cst_111 [1] : vector<16x128xf32> to vector<16xf32>
    %342 = vector.shape_cast %341 : vector<16xf32> to vector<16x1xf32>
    %cst_112 = arith.constant 1.000000e+00 : f32
    %343 = vector.broadcast %cst_112 : f32 to vector<16x1xf32>
    %344 = arith.cmpf ogt, %342, %343 : vector<16x1xf32>
    %345 = arith.select %344, %336, %332 : vector<16x1xi1>, vector<16x1xf32>
    %346 = arith.select %344, %333, %336 : vector<16x1xi1>, vector<16x1xf32>
    %c25_i32 = arith.constant 25 : i32
    %347 = arith.addf %345, %346 : vector<16x1xf32>
    %cst_113 = arith.constant 5.000000e-01 : f32
    %348 = vector.broadcast %cst_113 : f32 to vector<16x1xf32>
    %349 = arith.mulf %348, %347 : vector<16x1xf32>
    %350 = vector.broadcast %349 : vector<16x1xf32> to vector<16x128xf32>
    %351 = arith.subf %17, %350 : vector<16x128xf32>
    %cst_114 = arith.constant 0.000000e+00 : f32
    %352 = vector.broadcast %cst_114 : f32 to vector<16x128xf32>
    %353 = arith.maximumf %351, %352 : vector<16x128xf32>
    %cst_115 = arith.constant dense<0.000000e+00> : vector<16xf32>
    %354 = vector.multi_reduction <add>, %353, %cst_115 [1] : vector<16x128xf32> to vector<16xf32>
    %355 = vector.shape_cast %354 : vector<16xf32> to vector<16x1xf32>
    %cst_116 = arith.constant 1.000000e+00 : f32
    %356 = vector.broadcast %cst_116 : f32 to vector<16x1xf32>
    %357 = arith.cmpf ogt, %355, %356 : vector<16x1xf32>
    %358 = arith.select %357, %349, %345 : vector<16x1xi1>, vector<16x1xf32>
    %359 = arith.select %357, %346, %349 : vector<16x1xi1>, vector<16x1xf32>
    %c26_i32 = arith.constant 26 : i32
    %360 = arith.addf %358, %359 : vector<16x1xf32>
    %cst_117 = arith.constant 5.000000e-01 : f32
    %361 = vector.broadcast %cst_117 : f32 to vector<16x1xf32>
    %362 = arith.mulf %361, %360 : vector<16x1xf32>
    %363 = vector.broadcast %362 : vector<16x1xf32> to vector<16x128xf32>
    %364 = arith.subf %17, %363 : vector<16x128xf32>
    %cst_118 = arith.constant 0.000000e+00 : f32
    %365 = vector.broadcast %cst_118 : f32 to vector<16x128xf32>
    %366 = arith.maximumf %364, %365 : vector<16x128xf32>
    %cst_119 = arith.constant dense<0.000000e+00> : vector<16xf32>
    %367 = vector.multi_reduction <add>, %366, %cst_119 [1] : vector<16x128xf32> to vector<16xf32>
    %368 = vector.shape_cast %367 : vector<16xf32> to vector<16x1xf32>
    %cst_120 = arith.constant 1.000000e+00 : f32
    %369 = vector.broadcast %cst_120 : f32 to vector<16x1xf32>
    %370 = arith.cmpf ogt, %368, %369 : vector<16x1xf32>
    %371 = arith.select %370, %362, %358 : vector<16x1xi1>, vector<16x1xf32>
    %372 = arith.select %370, %359, %362 : vector<16x1xi1>, vector<16x1xf32>
    %c27_i32 = arith.constant 27 : i32
    %373 = arith.addf %371, %372 : vector<16x1xf32>
    %cst_121 = arith.constant 5.000000e-01 : f32
    %374 = vector.broadcast %cst_121 : f32 to vector<16x1xf32>
    %375 = arith.mulf %374, %373 : vector<16x1xf32>
    %376 = vector.broadcast %375 : vector<16x1xf32> to vector<16x128xf32>
    %377 = arith.subf %17, %376 : vector<16x128xf32>
    %cst_122 = arith.constant 0.000000e+00 : f32
    %378 = vector.broadcast %cst_122 : f32 to vector<16x128xf32>
    %379 = arith.maximumf %377, %378 : vector<16x128xf32>
    %cst_123 = arith.constant dense<0.000000e+00> : vector<16xf32>
    %380 = vector.multi_reduction <add>, %379, %cst_123 [1] : vector<16x128xf32> to vector<16xf32>
    %381 = vector.shape_cast %380 : vector<16xf32> to vector<16x1xf32>
    %cst_124 = arith.constant 1.000000e+00 : f32
    %382 = vector.broadcast %cst_124 : f32 to vector<16x1xf32>
    %383 = arith.cmpf ogt, %381, %382 : vector<16x1xf32>
    %384 = arith.select %383, %375, %371 : vector<16x1xi1>, vector<16x1xf32>
    %385 = arith.select %383, %372, %375 : vector<16x1xi1>, vector<16x1xf32>
    %c28_i32 = arith.constant 28 : i32
    %386 = arith.addf %384, %385 : vector<16x1xf32>
    %cst_125 = arith.constant 5.000000e-01 : f32
    %387 = vector.broadcast %cst_125 : f32 to vector<16x1xf32>
    %388 = arith.mulf %387, %386 : vector<16x1xf32>
    %389 = vector.broadcast %388 : vector<16x1xf32> to vector<16x128xf32>
    %390 = arith.subf %17, %389 : vector<16x128xf32>
    %cst_126 = arith.constant 0.000000e+00 : f32
    %391 = vector.broadcast %cst_126 : f32 to vector<16x128xf32>
    %392 = arith.maximumf %390, %391 : vector<16x128xf32>
    %cst_127 = arith.constant dense<0.000000e+00> : vector<16xf32>
    %393 = vector.multi_reduction <add>, %392, %cst_127 [1] : vector<16x128xf32> to vector<16xf32>
    %394 = vector.shape_cast %393 : vector<16xf32> to vector<16x1xf32>
    %cst_128 = arith.constant 1.000000e+00 : f32
    %395 = vector.broadcast %cst_128 : f32 to vector<16x1xf32>
    %396 = arith.cmpf ogt, %394, %395 : vector<16x1xf32>
    %397 = arith.select %396, %388, %384 : vector<16x1xi1>, vector<16x1xf32>
    %398 = arith.select %396, %385, %388 : vector<16x1xi1>, vector<16x1xf32>
    %c29_i32 = arith.constant 29 : i32
    %399 = arith.addf %397, %398 : vector<16x1xf32>
    %cst_129 = arith.constant 5.000000e-01 : f32
    %400 = vector.broadcast %cst_129 : f32 to vector<16x1xf32>
    %401 = arith.mulf %400, %399 : vector<16x1xf32>
    %402 = vector.broadcast %401 : vector<16x1xf32> to vector<16x128xf32>
    %403 = arith.subf %17, %402 : vector<16x128xf32>
    %cst_130 = arith.constant 0.000000e+00 : f32
    %404 = vector.broadcast %cst_130 : f32 to vector<16x128xf32>
    %405 = arith.maximumf %403, %404 : vector<16x128xf32>
    %cst_131 = arith.constant dense<0.000000e+00> : vector<16xf32>
    %406 = vector.multi_reduction <add>, %405, %cst_131 [1] : vector<16x128xf32> to vector<16xf32>
    %407 = vector.shape_cast %406 : vector<16xf32> to vector<16x1xf32>
    %cst_132 = arith.constant 1.000000e+00 : f32
    %408 = vector.broadcast %cst_132 : f32 to vector<16x1xf32>
    %409 = arith.cmpf ogt, %407, %408 : vector<16x1xf32>
    %410 = arith.select %409, %401, %397 : vector<16x1xi1>, vector<16x1xf32>
    %411 = arith.select %409, %398, %401 : vector<16x1xi1>, vector<16x1xf32>
    %412 = vector.broadcast %410 : vector<16x1xf32> to vector<16x128xf32>
    %413 = arith.cmpf ogt, %17, %412 : vector<16x128xf32>
    %414 = arith.extui %413 : vector<16x128xi1> to vector<16x128xi32>
    %415 = arith.sitofp %414 : vector<16x128xi32> to vector<16x128xf32>
    %cst_133 = arith.constant dense<0.000000e+00> : vector<16xf32>
    %416 = vector.multi_reduction <add>, %415, %cst_133 [1] : vector<16x128xf32> to vector<16xf32>
    %417 = vector.shape_cast %416 : vector<16xf32> to vector<16x1xf32>
    %418 = arith.mulf %415, %17 : vector<16x128xf32>
    %cst_134 = arith.constant dense<0.000000e+00> : vector<16xf32>
    %419 = vector.multi_reduction <add>, %418, %cst_134 [1] : vector<16x128xf32> to vector<16xf32>
    %420 = vector.shape_cast %419 : vector<16xf32> to vector<16x1xf32>
    %cst_135 = arith.constant 1.000000e+00 : f32
    %421 = vector.broadcast %cst_135 : f32 to vector<16x1xf32>
    %422 = arith.subf %420, %421 : vector<16x1xf32>
    %423 = arith.divf %422, %417 : vector<16x1xf32>
    %424 = vector.broadcast %423 : vector<16x1xf32> to vector<16x128xf32>
    %425 = arith.subf %17, %424 : vector<16x128xf32>
    %cst_136 = arith.constant 0.000000e+00 : f32
    %426 = vector.broadcast %cst_136 : f32 to vector<16x128xf32>
    %427 = arith.maximumf %425, %426 : vector<16x128xf32>
    %c0_137 = arith.constant 0 : index
    %c0_138 = arith.constant 0 : index
    %428 = vector.load %arg6[%c0_137, %c0_138] : memref<16x128xf32, #tpu.memory_space<vmem>>, vector<16x128xf32>
    tpu.vector_store %arg6[%c0_137, %c0_138], %427 {strides = array<i32>} : memref<16x128xf32, #tpu.memory_space<vmem>>, vector<16x128xf32>,
    return
  }
  func.func @transform_0(%arg0: i32) -> (i32, i32) {
    %c0_i32 = arith.constant 0 : i32
    %c0_i32_0 = arith.constant 0 : i32
    return %arg0, %c0_i32 : i32, i32
  }
  func.func @transform_1(%arg0: i32) -> (i32, i32) {
    %c0_i32 = arith.constant 0 : i32
    %c0_i32_0 = arith.constant 0 : i32
    return %arg0, %c0_i32 : i32, i32
  }
  func.func @transform_2(%arg0: i32) -> (i32, i32) {
    %c0_i32 = arith.constant 0 : i32
    %c0_i32_0 = arith.constant 0 : i32
    %c0_i32_1 = arith.constant 0 : i32
    return %c0_i32, %c0_i32_0 : i32, i32
  }
  func.func @transform_3(%arg0: i32) -> (i32, i32) {
    %c0_i32 = arith.constant 0 : i32
    %c0_i32_0 = arith.constant 0 : i32
    %c0_i32_1 = arith.constant 0 : i32
    return %c0_i32, %c0_i32_0 : i32, i32
  }
  func.func @transform_4(%arg0: i32) -> (i32, i32) {
    %c0_i32 = arith.constant 0 : i32
    %c0_i32_0 = arith.constant 0 : i32
    %c0_i32_1 = arith.constant 0 : i32
    return %c0_i32, %c0_i32_0 : i32, i32
  }
  func.func @transform_5(%arg0: i32) -> (i32, i32) {
    %c0_i32 = arith.constant 0 : i32
    %c0_i32_0 = arith.constant 0 : i32
    return %arg0, %c0_i32 : i32, i32
  }
}

module attributes {stable_mosaic.version = 11 : i64} {
  func.func @kernel(%arg0: i32, %arg1: memref<16x32xbf16, #tpu.memory_space<vmem>>, %arg2: memref<16x128xf32, #tpu.memory_space<vmem>>, %arg3: memref<32x128xbf16, #tpu.memory_space<vmem>>, %arg4: memref<1x128xf32, #tpu.memory_space<vmem>>, %arg5: memref<1x128xf32, #tpu.memory_space<vmem>>, %arg6: memref<16x128xf32, #tpu.memory_space<vmem>>) attributes {dimension_semantics = [#tpu.dimension_semantics<parallel>], iteration_bounds = array<i64: 2>, scalar_prefetch = 0 : i64, scratch_operands = 0 : i64, tpu.core_type = #tpu.core_type<tc>, window_params = [{transform_indices = @transform_0, window_bounds = array<i64: 16, 32>}, {transform_indices = @transform_1, window_bounds = array<i64: 16, 128>}, {pipeline_mode = #tpu.pipeline_mode<synchronous>, transform_indices = @transform_2, window_bounds = array<i64: 32, 128>}, {pipeline_mode = #tpu.pipeline_mode<synchronous>, transform_indices = @transform_3, window_bounds = array<i64: 1, 128>}, {pipeline_mode = #tpu.pipeline_mode<synchronous>, transform_indices = @transform_4, window_bounds = array<i64: 1, 128>}, {transform_indices = @transform_5, window_bounds = array<i64: 16, 128>}]} {
    %c0 = arith.constant 0 : index
    %c0_0 = arith.constant 0 : index
    %0 = vector.load %arg1[%c0, %c0_0] : memref<16x32xbf16, #tpu.memory_space<vmem>>, vector<16x32xbf16>
    %c0_1 = arith.constant 0 : index
    %c0_2 = arith.constant 0 : index
    %1 = vector.load %arg3[%c0_1, %c0_2] : memref<32x128xbf16, #tpu.memory_space<vmem>>, vector<32x128xbf16>
    %cst = arith.constant dense<0.000000e+00> : vector<16x128xf32>
    %2 = tpu.matmul %0, %1, %cst {dimension_numbers = #tpu.dot_dimension_numbers<[1], [0], [0], [1], [0, 0, 1, 1], [], []>} : vector<16x32xbf16>, vector<32x128xbf16>, vector<16x128xf32> -> vector<16x128xf32>
    %c0_3 = arith.constant 0 : index
    %c0_4 = arith.constant 0 : index
    %3 = vector.load %arg4[%c0_3, %c0_4] : memref<1x128xf32, #tpu.memory_space<vmem>>, vector<1x128xf32>
    %4 = vector.broadcast %3 : vector<1x128xf32> to vector<16x128xf32>
    %5 = arith.mulf %2, %4 : vector<16x128xf32>
    %c0_5 = arith.constant 0 : index
    %c0_6 = arith.constant 0 : index
    %6 = vector.load %arg5[%c0_5, %c0_6] : memref<1x128xf32, #tpu.memory_space<vmem>>, vector<1x128xf32>
    %7 = vector.broadcast %6 : vector<1x128xf32> to vector<16x128xf32>
    %8 = arith.addf %5, %7 : vector<16x128xf32>
    %c0_7 = arith.constant 0 : index
    %c0_8 = arith.constant 0 : index
    %9 = vector.load %arg2[%c0_7, %c0_8] : memref<16x128xf32, #tpu.memory_space<vmem>>, vector<16x128xf32>
    %10 = arith.mulf %8, %9 : vector<16x128xf32>
    %11 = tpu.iota {dimensions = array<i32: 1>} : vector<1x128xi32>
    %c24_i32 = arith.constant 24 : i32
    %12 = vector.broadcast %c24_i32 : i32 to vector<1x128xi32>
    %13 = arith.cmpi slt, %11, %12 : vector<1x128xi32>
    %cst_9 = arith.constant -1.000000e+30 : f32
    %14 = vector.shape_cast %13 : vector<1x128xi1> to vector<1x128xi1>
    %15 = vector.broadcast %14 : vector<1x128xi1> to vector<16x128xi1>
    %16 = vector.broadcast %cst_9 : f32 to vector<16x128xf32>
    %17 = arith.select %15, %10, %16 : vector<16x128xi1>, vector<16x128xf32>
    %cst_10 = arith.constant dense<0xFF800000> : vector<16xf32>
    %18 = vector.multi_reduction <maximumf>, %17, %cst_10 [1] : vector<16x128xf32> to vector<16xf32>
    %19 = vector.shape_cast %18 : vector<16xf32> to vector<16x1xf32>
    %cst_11 = arith.constant 1.000000e+00 : f32
    %20 = vector.broadcast %cst_11 : f32 to vector<16x1xf32>
    %21 = arith.subf %19, %20 : vector<16x1xf32>
    %c0_i32 = arith.constant 0 : i32
    %22 = arith.addf %21, %19 : vector<16x1xf32>
    %cst_12 = arith.constant 5.000000e-01 : f32
    %23 = vector.broadcast %cst_12 : f32 to vector<16x1xf32>
    %24 = arith.mulf %23, %22 : vector<16x1xf32>
    %25 = vector.broadcast %24 : vector<16x1xf32> to vector<16x128xf32>
    %26 = arith.subf %17, %25 : vector<16x128xf32>
    %cst_13 = arith.constant 0.000000e+00 : f32
    %27 = vector.broadcast %cst_13 : f32 to vector<16x128xf32>
    %28 = arith.maximumf %26, %27 : vector<16x128xf32>
    %cst_14 = arith.constant dense<0.000000e+00> : vector<16xf32>
    %29 = vector.multi_reduction <add>, %28, %cst_14 [1] : vector<16x128xf32> to vector<16xf32>
    %30 = vector.shape_cast %29 : vector<16xf32> to vector<16x1xf32>
    %cst_15 = arith.constant 1.000000e+00 : f32
    %31 = vector.broadcast %cst_15 : f32 to vector<16x1xf32>
    %32 = arith.cmpf ogt, %30, %31 : vector<16x1xf32>
    %33 = arith.select %32, %24, %21 : vector<16x1xi1>, vector<16x1xf32>
    %34 = arith.select %32, %19, %24 : vector<16x1xi1>, vector<16x1xf32>
    %c1_i32 = arith.constant 1 : i32
    %35 = arith.addf %33, %34 : vector<16x1xf32>
    %cst_16 = arith.constant 5.000000e-01 : f32
    %36 = vector.broadcast %cst_16 : f32 to vector<16x1xf32>
    %37 = arith.mulf %36, %35 : vector<16x1xf32>
    %38 = vector.broadcast %37 : vector<16x1xf32> to vector<16x128xf32>
    %39 = arith.subf %17, %38 : vector<16x128xf32>
    %cst_17 = arith.constant 0.000000e+00 : f32
    %40 = vector.broadcast %cst_17 : f32 to vector<16x128xf32>
    %41 = arith.maximumf %39, %40 : vector<16x128xf32>
    %cst_18 = arith.constant dense<0.000000e+00> : vector<16xf32>
    %42 = vector.multi_reduction <add>, %41, %cst_18 [1] : vector<16x128xf32> to vector<16xf32>
    %43 = vector.shape_cast %42 : vector<16xf32> to vector<16x1xf32>
    %cst_19 = arith.constant 1.000000e+00 : f32
    %44 = vector.broadcast %cst_19 : f32 to vector<16x1xf32>
    %45 = arith.cmpf ogt, %43, %44 : vector<16x1xf32>
    %46 = arith.select %45, %37, %33 : vector<16x1xi1>, vector<16x1xf32>
    %47 = arith.select %45, %34, %37 : vector<16x1xi1>, vector<16x1xf32>
    %c2_i32 = arith.constant 2 : i32
    %48 = arith.addf %46, %47 : vector<16x1xf32>
    %cst_20 = arith.constant 5.000000e-01 : f32
    %49 = vector.broadcast %cst_20 : f32 to vector<16x1xf32>
    %50 = arith.mulf %49, %48 : vector<16x1xf32>
    %51 = vector.broadcast %50 : vector<16x1xf32> to vector<16x128xf32>
    %52 = arith.subf %17, %51 : vector<16x128xf32>
    %cst_21 = arith.constant 0.000000e+00 : f32
    %53 = vector.broadcast %cst_21 : f32 to vector<16x128xf32>
    %54 = arith.maximumf %52, %53 : vector<16x128xf32>
    %cst_22 = arith.constant dense<0.000000e+00> : vector<16xf32>
    %55 = vector.multi_reduction <add>, %54, %cst_22 [1] : vector<16x128xf32> to vector<16xf32>
    %56 = vector.shape_cast %55 : vector<16xf32> to vector<16x1xf32>
    %cst_23 = arith.constant 1.000000e+00 : f32
    %57 = vector.broadcast %cst_23 : f32 to vector<16x1xf32>
    %58 = arith.cmpf ogt, %56, %57 : vector<16x1xf32>
    %59 = arith.select %58, %50, %46 : vector<16x1xi1>, vector<16x1xf32>
    %60 = arith.select %58, %47, %50 : vector<16x1xi1>, vector<16x1xf32>
    %c3_i32 = arith.constant 3 : i32
    %61 = arith.addf %59, %60 : vector<16x1xf32>
    %cst_24 = arith.constant 5.000000e-01 : f32
    %62 = vector.broadcast %cst_24 : f32 to vector<16x1xf32>
    %63 = arith.mulf %62, %61 : vector<16x1xf32>
    %64 = vector.broadcast %63 : vector<16x1xf32> to vector<16x128xf32>
    %65 = arith.subf %17, %64 : vector<16x128xf32>
    %cst_25 = arith.constant 0.000000e+00 : f32
    %66 = vector.broadcast %cst_25 : f32 to vector<16x128xf32>
    %67 = arith.maximumf %65, %66 : vector<16x128xf32>
    %cst_26 = arith.constant dense<0.000000e+00> : vector<16xf32>
    %68 = vector.multi_reduction <add>, %67, %cst_26 [1] : vector<16x128xf32> to vector<16xf32>
    %69 = vector.shape_cast %68 : vector<16xf32> to vector<16x1xf32>
    %cst_27 = arith.constant 1.000000e+00 : f32
    %70 = vector.broadcast %cst_27 : f32 to vector<16x1xf32>
    %71 = arith.cmpf ogt, %69, %70 : vector<16x1xf32>
    %72 = arith.select %71, %63, %59 : vector<16x1xi1>, vector<16x1xf32>
    %73 = arith.select %71, %60, %63 : vector<16x1xi1>, vector<16x1xf32>
    %c4_i32 = arith.constant 4 : i32
    %74 = arith.addf %72, %73 : vector<16x1xf32>
    %cst_28 = arith.constant 5.000000e-01 : f32
    %75 = vector.broadcast %cst_28 : f32 to vector<16x1xf32>
    %76 = arith.mulf %75, %74 : vector<16x1xf32>
    %77 = vector.broadcast %76 : vector<16x1xf32> to vector<16x128xf32>
    %78 = arith.subf %17, %77 : vector<16x128xf32>
    %cst_29 = arith.constant 0.000000e+00 : f32
    %79 = vector.broadcast %cst_29 : f32 to vector<16x128xf32>
    %80 = arith.maximumf %78, %79 : vector<16x128xf32>
    %cst_30 = arith.constant dense<0.000000e+00> : vector<16xf32>
    %81 = vector.multi_reduction <add>, %80, %cst_30 [1] : vector<16x128xf32> to vector<16xf32>
    %82 = vector.shape_cast %81 : vector<16xf32> to vector<16x1xf32>
    %cst_31 = arith.constant 1.000000e+00 : f32
    %83 = vector.broadcast %cst_31 : f32 to vector<16x1xf32>
    %84 = arith.cmpf ogt, %82, %83 : vector<16x1xf32>
    %85 = arith.select %84, %76, %72 : vector<16x1xi1>, vector<16x1xf32>
    %86 = arith.select %84, %73, %76 : vector<16x1xi1>, vector<16x1xf32>
    %c5_i32 = arith.constant 5 : i32
    %87 = arith.addf %85, %86 : vector<16x1xf32>
    %cst_32 = arith.constant 5.000000e-01 : f32
    %88 = vector.broadcast %cst_32 : f32 to vector<16x1xf32>
    %89 = arith.mulf %88, %87 : vector<16x1xf32>
    %90 = vector.broadcast %89 : vector<16x1xf32> to vector<16x128xf32>
    %91 = arith.subf %17, %90 : vector<16x128xf32>
    %cst_33 = arith.constant 0.000000e+00 : f32
    %92 = vector.broadcast %cst_33 : f32 to vector<16x128xf32>
    %93 = arith.maximumf %91, %92 : vector<16x128xf32>
    %cst_34 = arith.constant dense<0.000000e+00> : vector<16xf32>
    %94 = vector.multi_reduction <add>, %93, %cst_34 [1] : vector<16x128xf32> to vector<16xf32>
    %95 = vector.shape_cast %94 : vector<16xf32> to vector<16x1xf32>
    %cst_35 = arith.constant 1.000000e+00 : f32
    %96 = vector.broadcast %cst_35 : f32 to vector<16x1xf32>
    %97 = arith.cmpf ogt, %95, %96 : vector<16x1xf32>
    %98 = arith.select %97, %89, %85 : vector<16x1xi1>, vector<16x1xf32>
    %99 = arith.select %97, %86, %89 : vector<16x1xi1>, vector<16x1xf32>
    %c6_i32 = arith.constant 6 : i32
    %100 = arith.addf %98, %99 : vector<16x1xf32>
    %cst_36 = arith.constant 5.000000e-01 : f32
    %101 = vector.broadcast %cst_36 : f32 to vector<16x1xf32>
    %102 = arith.mulf %101, %100 : vector<16x1xf32>
    %103 = vector.broadcast %102 : vector<16x1xf32> to vector<16x128xf32>
    %104 = arith.subf %17, %103 : vector<16x128xf32>
    %cst_37 = arith.constant 0.000000e+00 : f32
    %105 = vector.broadcast %cst_37 : f32 to vector<16x128xf32>
    %106 = arith.maximumf %104, %105 : vector<16x128xf32>
    %cst_38 = arith.constant dense<0.000000e+00> : vector<16xf32>
    %107 = vector.multi_reduction <add>, %106, %cst_38 [1] : vector<16x128xf32> to vector<16xf32>
    %108 = vector.shape_cast %107 : vector<16xf32> to vector<16x1xf32>
    %cst_39 = arith.constant 1.000000e+00 : f32
    %109 = vector.broadcast %cst_39 : f32 to vector<16x1xf32>
    %110 = arith.cmpf ogt, %108, %109 : vector<16x1xf32>
    %111 = arith.select %110, %102, %98 : vector<16x1xi1>, vector<16x1xf32>
    %112 = arith.select %110, %99, %102 : vector<16x1xi1>, vector<16x1xf32>
    %c7_i32 = arith.constant 7 : i32
    %113 = arith.addf %111, %112 : vector<16x1xf32>
    %cst_40 = arith.constant 5.000000e-01 : f32
    %114 = vector.broadcast %cst_40 : f32 to vector<16x1xf32>
    %115 = arith.mulf %114, %113 : vector<16x1xf32>
    %116 = vector.broadcast %115 : vector<16x1xf32> to vector<16x128xf32>
    %117 = arith.subf %17, %116 : vector<16x128xf32>
    %cst_41 = arith.constant 0.000000e+00 : f32
    %118 = vector.broadcast %cst_41 : f32 to vector<16x128xf32>
    %119 = arith.maximumf %117, %118 : vector<16x128xf32>
    %cst_42 = arith.constant dense<0.000000e+00> : vector<16xf32>
    %120 = vector.multi_reduction <add>, %119, %cst_42 [1] : vector<16x128xf32> to vector<16xf32>
    %121 = vector.shape_cast %120 : vector<16xf32> to vector<16x1xf32>
    %cst_43 = arith.constant 1.000000e+00 : f32
    %122 = vector.broadcast %cst_43 : f32 to vector<16x1xf32>
    %123 = arith.cmpf ogt, %121, %122 : vector<16x1xf32>
    %124 = arith.select %123, %115, %111 : vector<16x1xi1>, vector<16x1xf32>
    %125 = arith.select %123, %112, %115 : vector<16x1xi1>, vector<16x1xf32>
    %c8_i32 = arith.constant 8 : i32
    %126 = arith.addf %124, %125 : vector<16x1xf32>
    %cst_44 = arith.constant 5.000000e-01 : f32
    %127 = vector.broadcast %cst_44 : f32 to vector<16x1xf32>
    %128 = arith.mulf %127, %126 : vector<16x1xf32>
    %129 = vector.broadcast %128 : vector<16x1xf32> to vector<16x128xf32>
    %130 = arith.subf %17, %129 : vector<16x128xf32>
    %cst_45 = arith.constant 0.000000e+00 : f32
    %131 = vector.broadcast %cst_45 : f32 to vector<16x128xf32>
    %132 = arith.maximumf %130, %131 : vector<16x128xf32>
    %cst_46 = arith.constant dense<0.000000e+00> : vector<16xf32>
    %133 = vector.multi_reduction <add>, %132, %cst_46 [1] : vector<16x128xf32> to vector<16xf32>
    %134 = vector.shape_cast %133 : vector<16xf32> to vector<16x1xf32>
    %cst_47 = arith.constant 1.000000e+00 : f32
    %135 = vector.broadcast %cst_47 : f32 to vector<16x1xf32>
    %136 = arith.cmpf ogt, %134, %135 : vector<16x1xf32>
    %137 = arith.select %136, %128, %124 : vector<16x1xi1>, vector<16x1xf32>
    %138 = arith.select %136, %125, %128 : vector<16x1xi1>, vector<16x1xf32>
    %c9_i32 = arith.constant 9 : i32
    %139 = arith.addf %137, %138 : vector<16x1xf32>
    %cst_48 = arith.constant 5.000000e-01 : f32
    %140 = vector.broadcast %cst_48 : f32 to vector<16x1xf32>
    %141 = arith.mulf %140, %139 : vector<16x1xf32>
    %142 = vector.broadcast %141 : vector<16x1xf32> to vector<16x128xf32>
    %143 = arith.subf %17, %142 : vector<16x128xf32>
    %cst_49 = arith.constant 0.000000e+00 : f32
    %144 = vector.broadcast %cst_49 : f32 to vector<16x128xf32>
    %145 = arith.maximumf %143, %144 : vector<16x128xf32>
    %cst_50 = arith.constant dense<0.000000e+00> : vector<16xf32>
    %146 = vector.multi_reduction <add>, %145, %cst_50 [1] : vector<16x128xf32> to vector<16xf32>
    %147 = vector.shape_cast %146 : vector<16xf32> to vector<16x1xf32>
    %cst_51 = arith.constant 1.000000e+00 : f32
    %148 = vector.broadcast %cst_51 : f32 to vector<16x1xf32>
    %149 = arith.cmpf ogt, %147, %148 : vector<16x1xf32>
    %150 = arith.select %149, %141, %137 : vector<16x1xi1>, vector<16x1xf32>
    %151 = arith.select %149, %138, %141 : vector<16x1xi1>, vector<16x1xf32>
    %c10_i32 = arith.constant 10 : i32
    %152 = arith.addf %150, %151 : vector<16x1xf32>
    %cst_52 = arith.constant 5.000000e-01 : f32
    %153 = vector.broadcast %cst_52 : f32 to vector<16x1xf32>
    %154 = arith.mulf %153, %152 : vector<16x1xf32>
    %155 = vector.broadcast %154 : vector<16x1xf32> to vector<16x128xf32>
    %156 = arith.subf %17, %155 : vector<16x128xf32>
    %cst_53 = arith.constant 0.000000e+00 : f32
    %157 = vector.broadcast %cst_53 : f32 to vector<16x128xf32>
    %158 = arith.maximumf %156, %157 : vector<16x128xf32>
    %cst_54 = arith.constant dense<0.000000e+00> : vector<16xf32>
    %159 = vector.multi_reduction <add>, %158, %cst_54 [1] : vector<16x128xf32> to vector<16xf32>
    %160 = vector.shape_cast %159 : vector<16xf32> to vector<16x1xf32>
    %cst_55 = arith.constant 1.000000e+00 : f32
    %161 = vector.broadcast %cst_55 : f32 to vector<16x1xf32>
    %162 = arith.cmpf ogt, %160, %161 : vector<16x1xf32>
    %163 = arith.select %162, %154, %150 : vector<16x1xi1>, vector<16x1xf32>
    %164 = arith.select %162, %151, %154 : vector<16x1xi1>, vector<16x1xf32>
    %c11_i32 = arith.constant 11 : i32
    %165 = arith.addf %163, %164 : vector<16x1xf32>
    %cst_56 = arith.constant 5.000000e-01 : f32
    %166 = vector.broadcast %cst_56 : f32 to vector<16x1xf32>
    %167 = arith.mulf %166, %165 : vector<16x1xf32>
    %168 = vector.broadcast %167 : vector<16x1xf32> to vector<16x128xf32>
    %169 = arith.subf %17, %168 : vector<16x128xf32>
    %cst_57 = arith.constant 0.000000e+00 : f32
    %170 = vector.broadcast %cst_57 : f32 to vector<16x128xf32>
    %171 = arith.maximumf %169, %170 : vector<16x128xf32>
    %cst_58 = arith.constant dense<0.000000e+00> : vector<16xf32>
    %172 = vector.multi_reduction <add>, %171, %cst_58 [1] : vector<16x128xf32> to vector<16xf32>
    %173 = vector.shape_cast %172 : vector<16xf32> to vector<16x1xf32>
    %cst_59 = arith.constant 1.000000e+00 : f32
    %174 = vector.broadcast %cst_59 : f32 to vector<16x1xf32>
    %175 = arith.cmpf ogt, %173, %174 : vector<16x1xf32>
    %176 = arith.select %175, %167, %163 : vector<16x1xi1>, vector<16x1xf32>
    %177 = arith.select %175, %164, %167 : vector<16x1xi1>, vector<16x1xf32>
    %c12_i32 = arith.constant 12 : i32
    %178 = arith.addf %176, %177 : vector<16x1xf32>
    %cst_60 = arith.constant 5.000000e-01 : f32
    %179 = vector.broadcast %cst_60 : f32 to vector<16x1xf32>
    %180 = arith.mulf %179, %178 : vector<16x1xf32>
    %181 = vector.broadcast %180 : vector<16x1xf32> to vector<16x128xf32>
    %182 = arith.subf %17, %181 : vector<16x128xf32>
    %cst_61 = arith.constant 0.000000e+00 : f32
    %183 = vector.broadcast %cst_61 : f32 to vector<16x128xf32>
    %184 = arith.maximumf %182, %183 : vector<16x128xf32>
    %cst_62 = arith.constant dense<0.000000e+00> : vector<16xf32>
    %185 = vector.multi_reduction <add>, %184, %cst_62 [1] : vector<16x128xf32> to vector<16xf32>
    %186 = vector.shape_cast %185 : vector<16xf32> to vector<16x1xf32>
    %cst_63 = arith.constant 1.000000e+00 : f32
    %187 = vector.broadcast %cst_63 : f32 to vector<16x1xf32>
    %188 = arith.cmpf ogt, %186, %187 : vector<16x1xf32>
    %189 = arith.select %188, %180, %176 : vector<16x1xi1>, vector<16x1xf32>
    %190 = arith.select %188, %177, %180 : vector<16x1xi1>, vector<16x1xf32>
    %c13_i32 = arith.constant 13 : i32
    %191 = arith.addf %189, %190 : vector<16x1xf32>
    %cst_64 = arith.constant 5.000000e-01 : f32
    %192 = vector.broadcast %cst_64 : f32 to vector<16x1xf32>
    %193 = arith.mulf %192, %191 : vector<16x1xf32>
    %194 = vector.broadcast %193 : vector<16x1xf32> to vector<16x128xf32>
    %195 = arith.subf %17, %194 : vector<16x128xf32>
    %cst_65 = arith.constant 0.000000e+00 : f32
    %196 = vector.broadcast %cst_65 : f32 to vector<16x128xf32>
    %197 = arith.maximumf %195, %196 : vector<16x128xf32>
    %cst_66 = arith.constant dense<0.000000e+00> : vector<16xf32>
    %198 = vector.multi_reduction <add>, %197, %cst_66 [1] : vector<16x128xf32> to vector<16xf32>
    %199 = vector.shape_cast %198 : vector<16xf32> to vector<16x1xf32>
    %cst_67 = arith.constant 1.000000e+00 : f32
    %200 = vector.broadcast %cst_67 : f32 to vector<16x1xf32>
    %201 = arith.cmpf ogt, %199, %200 : vector<16x1xf32>
    %202 = arith.select %201, %193, %189 : vector<16x1xi1>, vector<16x1xf32>
    %203 = arith.select %201, %190, %193 : vector<16x1xi1>, vector<16x1xf32>
    %c14_i32 = arith.constant 14 : i32
    %204 = arith.addf %202, %203 : vector<16x1xf32>
    %cst_68 = arith.constant 5.000000e-01 : f32
    %205 = vector.broadcast %cst_68 : f32 to vector<16x1xf32>
    %206 = arith.mulf %205, %204 : vector<16x1xf32>
    %207 = vector.broadcast %206 : vector<16x1xf32> to vector<16x128xf32>
    %208 = arith.subf %17, %207 : vector<16x128xf32>
    %cst_69 = arith.constant 0.000000e+00 : f32
    %209 = vector.broadcast %cst_69 : f32 to vector<16x128xf32>
    %210 = arith.maximumf %208, %209 : vector<16x128xf32>
    %cst_70 = arith.constant dense<0.000000e+00> : vector<16xf32>
    %211 = vector.multi_reduction <add>, %210, %cst_70 [1] : vector<16x128xf32> to vector<16xf32>
    %212 = vector.shape_cast %211 : vector<16xf32> to vector<16x1xf32>
    %cst_71 = arith.constant 1.000000e+00 : f32
    %213 = vector.broadcast %cst_71 : f32 to vector<16x1xf32>
    %214 = arith.cmpf ogt, %212, %213 : vector<16x1xf32>
    %215 = arith.select %214, %206, %202 : vector<16x1xi1>, vector<16x1xf32>
    %216 = arith.select %214, %203, %206 : vector<16x1xi1>, vector<16x1xf32>
    %c15_i32 = arith.constant 15 : i32
    %217 = arith.addf %215, %216 : vector<16x1xf32>
    %cst_72 = arith.constant 5.000000e-01 : f32
    %218 = vector.broadcast %cst_72 : f32 to vector<16x1xf32>
    %219 = arith.mulf %218, %217 : vector<16x1xf32>
    %220 = vector.broadcast %219 : vector<16x1xf32> to vector<16x128xf32>
    %221 = arith.subf %17, %220 : vector<16x128xf32>
    %cst_73 = arith.constant 0.000000e+00 : f32
    %222 = vector.broadcast %cst_73 : f32 to vector<16x128xf32>
    %223 = arith.maximumf %221, %222 : vector<16x128xf32>
    %cst_74 = arith.constant dense<0.000000e+00> : vector<16xf32>
    %224 = vector.multi_reduction <add>, %223, %cst_74 [1] : vector<16x128xf32> to vector<16xf32>
    %225 = vector.shape_cast %224 : vector<16xf32> to vector<16x1xf32>
    %cst_75 = arith.constant 1.000000e+00 : f32
    %226 = vector.broadcast %cst_75 : f32 to vector<16x1xf32>
    %227 = arith.cmpf ogt, %225, %226 : vector<16x1xf32>
    %228 = arith.select %227, %219, %215 : vector<16x1xi1>, vector<16x1xf32>
    %229 = arith.select %227, %216, %219 : vector<16x1xi1>, vector<16x1xf32>
    %c16_i32 = arith.constant 16 : i32
    %230 = arith.addf %228, %229 : vector<16x1xf32>
    %cst_76 = arith.constant 5.000000e-01 : f32
    %231 = vector.broadcast %cst_76 : f32 to vector<16x1xf32>
    %232 = arith.mulf %231, %230 : vector<16x1xf32>
    %233 = vector.broadcast %232 : vector<16x1xf32> to vector<16x128xf32>
    %234 = arith.subf %17, %233 : vector<16x128xf32>
    %cst_77 = arith.constant 0.000000e+00 : f32
    %235 = vector.broadcast %cst_77 : f32 to vector<16x128xf32>
    %236 = arith.maximumf %234, %235 : vector<16x128xf32>
    %cst_78 = arith.constant dense<0.000000e+00> : vector<16xf32>
    %237 = vector.multi_reduction <add>, %236, %cst_78 [1] : vector<16x128xf32> to vector<16xf32>
    %238 = vector.shape_cast %237 : vector<16xf32> to vector<16x1xf32>
    %cst_79 = arith.constant 1.000000e+00 : f32
    %239 = vector.broadcast %cst_79 : f32 to vector<16x1xf32>
    %240 = arith.cmpf ogt, %238, %239 : vector<16x1xf32>
    %241 = arith.select %240, %232, %228 : vector<16x1xi1>, vector<16x1xf32>
    %242 = arith.select %240, %229, %232 : vector<16x1xi1>, vector<16x1xf32>
    %c17_i32 = arith.constant 17 : i32
    %243 = arith.addf %241, %242 : vector<16x1xf32>
    %cst_80 = arith.constant 5.000000e-01 : f32
    %244 = vector.broadcast %cst_80 : f32 to vector<16x1xf32>
    %245 = arith.mulf %244, %243 : vector<16x1xf32>
    %246 = vector.broadcast %245 : vector<16x1xf32> to vector<16x128xf32>
    %247 = arith.subf %17, %246 : vector<16x128xf32>
    %cst_81 = arith.constant 0.000000e+00 : f32
    %248 = vector.broadcast %cst_81 : f32 to vector<16x128xf32>
    %249 = arith.maximumf %247, %248 : vector<16x128xf32>
    %cst_82 = arith.constant dense<0.000000e+00> : vector<16xf32>
    %250 = vector.multi_reduction <add>, %249, %cst_82 [1] : vector<16x128xf32> to vector<16xf32>
    %251 = vector.shape_cast %250 : vector<16xf32> to vector<16x1xf32>
    %cst_83 = arith.constant 1.000000e+00 : f32
    %252 = vector.broadcast %cst_83 : f32 to vector<16x1xf32>
    %253 = arith.cmpf ogt, %251, %252 : vector<16x1xf32>
    %254 = arith.select %253, %245, %241 : vector<16x1xi1>, vector<16x1xf32>
    %255 = arith.select %253, %242, %245 : vector<16x1xi1>, vector<16x1xf32>
    %c18_i32 = arith.constant 18 : i32
    %256 = arith.addf %254, %255 : vector<16x1xf32>
    %cst_84 = arith.constant 5.000000e-01 : f32
    %257 = vector.broadcast %cst_84 : f32 to vector<16x1xf32>
    %258 = arith.mulf %257, %256 : vector<16x1xf32>
    %259 = vector.broadcast %258 : vector<16x1xf32> to vector<16x128xf32>
    %260 = arith.subf %17, %259 : vector<16x128xf32>
    %cst_85 = arith.constant 0.000000e+00 : f32
    %261 = vector.broadcast %cst_85 : f32 to vector<16x128xf32>
    %262 = arith.maximumf %260, %261 : vector<16x128xf32>
    %cst_86 = arith.constant dense<0.000000e+00> : vector<16xf32>
    %263 = vector.multi_reduction <add>, %262, %cst_86 [1] : vector<16x128xf32> to vector<16xf32>
    %264 = vector.shape_cast %263 : vector<16xf32> to vector<16x1xf32>
    %cst_87 = arith.constant 1.000000e+00 : f32
    %265 = vector.broadcast %cst_87 : f32 to vector<16x1xf32>
    %266 = arith.cmpf ogt, %264, %265 : vector<16x1xf32>
    %267 = arith.select %266, %258, %254 : vector<16x1xi1>, vector<16x1xf32>
    %268 = arith.select %266, %255, %258 : vector<16x1xi1>, vector<16x1xf32>
    %c19_i32 = arith.constant 19 : i32
    %269 = arith.addf %267, %268 : vector<16x1xf32>
    %cst_88 = arith.constant 5.000000e-01 : f32
    %270 = vector.broadcast %cst_88 : f32 to vector<16x1xf32>
    %271 = arith.mulf %270, %269 : vector<16x1xf32>
    %272 = vector.broadcast %271 : vector<16x1xf32> to vector<16x128xf32>
    %273 = arith.subf %17, %272 : vector<16x128xf32>
    %cst_89 = arith.constant 0.000000e+00 : f32
    %274 = vector.broadcast %cst_89 : f32 to vector<16x128xf32>
    %275 = arith.maximumf %273, %274 : vector<16x128xf32>
    %cst_90 = arith.constant dense<0.000000e+00> : vector<16xf32>
    %276 = vector.multi_reduction <add>, %275, %cst_90 [1] : vector<16x128xf32> to vector<16xf32>
    %277 = vector.shape_cast %276 : vector<16xf32> to vector<16x1xf32>
    %cst_91 = arith.constant 1.000000e+00 : f32
    %278 = vector.broadcast %cst_91 : f32 to vector<16x1xf32>
    %279 = arith.cmpf ogt, %277, %278 : vector<16x1xf32>
    %280 = arith.select %279, %271, %267 : vector<16x1xi1>, vector<16x1xf32>
    %281 = arith.select %279, %268, %271 : vector<16x1xi1>, vector<16x1xf32>
    %c20_i32 = arith.constant 20 : i32
    %282 = arith.addf %280, %281 : vector<16x1xf32>
    %cst_92 = arith.constant 5.000000e-01 : f32
    %283 = vector.broadcast %cst_92 : f32 to vector<16x1xf32>
    %284 = arith.mulf %283, %282 : vector<16x1xf32>
    %285 = vector.broadcast %284 : vector<16x1xf32> to vector<16x128xf32>
    %286 = arith.subf %17, %285 : vector<16x128xf32>
    %cst_93 = arith.constant 0.000000e+00 : f32
    %287 = vector.broadcast %cst_93 : f32 to vector<16x128xf32>
    %288 = arith.maximumf %286, %287 : vector<16x128xf32>
    %cst_94 = arith.constant dense<0.000000e+00> : vector<16xf32>
    %289 = vector.multi_reduction <add>, %288, %cst_94 [1] : vector<16x128xf32> to vector<16xf32>
    %290 = vector.shape_cast %289 : vector<16xf32> to vector<16x1xf32>
    %cst_95 = arith.constant 1.000000e+00 : f32
    %291 = vector.broadcast %cst_95 : f32 to vector<16x1xf32>
    %292 = arith.cmpf ogt, %290, %291 : vector<16x1xf32>
    %293 = arith.select %292, %284, %280 : vector<16x1xi1>, vector<16x1xf32>
    %294 = arith.select %292, %281, %284 : vector<16x1xi1>, vector<16x1xf32>
    %c21_i32 = arith.constant 21 : i32
    %295 = arith.addf %293, %294 : vector<16x1xf32>
    %cst_96 = arith.constant 5.000000e-01 : f32
    %296 = vector.broadcast %cst_96 : f32 to vector<16x1xf32>
    %297 = arith.mulf %296, %295 : vector<16x1xf32>
    %298 = vector.broadcast %297 : vector<16x1xf32> to vector<16x128xf32>
    %299 = arith.subf %17, %298 : vector<16x128xf32>
    %cst_97 = arith.constant 0.000000e+00 : f32
    %300 = vector.broadcast %cst_97 : f32 to vector<16x128xf32>
    %301 = arith.maximumf %299, %300 : vector<16x128xf32>
    %cst_98 = arith.constant dense<0.000000e+00> : vector<16xf32>
    %302 = vector.multi_reduction <add>, %301, %cst_98 [1] : vector<16x128xf32> to vector<16xf32>
    %303 = vector.shape_cast %302 : vector<16xf32> to vector<16x1xf32>
    %cst_99 = arith.constant 1.000000e+00 : f32
    %304 = vector.broadcast %cst_99 : f32 to vector<16x1xf32>
    %305 = arith.cmpf ogt, %303, %304 : vector<16x1xf32>
    %306 = arith.select %305, %297, %293 : vector<16x1xi1>, vector<16x1xf32>
    %307 = arith.select %305, %294, %297 : vector<16x1xi1>, vector<16x1xf32>
    %c22_i32 = arith.constant 22 : i32
    %308 = arith.addf %306, %307 : vector<16x1xf32>
    %cst_100 = arith.constant 5.000000e-01 : f32
    %309 = vector.broadcast %cst_100 : f32 to vector<16x1xf32>
    %310 = arith.mulf %309, %308 : vector<16x1xf32>
    %311 = vector.broadcast %310 : vector<16x1xf32> to vector<16x128xf32>
    %312 = arith.subf %17, %311 : vector<16x128xf32>
    %cst_101 = arith.constant 0.000000e+00 : f32
    %313 = vector.broadcast %cst_101 : f32 to vector<16x128xf32>
    %314 = arith.maximumf %312, %313 : vector<16x128xf32>
    %cst_102 = arith.constant dense<0.000000e+00> : vector<16xf32>
    %315 = vector.multi_reduction <add>, %314, %cst_102 [1] : vector<16x128xf32> to vector<16xf32>
    %316 = vector.shape_cast %315 : vector<16xf32> to vector<16x1xf32>
    %cst_103 = arith.constant 1.000000e+00 : f32
    %317 = vector.broadcast %cst_103 : f32 to vector<16x1xf32>
    %318 = arith.cmpf ogt, %316, %317 : vector<16x1xf32>
    %319 = arith.select %318, %310, %306 : vector<16x1xi1>, vector<16x1xf32>
    %320 = arith.select %318, %307, %310 : vector<16x1xi1>, vector<16x1xf32>
    %c23_i32 = arith.constant 23 : i32
    %321 = arith.addf %319, %320 : vector<16x1xf32>
    %cst_104 = arith.constant 5.000000e-01 : f32
    %322 = vector.broadcast %cst_104 : f32 to vector<16x1xf32>
    %323 = arith.mulf %322, %321 : vector<16x1xf32>
    %324 = vector.broadcast %323 : vector<16x1xf32> to vector<16x128xf32>
    %325 = arith.subf %17, %324 : vector<16x128xf32>
    %cst_105 = arith.constant 0.000000e+00 : f32
    %326 = vector.broadcast %cst_105 : f32 to vector<16x128xf32>
    %327 = arith.maximumf %325, %326 : vector<16x128xf32>
    %cst_106 = arith.constant dense<0.000000e+00> : vector<16xf32>
    %328 = vector.multi_reduction <add>, %327, %cst_106 [1] : vector<16x128xf32> to vector<16xf32>
    %329 = vector.shape_cast %328 : vector<16xf32> to vector<16x1xf32>
    %cst_107 = arith.constant 1.000000e+00 : f32
    %330 = vector.broadcast %cst_107 : f32 to vector<16x1xf32>
    %331 = arith.cmpf ogt, %329, %330 : vector<16x1xf32>
    %332 = arith.select %331, %323, %319 : vector<16x1xi1>, vector<16x1xf32>
    %333 = arith.select %331, %320, %323 : vector<16x1xi1>, vector<16x1xf32>
    %c24_i32_108 = arith.constant 24 : i32
    %334 = arith.addf %332, %333 : vector<16x1xf32>
    %cst_109 = arith.constant 5.000000e-01 : f32
    %335 = vector.broadcast %cst_109 : f32 to vector<16x1xf32>
    %336 = arith.mulf %335, %334 : vector<16x1xf32>
    %337 = vector.broadcast %336 : vector<16x1xf32> to vector<16x128xf32>
    %338 = arith.subf %17, %337 : vector<16x128xf32>
    %cst_110 = arith.constant 0.000000e+00 : f32
    %339 = vector.broadcast %cst_110 : f32 to vector<16x128xf32>
    %340 = arith.maximumf %338, %339 : vector<16x128xf32>
    %cst_111 = arith.constant dense<0.000000e+00> : vector<16xf32>
    %341 = vector.multi_reduction <add>, %340, %cst_111 [1] : vector<16x128xf32> to vector<16xf32>
    %342 = vector.shape_cast %341 : vector<16xf32> to vector<16x1xf32>
    %cst_112 = arith.constant 1.000000e+00 : f32
    %343 = vector.broadcast %cst_112 : f32 to vector<16x1xf32>
    %344 = arith.cmpf ogt, %342, %343 : vector<16x1xf32>
    %345 = arith.select %344, %336, %332 : vector<16x1xi1>, vector<16x1xf32>
    %346 = arith.select %344, %333, %336 : vector<16x1xi1>, vector<16x1xf32>
    %c25_i32 = arith.constant 25 : i32
    %347 = arith.addf %345, %346 : vector<16x1xf32>
    %cst_113 = arith.constant 5.000000e-01 : f32
    %348 = vector.broadcast %cst_113 : f32 to vector<16x1xf32>
    %349 = arith.mulf %348, %347 : vector<16x1xf32>
    %350 = vector.broadcast %349 : vector<16x1xf32> to vector<16x128xf32>
    %351 = arith.subf %17, %350 : vector<16x128xf32>
    %cst_114 = arith.constant 0.000000e+00 : f32
    %352 = vector.broadcast %cst_114 : f32 to vector<16x128xf32>
    %353 = arith.maximumf %351, %352 : vector<16x128xf32>
    %cst_115 = arith.constant dense<0.000000e+00> : vector<16xf32>
    %354 = vector.multi_reduction <add>, %353, %cst_115 [1] : vector<16x128xf32> to vector<16xf32>
    %355 = vector.shape_cast %354 : vector<16xf32> to vector<16x1xf32>
    %cst_116 = arith.constant 1.000000e+00 : f32
    %356 = vector.broadcast %cst_116 : f32 to vector<16x1xf32>
    %357 = arith.cmpf ogt, %355, %356 : vector<16x1xf32>
    %358 = arith.select %357, %349, %345 : vector<16x1xi1>, vector<16x1xf32>
    %359 = arith.select %357, %346, %349 : vector<16x1xi1>, vector<16x1xf32>
    %c26_i32 = arith.constant 26 : i32
    %360 = arith.addf %358, %359 : vector<16x1xf32>
    %cst_117 = arith.constant 5.000000e-01 : f32
    %361 = vector.broadcast %cst_117 : f32 to vector<16x1xf32>
    %362 = arith.mulf %361, %360 : vector<16x1xf32>
    %363 = vector.broadcast %362 : vector<16x1xf32> to vector<16x128xf32>
    %364 = arith.subf %17, %363 : vector<16x128xf32>
    %cst_118 = arith.constant 0.000000e+00 : f32
    %365 = vector.broadcast %cst_118 : f32 to vector<16x128xf32>
    %366 = arith.maximumf %364, %365 : vector<16x128xf32>
    %cst_119 = arith.constant dense<0.000000e+00> : vector<16xf32>
    %367 = vector.multi_reduction <add>, %366, %cst_119 [1] : vector<16x128xf32> to vector<16xf32>
    %368 = vector.shape_cast %367 : vector<16xf32> to vector<16x1xf32>
    %cst_120 = arith.constant 1.000000e+00 : f32
    %369 = vector.broadcast %cst_120 : f32 to vector<16x1xf32>
    %370 = arith.cmpf ogt, %368, %369 : vector<16x1xf32>
    %371 = arith.select %370, %362, %358 : vector<16x1xi1>, vector<16x1xf32>
    %372 = arith.select %370, %359, %362 : vector<16x1xi1>, vector<16x1xf32>
    %c27_i32 = arith.constant 27 : i32
    %373 = arith.addf %371, %372 : vector<16x1xf32>
    %cst_121 = arith.constant 5.000000e-01 : f32
    %374 = vector.broadcast %cst_121 : f32 to vector<16x1xf32>
    %375 = arith.mulf %374, %373 : vector<16x1xf32>
    %376 = vector.broadcast %375 : vector<16x1xf32> to vector<16x128xf32>
    %377 = arith.subf %17, %376 : vector<16x128xf32>
    %cst_122 = arith.constant 0.000000e+00 : f32
    %378 = vector.broadcast %cst_122 : f32 to vector<16x128xf32>
    %379 = arith.maximumf %377, %378 : vector<16x128xf32>
    %cst_123 = arith.constant dense<0.000000e+00> : vector<16xf32>
    %380 = vector.multi_reduction <add>, %379, %cst_123 [1] : vector<16x128xf32> to vector<16xf32>
    %381 = vector.shape_cast %380 : vector<16xf32> to vector<16x1xf32>
    %cst_124 = arith.constant 1.000000e+00 : f32
    %382 = vector.broadcast %cst_124 : f32 to vector<16x1xf32>
    %383 = arith.cmpf ogt, %381, %382 : vector<16x1xf32>
    %384 = arith.select %383, %375, %371 : vector<16x1xi1>, vector<16x1xf32>
    %385 = arith.select %383, %372, %375 : vector<16x1xi1>, vector<16x1xf32>
    %c28_i32 = arith.constant 28 : i32
    %386 = arith.addf %384, %385 : vector<16x1xf32>
    %cst_125 = arith.constant 5.000000e-01 : f32
    %387 = vector.broadcast %cst_125 : f32 to vector<16x1xf32>
    %388 = arith.mulf %387, %386 : vector<16x1xf32>
    %389 = vector.broadcast %388 : vector<16x1xf32> to vector<16x128xf32>
    %390 = arith.subf %17, %389 : vector<16x128xf32>
    %cst_126 = arith.constant 0.000000e+00 : f32
    %391 = vector.broadcast %cst_126 : f32 to vector<16x128xf32>
    %392 = arith.maximumf %390, %391 : vector<16x128xf32>
    %cst_127 = arith.constant dense<0.000000e+00> : vector<16xf32>
    %393 = vector.multi_reduction <add>, %392, %cst_127 [1] : vector<16x128xf32> to vector<16xf32>
    %394 = vector.shape_cast %393 : vector<16xf32> to vector<16x1xf32>
    %cst_128 = arith.constant 1.000000e+00 : f32
    %395 = vector.broadcast %cst_128 : f32 to vector<16x1xf32>
    %396 = arith.cmpf ogt, %394, %395 : vector<16x1xf32>
    %397 = arith.select %396, %388, %384 : vector<16x1xi1>, vector<16x1xf32>
    %398 = arith.select %396, %385, %388 : vector<16x1xi1>, vector<16x1xf32>
    %c29_i32 = arith.constant 29 : i32
    %399 = arith.addf %397, %398 : vector<16x1xf32>
    %cst_129 = arith.constant 5.000000e-01 : f32
    %400 = vector.broadcast %cst_129 : f32 to vector<16x1xf32>
    %401 = arith.mulf %400, %399 : vector<16x1xf32>
    %402 = vector.broadcast %401 : vector<16x1xf32> to vector<16x128xf32>
    %403 = arith.subf %17, %402 : vector<16x128xf32>
    %cst_130 = arith.constant 0.000000e+00 : f32
    %404 = vector.broadcast %cst_130 : f32 to vector<16x128xf32>
    %405 = arith.maximumf %403, %404 : vector<16x128xf32>
    %cst_131 = arith.constant dense<0.000000e+00> : vector<16xf32>
    %406 = vector.multi_reduction <add>, %405, %cst_131 [1] : vector<16x128xf32> to vector<16xf32>
    %407 = vector.shape_cast %406 : vector<16xf32> to vector<16x1xf32>
    %cst_132 = arith.constant 1.000000e+00 : f32
    %408 = vector.broadcast %cst_132 : f32 to vector<16x1xf32>
    %409 = arith.cmpf ogt, %407, %408 : vector<16x1xf32>
    %410 = arith.select %409, %401, %397 : vector<16x1xi1>, vector<16x1xf32>
    %411 = arith.select %409, %398, %401 : vector<16x1xi1>, vector<16x1xf32>
    %412 = vector.broadcast %410 : vector<16x1xf32> to vector<16x128xf32>
    %413 = arith.cmpf ogt, %17, %412 : vector<16x128xf32>
    %414 = arith.extui %413 : vector<16x128xi1> to vector<16x128xi32>
    %415 = arith.sitofp %414 : vector<16x128xi32> to vector<16x128xf32>
    %cst_133 = arith.constant dense<0.000000e+00> : vector<16xf32>
    %416 = vector.multi_reduction <add>, %415, %cst_133 [1] : vector<16x128xf32> to vector<16xf32>
    %417 = vector.shape_cast %416 : vector<16xf32> to vector<16x1xf32>
    %418 = arith.mulf %415, %17 : vector<16x128xf32>
    %cst_134 = arith.constant dense<0.000000e+00> : vector<16xf32>
    %419 = vector.multi_reduction <add>, %418, %cst_134 [1] : vector<16x128xf32> to vector<16xf32>
    %420 = vector.shape_cast %419 : vector<16xf32> to vector<16x1xf32>
    %cst_135 = arith.constant 1.000000e+00 : f32
    %421 = vector.broadcast %cst_135 : f32 to vector<16x1xf32>
    %422 = arith.subf %420, %421 : vector<16x1xf32>
    %423 = arith.divf %422, %417 : vector<16x1xf32>
    %424 = vector.broadcast %423 : vector<16x1xf32> to vector<16x128xf32>
    %425 = arith.subf %17, %424 : vector<16x128xf32>
    %cst_136 = arith.constant 0.000000e+00 : f32
    %426 = vector.broadcast %cst_136 : f32 to vector<16x128xf32>
    %427 = arith.maximumf %425, %426 : vector<16x128xf32>
    %c0_137 = arith.constant 0 : index
    %c0_138 = arith.constant 0 : index
    %428 = vector.load %arg6[%c0_137, %c0_138] : memref<16x128xf32, #tpu.memory_space<vmem>>, vector<16x128xf32>
    tpu.vector_store %arg6[%c0_137, %c0_138], %427 {strides = array<i32>} : memref<16x128xf32, #tpu.memory_space<vmem>>, vector<16x128xf32>,
    return
  }
  func.func @transform_0(%arg0: i32) -> (i32, i32) {
    %c0_i32 = arith.constant 0 : i32
    %c0_i32_0 = arith.constant 0 : i32
    return %arg0, %c0_i32 : i32, i32
  }
  func.func @transform_1(%arg0: i32) -> (i32, i32) {
    %c0_i32 = arith.constant 0 : i32
    %c0_i32_0 = arith.constant 0 : i32
    return %arg0, %c0_i32 : i32, i32
  }
  func.func @transform_2(%arg0: i32) -> (i32, i32) {
    %c0_i32 = arith.constant 0 : i32
    %c0_i32_0 = arith.constant 0 : i32
    %c0_i32_1 = arith.constant 0 : i32
    return %c0_i32, %c0_i32_0 : i32, i32
  }
  func.func @transform_3(%arg0: i32) -> (i32, i32) {
    %c0_i32 = arith.constant 0 : i32
    %c0_i32_0 = arith.constant 0 : i32
    %c0_i32_1 = arith.constant 0 : i32
    return %c0_i32, %c0_i32_0 : i32, i32
  }
  func.func @transform_4(%arg0: i32) -> (i32, i32) {
    %c0_i32 = arith.constant 0 : i32
    %c0_i32_0 = arith.constant 0 : i32
    %c0_i32_1 = arith.constant 0 : i32
    return %c0_i32, %c0_i32_0 : i32, i32
  }
  func.func @transform_5(%arg0: i32) -> (i32, i32) {
    %c0_i32 = arith.constant 0 : i32
    %c0_i32_0 = arith.constant 0 : i32
    return %arg0, %c0_i32 : i32, i32
  }
}

</mosaic_0001>

<llo_original>
// kernel: tpu_custom_call.1
$region0: #{tpu_custom_call.1}
  #allocation0 [shape = 'u32[]', space=smem, size = 0x4, offset = 0x4, fixed_abs, tag = 'smem constant byte address 0x4 - core index']
  #allocation1 [shape = 'u32[144,128]{1,0:T(1,128)}', space=vmem, size = 0x12000, scoped, tag = 'internal scratch']
  %s0 = inlined_call_operand.hbm [shape: bf16[32,32], index: 0, kind: input, shape index: {}]
  %s1 = inlined_call_operand.hbm [shape: f32[32,128], index: 1, kind: input, shape index: {}]
  %s2 = inlined_call_operand.hbm [shape: bf16[32,128], index: 2, kind: input, shape index: {}]
  %s3 = inlined_call_operand.vmem [shape: f32[1,128], index: 3, kind: input, shape index: {}]
  %s4 = inlined_call_operand.vmem [shape: f32[1,128], index: 4, kind: input, shape index: {}]
  %s5 = inlined_call_operand.hbm [shape: f32[32,128], index: 5, kind: output, shape index: {}]
  %s6 = sld [smem:[#allocation0]]
  $region65: #{tpu_custom_call.1} parent=0
    _
  %s8 = ssub.s32 1, %s6
  %s9 = scalar_select 0, %s8, %s6
  $region1: #{tpu_custom_call.1} parent=0
    #allocation2 [shape = 'u8[8192]{0}', space=vmem, size = 0x2000, scoped, tag = 'input window, operand 0']
    #allocation3 [shape = 's32[2]{0}', space=sflag, size = 0x8, scoped, tag = 'scoped memory for tpu_custom_call.1']
    #allocation4 [shape = 's32[2]{0}', space=sflag, size = 0x8, scoped, tag = 'scoped memory for tpu_custom_call.1']
    #allocation5 [shape = 'u8[16384]{0}', space=vmem, size = 0x4000, scoped, tag = 'input window, operand 1']
    #allocation6 [shape = 's32[2]{0}', space=sflag, size = 0x8, scoped, tag = 'scoped memory for tpu_custom_call.1']
    #allocation7 [shape = 'u8[8192]{0}', space=vmem, size = 0x2000, scoped, tag = 'input window, operand 2, single buffered']
    #allocation8 [shape = 'u8[16384]{0}', space=vmem, size = 0x4000, scoped, tag = 'output window, operand 0']
    %10 = vsyncpa [#allocation3], 0
    %s11 = scalar_lea.sflag [#allocation3], 1
    %12 = vsyncpa %s11, 0
    %13 = vsyncpa [#allocation6], 0
    %s14 = scalar_lea.sflag [#allocation6], 1
    %15 = vsyncpa %s14, 0
    %16 = vsyncpa [#allocation4], 0
    %s17 = scalar_lea.sflag [#allocation4], 1
    %18 = vsyncpa %s17, 0
    loop: start=0, step=1, limit=4
    $region2: #{tpu_custom_call.1} parent=1 // loop_pre_header
      _
    $region3: #{tpu_custom_call.1} parent=1 // loop_header
      %s20 = sphi 0, %s24
      %p21 = scmp.ge.s32.totalorder %s20, 4
      %s30 = sphi 0, %s32
      %s33 = sphi 0, %s30
      %s34 = sphi 0, %s33
      %s50 = sphi 0, %s34
      %s56 = sphi 0, %s58
      %s59 = sphi 0, %s56
      %s60 = sphi 0, %s59
      %s76 = sphi 0, %s60
      %s80 = sphi 0, %s80
      %s82 = sphi 0, %s80
      %s83 = sphi 0, %s82
      %s97 = sphi 0, %s83
      %s101 = sphi 0, %s101
      %s103 = sphi 0, %s101
      %s104 = sphi 0, %s103
      %s118 = sphi 0, %s104
      %s122 = sphi 0, %s122
      %s124 = sphi 0, %s122
      %s125 = sphi 0, %s124
      %s139 = sphi 0, %s125
      %s145 = sphi 0, %s147
      %s148 = sphi 0, %s145
      %s149 = sphi 0, %s148
      %s165 = sphi 0, %s149
    $region4: #{tpu_custom_call.1} parent=1 // loop_header_branch
      %23 = sbr.rel (%p21) target = $region8
    $region5: #{tpu_custom_call.1} parent=1 // loop_body
      %s25 = ssub.s32 %s20, 1
      %s26 = ssub.s32 %s20, 2
      %s27 = sadd.s32 %s20, 1
      %s28 = ssub.s32 %s20, %s27
      %p29 = scmp.eq.s32.totalorder %s28, 0
      %s31 = sadd.s32 %s30, 1
      %s32 = scalar_select %p29, %s30, %s31
      %p35 = pneg %p29
      %p36 = scmp.eq.s32.totalorder %s20, 1
      %p37 = por %p35, %p36
      %p38 = scmp.ne.s32.totalorder %s30, %s33
      %p39 = scmp.eq.s32.totalorder %s20, 0
      %p40 = por %p38, %p39
      %p41 = scmp.ne.s32.totalorder %s30, %s33
      %p42 = scmp.eq.s32.totalorder %s25, 1
      %p43 = por %p41, %p42
      %p44 = scmp.ne.s32.totalorder %s33, %s34
      %p45 = scmp.eq.s32.totalorder %s25, 0
      %p46 = por %p44, %p45
      %p47 = scmp.ne.s32.totalorder %s33, %s34
      %p48 = scmp.eq.s32.totalorder %s26, 1
      %p49 = por %p47, %p48
      %p51 = scmp.ne.s32.totalorder %s34, %s50
      %p52 = scmp.eq.s32.totalorder %s26, 0
      %p53 = por %p51, %p52
      %s54 = ssub.s32 %s20, %s27
      %p55 = scmp.eq.s32.totalorder %s54, 0
      %s57 = sadd.s32 %s56, 1
      %s58 = scalar_select %p55, %s56, %s57
      %p61 = pneg %p55
      %p62 = scmp.eq.s32.totalorder %s20, 1
      %p63 = por %p61, %p62
      %p64 = scmp.ne.s32.totalorder %s56, %s59
      %p65 = scmp.eq.s32.totalorder %s20, 0
      %p66 = por %p64, %p65
      %p67 = scmp.ne.s32.totalorder %s56, %s59
      %p68 = scmp.eq.s32.totalorder %s25, 1
      %p69 = por %p67, %p68
      %p70 = scmp.ne.s32.totalorder %s59, %s60
      %p71 = scmp.eq.s32.totalorder %s25, 0
      %p72 = por %p70, %p71
      %p73 = scmp.ne.s32.totalorder %s59, %s60
      %p74 = scmp.eq.s32.totalorder %s26, 1
      %p75 = por %p73, %p74
      %p77 = scmp.ne.s32.totalorder %s60, %s76
      %p78 = scmp.eq.s32.totalorder %s26, 0
      %p79 = por %p77, %p78
      %s81 = sadd.s32 %s80, 1
      %p84 = scmp.eq.s32.totalorder %s20, 1
      %p85 = scmp.ne.s32.totalorder %s80, %s82
      %p86 = scmp.eq.s32.totalorder %s20, 0
      %p87 = por %p85, %p86
      %p88 = scmp.ne.s32.totalorder %s80, %s82
      %p89 = scmp.eq.s32.totalorder %s25, 1
      %p90 = por %p88, %p89
      %p91 = scmp.ne.s32.totalorder %s82, %s83
      %p92 = scmp.eq.s32.totalorder %s25, 0
      %p93 = por %p91, %p92
      %p94 = scmp.ne.s32.totalorder %s82, %s83
      %p95 = scmp.eq.s32.totalorder %s26, 1
      %p96 = por %p94, %p95
      %p98 = scmp.ne.s32.totalorder %s83, %s97
      %p99 = scmp.eq.s32.totalorder %s26, 0
      %p100 = por %p98, %p99
      %s102 = sadd.s32 %s101, 1
      %p105 = scmp.eq.s32.totalorder %s20, 1
      %p106 = scmp.ne.s32.totalorder %s101, %s103
      %p107 = scmp.eq.s32.totalorder %s20, 0
      %p108 = por %p106, %p107
      %p109 = scmp.ne.s32.totalorder %s101, %s103
      %p110 = scmp.eq.s32.totalorder %s25, 1
      %p111 = por %p109, %p110
      %p112 = scmp.ne.s32.totalorder %s103, %s104
      %p113 = scmp.eq.s32.totalorder %s25, 0
      %p114 = por %p112, %p113
      %p115 = scmp.ne.s32.totalorder %s103, %s104
      %p116 = scmp.eq.s32.totalorder %s26, 1
      %p117 = por %p115, %p116
      %p119 = scmp.ne.s32.totalorder %s104, %s118
      %p120 = scmp.eq.s32.totalorder %s26, 0
      %p121 = por %p119, %p120
      %s123 = sadd.s32 %s122, 1
      %p126 = scmp.eq.s32.totalorder %s20, 1
      %p127 = scmp.ne.s32.totalorder %s122, %s124
      %p128 = scmp.eq.s32.totalorder %s20, 0
      %p129 = por %p127, %p128
      %p130 = scmp.ne.s32.totalorder %s122, %s124
      %p131 = scmp.eq.s32.totalorder %s25, 1
      %p132 = por %p130, %p131
      %p133 = scmp.ne.s32.totalorder %s124, %s125
      %p134 = scmp.eq.s32.totalorder %s25, 0
      %p135 = por %p133, %p134
      %p136 = scmp.ne.s32.totalorder %s124, %s125
      %p137 = scmp.eq.s32.totalorder %s26, 1
      %p138 = por %p136, %p137
      %p140 = scmp.ne.s32.totalorder %s125, %s139
      %p141 = scmp.eq.s32.totalorder %s26, 0
      %p142 = por %p140, %p141
      %s143 = ssub.s32 %s20, %s27
      %p144 = scmp.eq.s32.totalorder %s143, 0
      %s146 = sadd.s32 %s145, 1
      %s147 = scalar_select %p144, %s145, %s146
      %p150 = pneg %p144
      %p151 = scmp.eq.s32.totalorder %s20, 1
      %p152 = por %p150, %p151
      %p153 = scmp.ne.s32.totalorder %s145, %s148
      %p154 = scmp.eq.s32.totalorder %s20, 0
      %p155 = por %p153, %p154
      %p156 = scmp.ne.s32.totalorder %s145, %s148
      %p157 = scmp.eq.s32.totalorder %s25, 1
      %p158 = por %p156, %p157
      %p159 = scmp.ne.s32.totalorder %s148, %s149
      %p160 = scmp.eq.s32.totalorder %s25, 0
      %p161 = por %p159, %p160
      %p162 = scmp.ne.s32.totalorder %s148, %s149
      %p163 = scmp.eq.s32.totalorder %s26, 1
      %p164 = por %p162, %p163
      %p166 = scmp.ne.s32.totalorder %s149, %s165
      %p167 = scmp.eq.s32.totalorder %s26, 0
      %p168 = por %p166, %p167
      %p169 = scmp.le.s32.totalorder 1, %s20
      %p170 = scmp.lt.s32.totalorder %s20, 3
      %p171 = pnand %p169, %p170
      %p172 = pneg %p171
      // Predicated region
      $region9: #{tpu_custom_call.1} parent=5 // pred_check
        _
      $region10: #{tpu_custom_call.1} parent=5 // pred_check_branch
        %174 = sbr.rel (%p171) target = $region12
      $region11: #{tpu_custom_call.1} parent=5 // pred_region
        %s175 = ssub.s32 %s20, 1
        // Predicated region
        $region13: #{tpu_custom_call.1} parent=11 // pred_check
          %p176 = pneg %p93
        $region14: #{tpu_custom_call.1} parent=11 // pred_check_branch
          %178 = sbr.rel (%p176) target = $region16
        $region15: #{tpu_custom_call.1} parent=11 // pred_region
          %s180 = ssub.s32 256, 256
          %181 = vsyncadd [#allocation6], %s180
          %s182 = sshll.u32 [#allocation7], 4
          %s183 = int_to_ptr.vmem [resolvable:$true] %s182
          %188 = dma.hbm_to_vmem [thread:$0]  %s2, 256, %s183, [#allocation6], 64, 64, 4
        $region16: #{tpu_custom_call.1} parent=11 // pred_fallthru
          _
        // Predicated region
        $region17: #{tpu_custom_call.1} parent=11 // pred_check
          %p189 = pneg %p114
        $region18: #{tpu_custom_call.1} parent=11 // pred_check_branch
          %191 = sbr.rel (%p189) target = $region20
        $region19: #{tpu_custom_call.1} parent=11 // pred_region
          _
        $region20: #{tpu_custom_call.1} parent=11 // pred_fallthru
          _
        // Predicated region
        $region21: #{tpu_custom_call.1} parent=11 // pred_check
          %p192 = pneg %p135
        $region22: #{tpu_custom_call.1} parent=11 // pred_check_branch
          %194 = sbr.rel (%p192) target = $region24
        $region23: #{tpu_custom_call.1} parent=11 // pred_region
          _
        $region24: #{tpu_custom_call.1} parent=11 // pred_fallthru
          _
      $region12: #{tpu_custom_call.1} parent=5 // pred_fallthru
        _
      %p195 = scmp.lt.s32.totalorder %s20, 2
      // Predicated region
      $region25: #{tpu_custom_call.1} parent=5 // pred_check
        %p196 = pneg %p195
      $region26: #{tpu_custom_call.1} parent=5 // pred_check_branch
        %198 = sbr.rel (%p196) target = $region28
      $region27: #{tpu_custom_call.1} parent=5 // pred_region
        // Predicated region
        $region29: #{tpu_custom_call.1} parent=27 // pred_check
          %p199 = pneg %p40
        $region30: #{tpu_custom_call.1} parent=27 // pred_check_branch
          %201 = sbr.rel (%p199) target = $region32
        $region31: #{tpu_custom_call.1} parent=27 // pred_region
          %s202 = sand.u32 %s30, 1
          %s203 = scalar_lea.sflag [#allocation3], %s202
          %s204 = sand.u32 %s30, 1
          %s205 = smul.addr %s204, 8
          %s206 = scalar_lea.vmem [#allocation2], %s205
          %s207 = smul.u32 2, %s20
          %s209 = ssub.s32 128, 128
          %210 = vsyncadd %s203, %s209
          %s211 = smul.addr %s207, 64
          %s212 = scalar_lea.hbm %s0, %s211
          %s213 = sshll.u32 %s206, 4
          %s214 = int_to_ptr.vmem [resolvable:$true] %s213
          %219 = dma.hbm_to_vmem [thread:$0]  %s212, 128, %s214, %s203, 64, 64, 4
        $region32: #{tpu_custom_call.1} parent=27 // pred_fallthru
          _
        // Predicated region
        $region33: #{tpu_custom_call.1} parent=27 // pred_check
          %p220 = pneg %p66
        $region34: #{tpu_custom_call.1} parent=27 // pred_check_branch
          %222 = sbr.rel (%p220) target = $region36
        $region35: #{tpu_custom_call.1} parent=27 // pred_region
          %s223 = sand.u32 %s20, 1
          %s224 = scalar_lea.sflag [#allocation6], %s223
          %s225 = sand.u32 %s56, 1
          %s226 = smul.addr %s225, 16
          %s227 = scalar_lea.vmem [#allocation5], %s226
          %s228 = smul.u32 2, %s20
          %s230 = ssub.s32 256, 256
          %231 = vsyncadd %s224, %s230
          %s232 = smul.addr %s228, 128
          %s233 = scalar_lea.hbm %s1, %s232
          %s234 = sshll.u32 %s227, 4
          %s235 = int_to_ptr.vmem [resolvable:$true] %s234
          %240 = dma.hbm_to_vmem [thread:$0]  %s233, 256, %s235, %s224, 128, 128, 8
        $region36: #{tpu_custom_call.1} parent=27 // pred_fallthru
          _
      $region28: #{tpu_custom_call.1} parent=5 // pred_fallthru
        _
      %p241 = scmp.le.s32.totalorder 1, %s20
      %p242 = scmp.lt.s32.totalorder %s20, 3
      %p243 = pnand %p241, %p242
      %p244 = pneg %p243
      // Predicated region
      $region37: #{tpu_custom_call.1} parent=5 // pred_check
        _
      $region38: #{tpu_custom_call.1} parent=5 // pred_check_branch
        %246 = sbr.rel (%p243) target = $region40
      $region39: #{tpu_custom_call.1} parent=5 // pred_region
        %s247 = ssub.s32 %s20, 1
        %s248 = sand.u32 %s33, 1
        %s249 = scalar_lea.sflag [#allocation3], %s248
        %s250 = sand.u32 %s33, 1
        %s251 = smul.addr %s250, 8
        %s252 = scalar_lea.vmem [#allocation2], %s251
        // Predicated region
        $region41: #{tpu_custom_call.1} parent=39 // pred_check
          %p253 = pneg %p46
        $region42: #{tpu_custom_call.1} parent=39 // pred_check_branch
          %255 = sbr.rel (%p253) target = $region44
        $region43: #{tpu_custom_call.1} parent=39 // pred_region
          %256 = dma.done %s249, 128
        $region44: #{tpu_custom_call.1} parent=39 // pred_fallthru
          _
        %s257 = sand.u32 %s25, 1
        %s258 = scalar_lea.sflag [#allocation6], %s257
        %s259 = sand.u32 %s59, 1
        %s260 = smul.addr %s259, 16
        %s261 = scalar_lea.vmem [#allocation5], %s260
        // Predicated region
        $region45: #{tpu_custom_call.1} parent=39 // pred_check
          %p262 = pneg %p72
        $region46: #{tpu_custom_call.1} parent=39 // pred_check_branch
          %264 = sbr.rel (%p262) target = $region48
        $region47: #{tpu_custom_call.1} parent=39 // pred_region
          %265 = dma.done %s258, 256
        $region48: #{tpu_custom_call.1} parent=39 // pred_fallthru
          _
        // Predicated region
        $region49: #{tpu_custom_call.1} parent=39 // pred_check
          %p266 = pneg %p93
        $region50: #{tpu_custom_call.1} parent=39 // pred_check_branch
          %268 = sbr.rel (%p266) target = $region52
        $region51: #{tpu_custom_call.1} parent=39 // pred_region
          %269 = dma.done [#allocation6], 256
        $region52: #{tpu_custom_call.1} parent=39 // pred_fallthru
          _
        %s270 = sand.u32 %s33, 1
        %s271 = scalar_lea.sflag [#allocation3], %s270
        %s272 = sand.u32 %s33, 1
        %s273 = smul.addr %s272, 8
        %s274 = scalar_lea.vmem [#allocation2], %s273
        %p275 = pneg %p46
        %p276 = pneg %p43
        %s277 = sand.u32 %s25, 1
        %s278 = scalar_lea.sflag [#allocation6], %s277
        %s279 = sand.u32 %s59, 1
        %s280 = smul.addr %s279, 16
        %s281 = scalar_lea.vmem [#allocation5], %s280
        %p282 = pneg %p72
        %p283 = pneg %p69
        %p284 = pneg %p93
        %p285 = pneg %p90
        %p286 = pneg %p114
        %p287 = pneg %p111
        %p288 = pneg %p135
        %p289 = pneg %p132
        %p290 = pneg %p161
        %p291 = pneg %p158
        %s292 = sand.u32 %s148, 1
        %s293 = scalar_lea.sflag [#allocation4], %s292
        %s294 = sand.u32 %s148, 1
        %s295 = smul.addr %s294, 16
        %s296 = scalar_lea.vmem [#allocation8], %s295
        %s297 = smul.u32 2, %s25
        %s298 = smul.u32 2, %s25
        %s299 = smul.u32 2, %s25
        %v301 = vld [vmem:[%s252] sm:$0xf]
        %v302 = vld [vmem:[%s252 + $0x4] sm:$0xf]
        %v303 = vld [vmem:[#allocation7] sm:$0xf]
        %v304 = vld [vmem:[#allocation7 + $0x4] sm:$0xf]
        %v305 = vld [vmem:[#allocation7 + $0x8] sm:$0xf]
        %v306 = vld [vmem:[#allocation7 + $0xc] sm:$0xf]
        %v309 = vunpack.c.l.b16 %v301
        %v310 = vunpack.c.l.b16 %v302
        %v311 = vpack.c.b16 %v310, %v309
        %v316 = vunpack.c.l.b16 %v303
        %v317 = vunpack.c.l.b16 %v304
        %v318 = vunpack.c.l.b16 %v305
        %v319 = vunpack.c.l.b16 %v306
        %v320 = vpack.c.b16 %v317, %v316
        %v321 = vpack.c.b16 %v319, %v318
        %vm324 = vcmask 261120
        %v326 = vsel %vm324, %v311, 0
        %328 = vmatprep.subr.bf16.mxu0 0
        %329 = vmatpush1.bf16.msra.mxu0 %v320
        %330 = vmatprep.subr.bf16.mxu0 0
        %331 = vmatpush1.bf16.msra.mxu0 %v321
        %332 = vmatprep.subr.bf16.mxu0 0
        %333 = vmatpush1.bf16.msra.mxu0 0
        %334 = vmatprep.subr.bf16.mxu0 0
        %335 = vmatpush1.bf16.msra.mxu0 0
        %336 = vmatprep.subr.bf16.mxu0 0
        %337 = vmatpush1.bf16.msra.mxu0 0
        %338 = vmatprep.subr.bf16.mxu0 0
        %339 = vmatpush1.bf16.msra.mxu0 0
        %340 = vmatprep.subr.bf16.mxu0 0
        %341 = vmatpush1.bf16.msra.mxu0 0
        %342 = vmatprep.subr.bf16.mxu0 0
        %343 = vmatpush1.bf16.msra.mxu0 0
        %344 = vmatprep.subr.bf16.mxu0 0
        %345 = vmatpush1.bf16.msra.mxu0 0
        %346 = vmatprep.subr.bf16.mxu0 0
        %347 = vmatpush1.bf16.msra.mxu0 0
        %348 = vmatprep.subr.bf16.mxu0 0
        %349 = vmatpush1.bf16.msra.mxu0 0
        %350 = vmatprep.subr.bf16.mxu0 0
        %351 = vmatpush1.bf16.msra.mxu0 0
        %352 = vmatprep.subr.bf16.mxu0 0
        %353 = vmatpush1.bf16.msra.mxu0 0
        %354 = vmatprep.subr.bf16.mxu0 0
        %355 = vmatpush1.bf16.msra.mxu0 0
        %356 = vmatprep.subr.bf16.mxu0 0
        %357 = vmatpush1.bf16.msra.mxu0 0
        %358 = vmatprep.subr.bf16.mxu0 0
        %359 = vmatpush1.bf16.msra.mxu0 0
        %360 = vmatprep.mubr.bf16.mxu0 0
        %361 = vmatmul.mubr.bf16.gmra.mrb[0].mxu0 %v326
        %v362 = vpop.f32.mrb[0].mxu0
        %v363 = vadd.f32 0.0, %v362
        %v364 = vpop.f32.mrb[0].mxu0
        %v365 = vpop.f32.mrb[0].mxu0
        %v366 = vadd.f32 0.0, %v365
        %v367 = vpop.f32.mrb[0].mxu0
        %368 = vdwg.mxu0
        %v369 = vld [vmem:[%s3] sm:$0x1]
        %v371 = vlaneseq
        %v372 = vshrl.u32 %v371, 7
        %v373 = vsub.s32 0, %v372
        %v374 = vrot.slane %v369, %v373
        %v376 = vmul.f32 %v363, %v374
        %v377 = vmul.f32 %v366, %v374
        %v378 = vld [vmem:[%s4] sm:$0x1]
        %v380 = vlaneseq
        %v381 = vshrl.u32 %v380, 7
        %v382 = vsub.s32 0, %v381
        %v383 = vrot.slane %v378, %v382
        %v385 = vadd.f32 %v376, %v383
        %v386 = vadd.f32 %v377, %v383
        %v387 = vld [vmem:[%s261] sm:$0xff]
        %v388 = vld [vmem:[%s261 + $0x8] sm:$0xff]
        %v389 = vmul.f32 %v385, %v387
        %v390 = vmul.f32 %v386, %v388
        %v391 = vlaneseq
        %v392 = vand.u32 %v391, 127
        %vm393 = vcmp.lt.s32.totalorder %v392, 24
        %v394 = vsel %vm393, 1, 0
        %vm395 = vcmp.eq.s32.totalorder %v394, 1
        %v396 = vsel %vm395, %v389, -1e+30
        %v397 = vsel %vm395, %v390, -1e+30
        %398 = vmax.xlane.f32.xlu0 %v396
        %v399 = vpop.xlane.xlu0 %398
        %400 = vmax.xlane.f32.xlu0 %v397
        %v401 = vpop.xlane.xlu0 %400
        %v402 = vsub.f32 %v399, 1.0
        %v403 = vsub.f32 %v401, 1.0
        %v404 = vadd.f32 %v402, %v399
        %v405 = vadd.f32 %v403, %v401
        %v406 = vmul.f32 %v404, 0.5
        %v407 = vmul.f32 %v405, 0.5
        %v408 = vsub.f32 %v396, %v406
        %v409 = vsub.f32 %v397, %v407
        %v410 = vmax.f32 %v408, 0.0
        %v411 = vmax.f32 %v409, 0.0
        %412 = vadd.xlane.f32.xlu0 %v410
        %v413 = vpop.xlane.xlu0 %412
        %414 = vadd.xlane.f32.xlu0 %v411
        %v415 = vpop.xlane.xlu0 %414
        %vm416 = vcmp.gt.f32.partialorder %v413, 1.0
        %vm417 = vcmp.gt.f32.partialorder %v415, 1.0
        %v418 = vsel %vm416, %v406, %v402
        %v419 = vsel %vm417, %v407, %v403
        %v420 = vsel %vm416, %v399, %v406
        %v421 = vsel %vm417, %v401, %v407
        %v422 = vadd.f32 %v418, %v420
        %v423 = vadd.f32 %v419, %v421
        %v424 = vmul.f32 %v422, 0.5
        %v425 = vmul.f32 %v423, 0.5
        %v426 = vsub.f32 %v396, %v424
        %v427 = vsub.f32 %v397, %v425
        %v428 = vmax.f32 %v426, 0.0
        %v429 = vmax.f32 %v427, 0.0
        %430 = vadd.xlane.f32.xlu0 %v428
        %v431 = vpop.xlane.xlu0 %430
        %432 = vadd.xlane.f32.xlu0 %v429
        %v433 = vpop.xlane.xlu0 %432
        %vm434 = vcmp.gt.f32.partialorder %v431, 1.0
        %vm435 = vcmp.gt.f32.partialorder %v433, 1.0
        %v436 = vsel %vm434, %v424, %v418
        %v437 = vsel %vm435, %v425, %v419
        %v438 = vsel %vm434, %v420, %v424
        %v439 = vsel %vm435, %v421, %v425
        %v440 = vadd.f32 %v436, %v438
        %v441 = vadd.f32 %v437, %v439
        %v442 = vmul.f32 %v440, 0.5
        %v443 = vmul.f32 %v441, 0.5
        %v444 = vsub.f32 %v396, %v442
        %v445 = vsub.f32 %v397, %v443
        %v446 = vmax.f32 %v444, 0.0
        %v447 = vmax.f32 %v445, 0.0
        %448 = vadd.xlane.f32.xlu0 %v446
        %v449 = vpop.xlane.xlu0 %448
        %450 = vadd.xlane.f32.xlu0 %v447
        %v451 = vpop.xlane.xlu0 %450
        %vm452 = vcmp.gt.f32.partialorder %v449, 1.0
        %vm453 = vcmp.gt.f32.partialorder %v451, 1.0
        %v454 = vsel %vm452, %v442, %v436
        %v455 = vsel %vm453, %v443, %v437
        %v456 = vsel %vm452, %v438, %v442
        %v457 = vsel %vm453, %v439, %v443
        %v458 = vadd.f32 %v454, %v456
        %v459 = vadd.f32 %v455, %v457
        %v460 = vmul.f32 %v458, 0.5
        %v461 = vmul.f32 %v459, 0.5
        %v462 = vsub.f32 %v396, %v460
        %v463 = vsub.f32 %v397, %v461
        %v464 = vmax.f32 %v462, 0.0
        %v465 = vmax.f32 %v463, 0.0
        %466 = vadd.xlane.f32.xlu0 %v464
        %v467 = vpop.xlane.xlu0 %466
        %468 = vadd.xlane.f32.xlu0 %v465
        %v469 = vpop.xlane.xlu0 %468
        %vm470 = vcmp.gt.f32.partialorder %v467, 1.0
        %vm471 = vcmp.gt.f32.partialorder %v469, 1.0
        %v472 = vsel %vm470, %v460, %v454
        %v473 = vsel %vm471, %v461, %v455
        %v474 = vsel %vm470, %v456, %v460
        %v475 = vsel %vm471, %v457, %v461
        %v476 = vadd.f32 %v472, %v474
        %v477 = vadd.f32 %v473, %v475
        %v478 = vmul.f32 %v476, 0.5
        %v479 = vmul.f32 %v477, 0.5
        %v480 = vsub.f32 %v396, %v478
        %v481 = vsub.f32 %v397, %v479
        %v482 = vmax.f32 %v480, 0.0
        %v483 = vmax.f32 %v481, 0.0
        %484 = vadd.xlane.f32.xlu0 %v482
        %v485 = vpop.xlane.xlu0 %484
        %486 = vadd.xlane.f32.xlu0 %v483
        %v487 = vpop.xlane.xlu0 %486
        %vm488 = vcmp.gt.f32.partialorder %v485, 1.0
        %vm489 = vcmp.gt.f32.partialorder %v487, 1.0
        %v490 = vsel %vm488, %v478, %v472
        %v491 = vsel %vm489, %v479, %v473
        %v492 = vsel %vm488, %v474, %v478
        %v493 = vsel %vm489, %v475, %v479
        %v494 = vadd.f32 %v490, %v492
        %v495 = vadd.f32 %v491, %v493
        %v496 = vmul.f32 %v494, 0.5
        %v497 = vmul.f32 %v495, 0.5
        %v498 = vsub.f32 %v396, %v496
        %v499 = vsub.f32 %v397, %v497
        %v500 = vmax.f32 %v498, 0.0
        %v501 = vmax.f32 %v499, 0.0
        %502 = vadd.xlane.f32.xlu0 %v500
        %v503 = vpop.xlane.xlu0 %502
        %504 = vadd.xlane.f32.xlu0 %v501
        %v505 = vpop.xlane.xlu0 %504
        %vm506 = vcmp.gt.f32.partialorder %v503, 1.0
        %vm507 = vcmp.gt.f32.partialorder %v505, 1.0
        %v508 = vsel %vm506, %v496, %v490
        %v509 = vsel %vm507, %v497, %v491
        %v510 = vsel %vm506, %v492, %v496
        %v511 = vsel %vm507, %v493, %v497
        %v512 = vadd.f32 %v508, %v510
        %v513 = vadd.f32 %v509, %v511
        %v514 = vmul.f32 %v512, 0.5
        %v515 = vmul.f32 %v513, 0.5
        %v516 = vsub.f32 %v396, %v514
        %v517 = vsub.f32 %v397, %v515
        %v518 = vmax.f32 %v516, 0.0
        %v519 = vmax.f32 %v517, 0.0
        %520 = vadd.xlane.f32.xlu0 %v518
        %v521 = vpop.xlane.xlu0 %520
        %522 = vadd.xlane.f32.xlu0 %v519
        %v523 = vpop.xlane.xlu0 %522
        %vm524 = vcmp.gt.f32.partialorder %v521, 1.0
        %vm525 = vcmp.gt.f32.partialorder %v523, 1.0
        %v526 = vsel %vm524, %v514, %v508
        %v527 = vsel %vm525, %v515, %v509
        %v528 = vsel %vm524, %v510, %v514
        %v529 = vsel %vm525, %v511, %v515
        %v530 = vadd.f32 %v526, %v528
        %v531 = vadd.f32 %v527, %v529
        %v532 = vmul.f32 %v530, 0.5
        %v533 = vmul.f32 %v531, 0.5
        %v534 = vsub.f32 %v396, %v532
        %v535 = vsub.f32 %v397, %v533
        %v536 = vmax.f32 %v534, 0.0
        %v537 = vmax.f32 %v535, 0.0
        %538 = vadd.xlane.f32.xlu0 %v536
        %v539 = vpop.xlane.xlu0 %538
        %540 = vadd.xlane.f32.xlu0 %v537
        %v541 = vpop.xlane.xlu0 %540
        %vm542 = vcmp.gt.f32.partialorder %v539, 1.0
        %vm543 = vcmp.gt.f32.partialorder %v541, 1.0
        %v544 = vsel %vm542, %v532, %v526
        %v545 = vsel %vm543, %v533, %v527
        %v546 = vsel %vm542, %v528, %v532
        %v547 = vsel %vm543, %v529, %v533
        %v548 = vadd.f32 %v544, %v546
        %v549 = vadd.f32 %v545, %v547
        %v550 = vmul.f32 %v548, 0.5
        %v551 = vmul.f32 %v549, 0.5
        %v552 = vsub.f32 %v396, %v550
        %v553 = vsub.f32 %v397, %v551
        %v554 = vmax.f32 %v552, 0.0
        %v555 = vmax.f32 %v553, 0.0
        %556 = vadd.xlane.f32.xlu0 %v554
        %v557 = vpop.xlane.xlu0 %556
        %558 = vadd.xlane.f32.xlu0 %v555
        %v559 = vpop.xlane.xlu0 %558
        %vm560 = vcmp.gt.f32.partialorder %v557, 1.0
        %vm561 = vcmp.gt.f32.partialorder %v559, 1.0
        %v562 = vsel %vm560, %v550, %v544
        %v563 = vsel %vm561, %v551, %v545
        %v564 = vsel %vm560, %v546, %v550
        %v565 = vsel %vm561, %v547, %v551
        %v566 = vadd.f32 %v562, %v564
        %v567 = vadd.f32 %v563, %v565
        %v568 = vmul.f32 %v566, 0.5
        %v569 = vmul.f32 %v567, 0.5
        %v570 = vsub.f32 %v396, %v568
        %v571 = vsub.f32 %v397, %v569
        %v572 = vmax.f32 %v570, 0.0
        %v573 = vmax.f32 %v571, 0.0
        %574 = vadd.xlane.f32.xlu0 %v572
        %v575 = vpop.xlane.xlu0 %574
        %576 = vadd.xlane.f32.xlu0 %v573
        %v577 = vpop.xlane.xlu0 %576
        %vm578 = vcmp.gt.f32.partialorder %v575, 1.0
        %vm579 = vcmp.gt.f32.partialorder %v577, 1.0
        %v580 = vsel %vm578, %v568, %v562
        %v581 = vsel %vm579, %v569, %v563
        %v582 = vsel %vm578, %v564, %v568
        %v583 = vsel %vm579, %v565, %v569
        %v584 = vadd.f32 %v580, %v582
        %v585 = vadd.f32 %v581, %v583
        %v586 = vmul.f32 %v584, 0.5
        %v587 = vmul.f32 %v585, 0.5
        %v588 = vsub.f32 %v396, %v586
        %v589 = vsub.f32 %v397, %v587
        %v590 = vmax.f32 %v588, 0.0
        %v591 = vmax.f32 %v589, 0.0
        %592 = vadd.xlane.f32.xlu0 %v590
        %v593 = vpop.xlane.xlu0 %592
        %594 = vadd.xlane.f32.xlu0 %v591
        %v595 = vpop.xlane.xlu0 %594
        %vm596 = vcmp.gt.f32.partialorder %v593, 1.0
        %vm597 = vcmp.gt.f32.partialorder %v595, 1.0
        %v598 = vsel %vm596, %v586, %v580
        %v599 = vsel %vm597, %v587, %v581
        %v600 = vsel %vm596, %v582, %v586
        %v601 = vsel %vm597, %v583, %v587
        %v602 = vadd.f32 %v598, %v600
        %v603 = vadd.f32 %v599, %v601
        %v604 = vmul.f32 %v602, 0.5
        %v605 = vmul.f32 %v603, 0.5
        %v606 = vsub.f32 %v396, %v604
        %v607 = vsub.f32 %v397, %v605
        %v608 = vmax.f32 %v606, 0.0
        %v609 = vmax.f32 %v607, 0.0
        %610 = vadd.xlane.f32.xlu0 %v608
        %v611 = vpop.xlane.xlu0 %610
        %612 = vadd.xlane.f32.xlu0 %v609
        %v613 = vpop.xlane.xlu0 %612
        %vm614 = vcmp.gt.f32.partialorder %v611, 1.0
        %vm615 = vcmp.gt.f32.partialorder %v613, 1.0
        %v616 = vsel %vm614, %v604, %v598
        %v617 = vsel %vm615, %v605, %v599
        %v618 = vsel %vm614, %v600, %v604
        %v619 = vsel %vm615, %v601, %v605
        %v620 = vadd.f32 %v616, %v618
        %v621 = vadd.f32 %v617, %v619
        %v622 = vmul.f32 %v620, 0.5
        %v623 = vmul.f32 %v621, 0.5
        %v624 = vsub.f32 %v396, %v622
        %v625 = vsub.f32 %v397, %v623
        %v626 = vmax.f32 %v624, 0.0
        %v627 = vmax.f32 %v625, 0.0
        %628 = vadd.xlane.f32.xlu0 %v626
        %v629 = vpop.xlane.xlu0 %628
        %630 = vadd.xlane.f32.xlu0 %v627
        %v631 = vpop.xlane.xlu0 %630
        %vm632 = vcmp.gt.f32.partialorder %v629, 1.0
        %vm633 = vcmp.gt.f32.partialorder %v631, 1.0
        %v634 = vsel %vm632, %v622, %v616
        %v635 = vsel %vm633, %v623, %v617
        %v636 = vsel %vm632, %v618, %v622
        %v637 = vsel %vm633, %v619, %v623
        %v638 = vadd.f32 %v634, %v636
        %v639 = vadd.f32 %v635, %v637
        %v640 = vmul.f32 %v638, 0.5
        %v641 = vmul.f32 %v639, 0.5
        %v642 = vsub.f32 %v396, %v640
        %v643 = vsub.f32 %v397, %v641
        %v644 = vmax.f32 %v642, 0.0
        %v645 = vmax.f32 %v643, 0.0
        %646 = vadd.xlane.f32.xlu0 %v644
        %v647 = vpop.xlane.xlu0 %646
        %648 = vadd.xlane.f32.xlu0 %v645
        %v649 = vpop.xlane.xlu0 %648
        %vm650 = vcmp.gt.f32.partialorder %v647, 1.0
        %vm651 = vcmp.gt.f32.partialorder %v649, 1.0
        %v652 = vsel %vm650, %v640, %v634
        %v653 = vsel %vm651, %v641, %v635
        %v654 = vsel %vm650, %v636, %v640
        %v655 = vsel %vm651, %v637, %v641
        %v656 = vadd.f32 %v652, %v654
        %v657 = vadd.f32 %v653, %v655
        %v658 = vmul.f32 %v656, 0.5
        %v659 = vmul.f32 %v657, 0.5
        %v660 = vsub.f32 %v396, %v658
        %v661 = vsub.f32 %v397, %v659
        %v662 = vmax.f32 %v660, 0.0
        %v663 = vmax.f32 %v661, 0.0
        %664 = vadd.xlane.f32.xlu0 %v662
        %v665 = vpop.xlane.xlu0 %664
        %666 = vadd.xlane.f32.xlu0 %v663
        %v667 = vpop.xlane.xlu0 %666
        %vm668 = vcmp.gt.f32.partialorder %v665, 1.0
        %vm669 = vcmp.gt.f32.partialorder %v667, 1.0
        %v670 = vsel %vm668, %v658, %v652
        %v671 = vsel %vm669, %v659, %v653
        %v672 = vsel %vm668, %v654, %v658
        %v673 = vsel %vm669, %v655, %v659
        %v674 = vadd.f32 %v670, %v672
        %v675 = vadd.f32 %v671, %v673
        %v676 = vmul.f32 %v674, 0.5
        %v677 = vmul.f32 %v675, 0.5
        %v678 = vsub.f32 %v396, %v676
        %v679 = vsub.f32 %v397, %v677
        %v680 = vmax.f32 %v678, 0.0
        %v681 = vmax.f32 %v679, 0.0
        %682 = vadd.xlane.f32.xlu0 %v680
        %v683 = vpop.xlane.xlu0 %682
        %684 = vadd.xlane.f32.xlu0 %v681
        %v685 = vpop.xlane.xlu0 %684
        %vm686 = vcmp.gt.f32.partialorder %v683, 1.0
        %vm687 = vcmp.gt.f32.partialorder %v685, 1.0
        %v688 = vsel %vm686, %v676, %v670
        %v689 = vsel %vm687, %v677, %v671
        %v690 = vsel %vm686, %v672, %v676
        %v691 = vsel %vm687, %v673, %v677
        %v692 = vadd.f32 %v688, %v690
        %v693 = vadd.f32 %v689, %v691
        %v694 = vmul.f32 %v692, 0.5
        %v695 = vmul.f32 %v693, 0.5
        %v696 = vsub.f32 %v396, %v694
        %v697 = vsub.f32 %v397, %v695
        %v698 = vmax.f32 %v696, 0.0
        %v699 = vmax.f32 %v697, 0.0
        %700 = vadd.xlane.f32.xlu0 %v698
        %v701 = vpop.xlane.xlu0 %700
        %702 = vadd.xlane.f32.xlu0 %v699
        %v703 = vpop.xlane.xlu0 %702
        %vm704 = vcmp.gt.f32.partialorder %v701, 1.0
        %vm705 = vcmp.gt.f32.partialorder %v703, 1.0
        %v706 = vsel %vm704, %v694, %v688
        %v707 = vsel %vm705, %v695, %v689
        %v708 = vsel %vm704, %v690, %v694
        %v709 = vsel %vm705, %v691, %v695
        %v710 = vadd.f32 %v706, %v708
        %v711 = vadd.f32 %v707, %v709
        %v712 = vmul.f32 %v710, 0.5
        %v713 = vmul.f32 %v711, 0.5
        %v714 = vsub.f32 %v396, %v712
        %v715 = vsub.f32 %v397, %v713
        %v716 = vmax.f32 %v714, 0.0
        %v717 = vmax.f32 %v715, 0.0
        %718 = vadd.xlane.f32.xlu0 %v716
        %v719 = vpop.xlane.xlu0 %718
        %720 = vadd.xlane.f32.xlu0 %v717
        %v721 = vpop.xlane.xlu0 %720
        %vm722 = vcmp.gt.f32.partialorder %v719, 1.0
        %vm723 = vcmp.gt.f32.partialorder %v721, 1.0
        %v724 = vsel %vm722, %v712, %v706
        %v725 = vsel %vm723, %v713, %v707
        %v726 = vsel %vm722, %v708, %v712
        %v727 = vsel %vm723, %v709, %v713
        %v728 = vadd.f32 %v724, %v726
        %v729 = vadd.f32 %v725, %v727
        %v730 = vmul.f32 %v728, 0.5
        %v731 = vmul.f32 %v729, 0.5
        %v732 = vsub.f32 %v396, %v730
        %v733 = vsub.f32 %v397, %v731
        %v734 = vmax.f32 %v732, 0.0
        %v735 = vmax.f32 %v733, 0.0
        %736 = vadd.xlane.f32.xlu0 %v734
        %v737 = vpop.xlane.xlu0 %736
        %738 = vadd.xlane.f32.xlu0 %v735
        %v739 = vpop.xlane.xlu0 %738
        %vm740 = vcmp.gt.f32.partialorder %v737, 1.0
        %vm741 = vcmp.gt.f32.partialorder %v739, 1.0
        %v742 = vsel %vm740, %v730, %v724
        %v743 = vsel %vm741, %v731, %v725
        %v744 = vsel %vm740, %v726, %v730
        %v745 = vsel %vm741, %v727, %v731
        %v746 = vadd.f32 %v742, %v744
        %v747 = vadd.f32 %v743, %v745
        %v748 = vmul.f32 %v746, 0.5
        %v749 = vmul.f32 %v747, 0.5
        %v750 = vsub.f32 %v396, %v748
        %v751 = vsub.f32 %v397, %v749
        %v752 = vmax.f32 %v750, 0.0
        %v753 = vmax.f32 %v751, 0.0
        %754 = vadd.xlane.f32.xlu0 %v752
        %v755 = vpop.xlane.xlu0 %754
        %756 = vadd.xlane.f32.xlu0 %v753
        %v757 = vpop.xlane.xlu0 %756
        %vm758 = vcmp.gt.f32.partialorder %v755, 1.0
        %vm759 = vcmp.gt.f32.partialorder %v757, 1.0
        %v760 = vsel %vm758, %v748, %v742
        %v761 = vsel %vm759, %v749, %v743
        %v762 = vsel %vm758, %v744, %v748
        %v763 = vsel %vm759, %v745, %v749
        %v764 = vadd.f32 %v760, %v762
        %v765 = vadd.f32 %v761, %v763
        %v766 = vmul.f32 %v764, 0.5
        %v767 = vmul.f32 %v765, 0.5
        %v768 = vsub.f32 %v396, %v766
        %v769 = vsub.f32 %v397, %v767
        %v770 = vmax.f32 %v768, 0.0
        %v771 = vmax.f32 %v769, 0.0
        %772 = vadd.xlane.f32.xlu0 %v770
        %v773 = vpop.xlane.xlu0 %772
        %774 = vadd.xlane.f32.xlu0 %v771
        %v775 = vpop.xlane.xlu0 %774
        %vm776 = vcmp.gt.f32.partialorder %v773, 1.0
        %vm777 = vcmp.gt.f32.partialorder %v775, 1.0
        %v778 = vsel %vm776, %v766, %v760
        %v779 = vsel %vm777, %v767, %v761
        %v780 = vsel %vm776, %v762, %v766
        %v781 = vsel %vm777, %v763, %v767
        %v782 = vadd.f32 %v778, %v780
        %v783 = vadd.f32 %v779, %v781
        %v784 = vmul.f32 %v782, 0.5
        %v785 = vmul.f32 %v783, 0.5
        %v786 = vsub.f32 %v396, %v784
        %v787 = vsub.f32 %v397, %v785
        %v788 = vmax.f32 %v786, 0.0
        %v789 = vmax.f32 %v787, 0.0
        %790 = vadd.xlane.f32.xlu0 %v788
        %v791 = vpop.xlane.xlu0 %790
        %792 = vadd.xlane.f32.xlu0 %v789
        %v793 = vpop.xlane.xlu0 %792
        %vm794 = vcmp.gt.f32.partialorder %v791, 1.0
        %vm795 = vcmp.gt.f32.partialorder %v793, 1.0
        %v796 = vsel %vm794, %v784, %v778
        %v797 = vsel %vm795, %v785, %v779
        %v798 = vsel %vm794, %v780, %v784
        %v799 = vsel %vm795, %v781, %v785
        %v800 = vadd.f32 %v796, %v798
        %v801 = vadd.f32 %v797, %v799
        %v802 = vmul.f32 %v800, 0.5
        %v803 = vmul.f32 %v801, 0.5
        %v804 = vsub.f32 %v396, %v802
        %v805 = vsub.f32 %v397, %v803
        %v806 = vmax.f32 %v804, 0.0
        %v807 = vmax.f32 %v805, 0.0
        %808 = vadd.xlane.f32.xlu0 %v806
        %v809 = vpop.xlane.xlu0 %808
        %810 = vadd.xlane.f32.xlu0 %v807
        %v811 = vpop.xlane.xlu0 %810
        %vm812 = vcmp.gt.f32.partialorder %v809, 1.0
        %vm813 = vcmp.gt.f32.partialorder %v811, 1.0
        %v814 = vsel %vm812, %v802, %v796
        %v815 = vsel %vm813, %v803, %v797
        %v816 = vsel %vm812, %v798, %v802
        %v817 = vsel %vm813, %v799, %v803
        %v818 = vadd.f32 %v814, %v816
        %v819 = vadd.f32 %v815, %v817
        %v820 = vmul.f32 %v818, 0.5
        %v821 = vmul.f32 %v819, 0.5
        %v822 = vsub.f32 %v396, %v820
        %v823 = vsub.f32 %v397, %v821
        %v824 = vmax.f32 %v822, 0.0
        %v825 = vmax.f32 %v823, 0.0
        %826 = vadd.xlane.f32.xlu0 %v824
        %v827 = vpop.xlane.xlu0 %826
        %828 = vadd.xlane.f32.xlu0 %v825
        %v829 = vpop.xlane.xlu0 %828
        %vm830 = vcmp.gt.f32.partialorder %v827, 1.0
        %vm831 = vcmp.gt.f32.partialorder %v829, 1.0
        %v832 = vsel %vm830, %v820, %v814
        %v833 = vsel %vm831, %v821, %v815
        %v834 = vsel %vm830, %v816, %v820
        %v835 = vsel %vm831, %v817, %v821
        %v836 = vadd.f32 %v832, %v834
        %v837 = vadd.f32 %v833, %v835
        %v838 = vmul.f32 %v836, 0.5
        %v839 = vmul.f32 %v837, 0.5
        %v840 = vsub.f32 %v396, %v838
        %v841 = vsub.f32 %v397, %v839
        %v842 = vmax.f32 %v840, 0.0
        %v843 = vmax.f32 %v841, 0.0
        %844 = vadd.xlane.f32.xlu0 %v842
        %v845 = vpop.xlane.xlu0 %844
        %846 = vadd.xlane.f32.xlu0 %v843
        %v847 = vpop.xlane.xlu0 %846
        %vm848 = vcmp.gt.f32.partialorder %v845, 1.0
        %vm849 = vcmp.gt.f32.partialorder %v847, 1.0
        %v850 = vsel %vm848, %v838, %v832
        %v851 = vsel %vm849, %v839, %v833
        %v852 = vsel %vm848, %v834, %v838
        %v853 = vsel %vm849, %v835, %v839
        %v854 = vadd.f32 %v850, %v852
        %v855 = vadd.f32 %v851, %v853
        %v856 = vmul.f32 %v854, 0.5
        %v857 = vmul.f32 %v855, 0.5
        %v858 = vsub.f32 %v396, %v856
        %v859 = vsub.f32 %v397, %v857
        %v860 = vmax.f32 %v858, 0.0
        %v861 = vmax.f32 %v859, 0.0
        %862 = vadd.xlane.f32.xlu0 %v860
        %v863 = vpop.xlane.xlu0 %862
        %864 = vadd.xlane.f32.xlu0 %v861
        %v865 = vpop.xlane.xlu0 %864
        %vm866 = vcmp.gt.f32.partialorder %v863, 1.0
        %vm867 = vcmp.gt.f32.partialorder %v865, 1.0
        %v868 = vsel %vm866, %v856, %v850
        %v869 = vsel %vm867, %v857, %v851
        %v870 = vsel %vm866, %v852, %v856
        %v871 = vsel %vm867, %v853, %v857
        %v872 = vadd.f32 %v868, %v870
        %v873 = vadd.f32 %v869, %v871
        %v874 = vmul.f32 %v872, 0.5
        %v875 = vmul.f32 %v873, 0.5
        %v876 = vsub.f32 %v396, %v874
        %v877 = vsub.f32 %v397, %v875
        %v878 = vmax.f32 %v876, 0.0
        %v879 = vmax.f32 %v877, 0.0
        %880 = vadd.xlane.f32.xlu0 %v878
        %v881 = vpop.xlane.xlu0 %880
        %882 = vadd.xlane.f32.xlu0 %v879
        %v883 = vpop.xlane.xlu0 %882
        %vm884 = vcmp.gt.f32.partialorder %v881, 1.0
        %vm885 = vcmp.gt.f32.partialorder %v883, 1.0
        %v886 = vsel %vm884, %v874, %v868
        %v887 = vsel %vm885, %v875, %v869
        %v888 = vsel %vm884, %v870, %v874
        %v889 = vsel %vm885, %v871, %v875
        %v890 = vadd.f32 %v886, %v888
        %v891 = vadd.f32 %v887, %v889
        %v892 = vmul.f32 %v890, 0.5
        %v893 = vmul.f32 %v891, 0.5
        %v894 = vsub.f32 %v396, %v892
        %v895 = vsub.f32 %v397, %v893
        %v896 = vmax.f32 %v894, 0.0
        %v897 = vmax.f32 %v895, 0.0
        %898 = vadd.xlane.f32.xlu0 %v896
        %v899 = vpop.xlane.xlu0 %898
        %900 = vadd.xlane.f32.xlu0 %v897
        %v901 = vpop.xlane.xlu0 %900
        %vm902 = vcmp.gt.f32.partialorder %v899, 1.0
        %vm903 = vcmp.gt.f32.partialorder %v901, 1.0
        %v904 = vsel %vm902, %v892, %v886
        %v905 = vsel %vm903, %v893, %v887
        %v906 = vsel %vm902, %v888, %v892
        %v907 = vsel %vm903, %v889, %v893
        %v908 = vadd.f32 %v904, %v906
        %v909 = vadd.f32 %v905, %v907
        %v910 = vmul.f32 %v908, 0.5
        %v911 = vmul.f32 %v909, 0.5
        %v912 = vsub.f32 %v396, %v910
        %v913 = vsub.f32 %v397, %v911
        %v914 = vmax.f32 %v912, 0.0
        %v915 = vmax.f32 %v913, 0.0
        %916 = vadd.xlane.f32.xlu0 %v914
        %v917 = vpop.xlane.xlu0 %916
        %918 = vadd.xlane.f32.xlu0 %v915
        %v919 = vpop.xlane.xlu0 %918
        %vm920 = vcmp.gt.f32.partialorder %v917, 1.0
        %vm921 = vcmp.gt.f32.partialorder %v919, 1.0
        %v922 = vsel %vm920, %v910, %v904
        %v923 = vsel %vm921, %v911, %v905
        %v924 = vsel %vm920, %v906, %v910
        %v925 = vsel %vm921, %v907, %v911
        %v926 = vadd.f32 %v922, %v924
        %v927 = vadd.f32 %v923, %v925
        %v928 = vmul.f32 %v926, 0.5
        %v929 = vmul.f32 %v927, 0.5
        %v930 = vsub.f32 %v396, %v928
        %v931 = vsub.f32 %v397, %v929
        %v932 = vmax.f32 %v930, 0.0
        %v933 = vmax.f32 %v931, 0.0
        %934 = vadd.xlane.f32.xlu0 %v932
        %v935 = vpop.xlane.xlu0 %934
        %936 = vadd.xlane.f32.xlu0 %v933
        %v937 = vpop.xlane.xlu0 %936
        %vm938 = vcmp.gt.f32.partialorder %v935, 1.0
        %vm939 = vcmp.gt.f32.partialorder %v937, 1.0
        %v940 = vsel %vm938, %v928, %v922
        %v941 = vsel %vm939, %v929, %v923
        %vm942 = vcmp.gt.f32.partialorder %v396, %v940
        %vm943 = vcmp.gt.f32.partialorder %v397, %v941
        %v944 = vsel %vm942, 1, 0
        %v945 = vsel %vm943, 1, 0
        %v946 = vcvt.s32.f32 %v944
        %v947 = vcvt.s32.f32 %v945
        %948 = vadd.xlane.f32.xlu0 %v946
        %v949 = vpop.xlane.xlu0 %948
        %950 = vadd.xlane.f32.xlu0 %v947
        %v951 = vpop.xlane.xlu0 %950
        %v952 = vmul.f32 %v946, %v396
        %v953 = vmul.f32 %v947, %v397
        %954 = vadd.xlane.f32.xlu0 %v952
        %v955 = vpop.xlane.xlu0 %954
        %956 = vadd.xlane.f32.xlu0 %v953
        %v957 = vpop.xlane.xlu0 %956
        %v958 = vsub.f32 %v955, 1.0
        %v959 = vsub.f32 %v957, 1.0
        %v960 = vrcp.pop %v949
        %v961 = vmul.f32 %v958, %v960
        %v962 = vrcp.pop %v951
        %v963 = vmul.f32 %v959, %v962
        %v964 = vsub.f32 %v396, %v961
        %v965 = vsub.f32 %v397, %v963
        %v966 = vmax.f32 %v964, 0.0
        %v967 = vmax.f32 %v965, 0.0
        %968 = vst [vmem:[%s296] sm:$0xff] %v966
        %969 = vst [vmem:[%s296 + $0x8] sm:$0xff] %v967
        %s970 = sand.u32 %s148, 1
        %s971 = scalar_lea.sflag [#allocation4], %s970
        %s972 = sand.u32 %s148, 1
        %s973 = smul.addr %s972, 16
        %s974 = scalar_lea.vmem [#allocation8], %s973
        // Predicated region
        $region53: #{tpu_custom_call.1} parent=39 // pred_check
          %p975 = pneg %p158
        $region54: #{tpu_custom_call.1} parent=39 // pred_check_branch
          %977 = sbr.rel (%p975) target = $region56
        $region55: #{tpu_custom_call.1} parent=39 // pred_region
          %s978 = smul.u32 2, %s25
          %s980 = ssub.s32 256, 256
          %981 = vsyncadd %s971, %s980
          %s982 = smul.addr %s978, 128
          %s983 = scalar_lea.hbm %s5, %s982
          %s984 = sshll.u32 %s974, 4
          %s985 = int_to_ptr.vmem [resolvable:$true] %s984
          %990 = dma.vmem_to_hbm [thread:$0]  %s985, 256, %s983, %s971, 128, 128, 8
        $region56: #{tpu_custom_call.1} parent=39 // pred_fallthru
          _
      $region40: #{tpu_custom_call.1} parent=5 // pred_fallthru
        _
      %p991 = scmp.le.s32.totalorder 2, %s20
      // Predicated region
      $region57: #{tpu_custom_call.1} parent=5 // pred_check
        %p992 = pneg %p991
      $region58: #{tpu_custom_call.1} parent=5 // pred_check_branch
        %994 = sbr.rel (%p992) target = $region60
      $region59: #{tpu_custom_call.1} parent=5 // pred_region
        %s995 = ssub.s32 %s20, 2
        // Predicated region
        $region61: #{tpu_custom_call.1} parent=59 // pred_check
          %p996 = pneg %p164
        $region62: #{tpu_custom_call.1} parent=59 // pred_check_branch
          %998 = sbr.rel (%p996) target = $region64
        $region63: #{tpu_custom_call.1} parent=59 // pred_region
          %s999 = sand.u32 %s149, 1
          %s1000 = scalar_lea.sflag [#allocation4], %s999
          %s1001 = sand.u32 %s149, 1
          %s1002 = smul.addr %s1001, 16
          %s1003 = scalar_lea.vmem [#allocation8], %s1002
          %1004 = dma.done %s1000, 256
        $region64: #{tpu_custom_call.1} parent=59 // pred_fallthru
          _
      $region60: #{tpu_custom_call.1} parent=5 // pred_fallthru
        _
    $region6: #{tpu_custom_call.1} parent=1 // loop_footer
      %s24 = sadd.s32 1, %s20
    $region7: #{tpu_custom_call.1} parent=1 // loop_footer_branch
      %19 = sbr.rel target = $region3
    $region8: #{tpu_custom_call.1} parent=1 // loop_exit
      _
    %1005 = vsyncpa [#allocation3], 1
    %s1006 = scalar_lea.sflag [#allocation3], 1
    %1007 = vsyncpa %s1006, 1
    %1008 = vsyncpa [#allocation6], 1
    %s1009 = scalar_lea.sflag [#allocation6], 1
    %1010 = vsyncpa %s1009, 1
    %1011 = vsyncpa [#allocation4], 1
    %s1012 = scalar_lea.sflag [#allocation4], 1
    %1013 = vsyncpa %s1012, 1

// kernel: tpu_custom_call.1
$region0: #{tpu_custom_call.1}
  #allocation0 [shape = 'u32[]', space=smem, size = 0x4, offset = 0x4, fixed_abs, tag = 'smem constant byte address 0x4 - core index']
  #allocation1 [shape = 'u32[144,128]{1,0:T(1,128)}', space=vmem, size = 0x12000, scoped, tag = 'internal scratch']
  %s0 = inlined_call_operand.hbm [shape: bf16[32,32], index: 0, kind: input, shape index: {}]
  %s1 = inlined_call_operand.hbm [shape: f32[32,128], index: 1, kind: input, shape index: {}]
  %s2 = inlined_call_operand.hbm [shape: bf16[32,128], index: 2, kind: input, shape index: {}]
  %s3 = inlined_call_operand.vmem [shape: f32[1,128], index: 3, kind: input, shape index: {}]
  %s4 = inlined_call_operand.vmem [shape: f32[1,128], index: 4, kind: input, shape index: {}]
  %s5 = inlined_call_operand.hbm [shape: f32[32,128], index: 5, kind: output, shape index: {}]
  %s6 = sld [smem:[#allocation0]]
  $region65: #{tpu_custom_call.1} parent=0
    _
  %s8 = ssub.s32 1, %s6
  %s9 = scalar_select 0, %s8, %s6
  $region1: #{tpu_custom_call.1} parent=0
    #allocation2 [shape = 'u8[8192]{0}', space=vmem, size = 0x2000, scoped, tag = 'input window, operand 0']
    #allocation3 [shape = 's32[2]{0}', space=sflag, size = 0x8, scoped, tag = 'scoped memory for tpu_custom_call.1']
    #allocation4 [shape = 's32[2]{0}', space=sflag, size = 0x8, scoped, tag = 'scoped memory for tpu_custom_call.1']
    #allocation5 [shape = 'u8[16384]{0}', space=vmem, size = 0x4000, scoped, tag = 'input window, operand 1']
    #allocation6 [shape = 's32[2]{0}', space=sflag, size = 0x8, scoped, tag = 'scoped memory for tpu_custom_call.1']
    #allocation7 [shape = 'u8[8192]{0}', space=vmem, size = 0x2000, scoped, tag = 'input window, operand 2, single buffered']
    #allocation8 [shape = 'u8[16384]{0}', space=vmem, size = 0x4000, scoped, tag = 'output window, operand 0']
    %10 = vsyncpa [#allocation3], 0
    %s11 = scalar_lea.sflag [#allocation3], 1
    %12 = vsyncpa %s11, 0
    %13 = vsyncpa [#allocation6], 0
    %s14 = scalar_lea.sflag [#allocation6], 1
    %15 = vsyncpa %s14, 0
    %16 = vsyncpa [#allocation4], 0
    %s17 = scalar_lea.sflag [#allocation4], 1
    %18 = vsyncpa %s17, 0
    loop: start=0, step=1, limit=4
    $region2: #{tpu_custom_call.1} parent=1 // loop_pre_header
      _
    $region3: #{tpu_custom_call.1} parent=1 // loop_header
      %s20 = sphi 0, %s24
      %p21 = scmp.ge.s32.totalorder %s20, 4
      %s30 = sphi 0, %s32
      %s33 = sphi 0, %s30
      %s34 = sphi 0, %s33
      %s50 = sphi 0, %s34
      %s56 = sphi 0, %s58
      %s59 = sphi 0, %s56
      %s60 = sphi 0, %s59
      %s76 = sphi 0, %s60
      %s80 = sphi 0, %s80
      %s82 = sphi 0, %s80
      %s83 = sphi 0, %s82
      %s97 = sphi 0, %s83
      %s101 = sphi 0, %s101
      %s103 = sphi 0, %s101
      %s104 = sphi 0, %s103
      %s118 = sphi 0, %s104
      %s122 = sphi 0, %s122
      %s124 = sphi 0, %s122
      %s125 = sphi 0, %s124
      %s139 = sphi 0, %s125
      %s145 = sphi 0, %s147
      %s148 = sphi 0, %s145
      %s149 = sphi 0, %s148
      %s165 = sphi 0, %s149
    $region4: #{tpu_custom_call.1} parent=1 // loop_header_branch
      %23 = sbr.rel (%p21) target = $region8
    $region5: #{tpu_custom_call.1} parent=1 // loop_body
      %s25 = ssub.s32 %s20, 1
      %s26 = ssub.s32 %s20, 2
      %s27 = sadd.s32 %s20, 1
      %s28 = ssub.s32 %s20, %s27
      %p29 = scmp.eq.s32.totalorder %s28, 0
      %s31 = sadd.s32 %s30, 1
      %s32 = scalar_select %p29, %s30, %s31
      %p35 = pneg %p29
      %p36 = scmp.eq.s32.totalorder %s20, 1
      %p37 = por %p35, %p36
      %p38 = scmp.ne.s32.totalorder %s30, %s33
      %p39 = scmp.eq.s32.totalorder %s20, 0
      %p40 = por %p38, %p39
      %p41 = scmp.ne.s32.totalorder %s30, %s33
      %p42 = scmp.eq.s32.totalorder %s25, 1
      %p43 = por %p41, %p42
      %p44 = scmp.ne.s32.totalorder %s33, %s34
      %p45 = scmp.eq.s32.totalorder %s25, 0
      %p46 = por %p44, %p45
      %p47 = scmp.ne.s32.totalorder %s33, %s34
      %p48 = scmp.eq.s32.totalorder %s26, 1
      %p49 = por %p47, %p48
      %p51 = scmp.ne.s32.totalorder %s34, %s50
      %p52 = scmp.eq.s32.totalorder %s26, 0
      %p53 = por %p51, %p52
      %s54 = ssub.s32 %s20, %s27
      %p55 = scmp.eq.s32.totalorder %s54, 0
      %s57 = sadd.s32 %s56, 1
      %s58 = scalar_select %p55, %s56, %s57
      %p61 = pneg %p55
      %p62 = scmp.eq.s32.totalorder %s20, 1
      %p63 = por %p61, %p62
      %p64 = scmp.ne.s32.totalorder %s56, %s59
      %p65 = scmp.eq.s32.totalorder %s20, 0
      %p66 = por %p64, %p65
      %p67 = scmp.ne.s32.totalorder %s56, %s59
      %p68 = scmp.eq.s32.totalorder %s25, 1
      %p69 = por %p67, %p68
      %p70 = scmp.ne.s32.totalorder %s59, %s60
      %p71 = scmp.eq.s32.totalorder %s25, 0
      %p72 = por %p70, %p71
      %p73 = scmp.ne.s32.totalorder %s59, %s60
      %p74 = scmp.eq.s32.totalorder %s26, 1
      %p75 = por %p73, %p74
      %p77 = scmp.ne.s32.totalorder %s60, %s76
      %p78 = scmp.eq.s32.totalorder %s26, 0
      %p79 = por %p77, %p78
      %s81 = sadd.s32 %s80, 1
      %p84 = scmp.eq.s32.totalorder %s20, 1
      %p85 = scmp.ne.s32.totalorder %s80, %s82
      %p86 = scmp.eq.s32.totalorder %s20, 0
      %p87 = por %p85, %p86
      %p88 = scmp.ne.s32.totalorder %s80, %s82
      %p89 = scmp.eq.s32.totalorder %s25, 1
      %p90 = por %p88, %p89
      %p91 = scmp.ne.s32.totalorder %s82, %s83
      %p92 = scmp.eq.s32.totalorder %s25, 0
      %p93 = por %p91, %p92
      %p94 = scmp.ne.s32.totalorder %s82, %s83
      %p95 = scmp.eq.s32.totalorder %s26, 1
      %p96 = por %p94, %p95
      %p98 = scmp.ne.s32.totalorder %s83, %s97
      %p99 = scmp.eq.s32.totalorder %s26, 0
      %p100 = por %p98, %p99
      %s102 = sadd.s32 %s101, 1
      %p105 = scmp.eq.s32.totalorder %s20, 1
      %p106 = scmp.ne.s32.totalorder %s101, %s103
      %p107 = scmp.eq.s32.totalorder %s20, 0
      %p108 = por %p106, %p107
      %p109 = scmp.ne.s32.totalorder %s101, %s103
      %p110 = scmp.eq.s32.totalorder %s25, 1
      %p111 = por %p109, %p110
      %p112 = scmp.ne.s32.totalorder %s103, %s104
      %p113 = scmp.eq.s32.totalorder %s25, 0
      %p114 = por %p112, %p113
      %p115 = scmp.ne.s32.totalorder %s103, %s104
      %p116 = scmp.eq.s32.totalorder %s26, 1
      %p117 = por %p115, %p116
      %p119 = scmp.ne.s32.totalorder %s104, %s118
      %p120 = scmp.eq.s32.totalorder %s26, 0
      %p121 = por %p119, %p120
      %s123 = sadd.s32 %s122, 1
      %p126 = scmp.eq.s32.totalorder %s20, 1
      %p127 = scmp.ne.s32.totalorder %s122, %s124
      %p128 = scmp.eq.s32.totalorder %s20, 0
      %p129 = por %p127, %p128
      %p130 = scmp.ne.s32.totalorder %s122, %s124
      %p131 = scmp.eq.s32.totalorder %s25, 1
      %p132 = por %p130, %p131
      %p133 = scmp.ne.s32.totalorder %s124, %s125
      %p134 = scmp.eq.s32.totalorder %s25, 0
      %p135 = por %p133, %p134
      %p136 = scmp.ne.s32.totalorder %s124, %s125
      %p137 = scmp.eq.s32.totalorder %s26, 1
      %p138 = por %p136, %p137
      %p140 = scmp.ne.s32.totalorder %s125, %s139
      %p141 = scmp.eq.s32.totalorder %s26, 0
      %p142 = por %p140, %p141
      %s143 = ssub.s32 %s20, %s27
      %p144 = scmp.eq.s32.totalorder %s143, 0
      %s146 = sadd.s32 %s145, 1
      %s147 = scalar_select %p144, %s145, %s146
      %p150 = pneg %p144
      %p151 = scmp.eq.s32.totalorder %s20, 1
      %p152 = por %p150, %p151
      %p153 = scmp.ne.s32.totalorder %s145, %s148
      %p154 = scmp.eq.s32.totalorder %s20, 0
      %p155 = por %p153, %p154
      %p156 = scmp.ne.s32.totalorder %s145, %s148
      %p157 = scmp.eq.s32.totalorder %s25, 1
      %p158 = por %p156, %p157
      %p159 = scmp.ne.s32.totalorder %s148, %s149
      %p160 = scmp.eq.s32.totalorder %s25, 0
      %p161 = por %p159, %p160
      %p162 = scmp.ne.s32.totalorder %s148, %s149
      %p163 = scmp.eq.s32.totalorder %s26, 1
      %p164 = por %p162, %p163
      %p166 = scmp.ne.s32.totalorder %s149, %s165
      %p167 = scmp.eq.s32.totalorder %s26, 0
      %p168 = por %p166, %p167
      %p169 = scmp.le.s32.totalorder 1, %s20
      %p170 = scmp.lt.s32.totalorder %s20, 3
      %p171 = pnand %p169, %p170
      %p172 = pneg %p171
      // Predicated region
      $region9: #{tpu_custom_call.1} parent=5 // pred_check
        _
      $region10: #{tpu_custom_call.1} parent=5 // pred_check_branch
        %174 = sbr.rel (%p171) target = $region12
      $region11: #{tpu_custom_call.1} parent=5 // pred_region
        %s175 = ssub.s32 %s20, 1
        // Predicated region
        $region13: #{tpu_custom_call.1} parent=11 // pred_check
          %p176 = pneg %p93
        $region14: #{tpu_custom_call.1} parent=11 // pred_check_branch
          %178 = sbr.rel (%p176) target = $region16
        $region15: #{tpu_custom_call.1} parent=11 // pred_region
          %s180 = ssub.s32 256, 256
          %181 = vsyncadd [#allocation6], %s180
          %s182 = sshll.u32 [#allocation7], 4
          %s183 = int_to_ptr.vmem [resolvable:$true] %s182
          %188 = dma.hbm_to_vmem [thread:$0]  %s2, 256, %s183, [#allocation6], 64, 64, 4
        $region16: #{tpu_custom_call.1} parent=11 // pred_fallthru
          _
        // Predicated region
        $region17: #{tpu_custom_call.1} parent=11 // pred_check
          %p189 = pneg %p114
        $region18: #{tpu_custom_call.1} parent=11 // pred_check_branch
          %191 = sbr.rel (%p189) target = $region20
        $region19: #{tpu_custom_call.1} parent=11 // pred_region
          _
        $region20: #{tpu_custom_call.1} parent=11 // pred_fallthru
          _
        // Predicated region
        $region21: #{tpu_custom_call.1} parent=11 // pred_check
          %p192 = pneg %p135
        $region22: #{tpu_custom_call.1} parent=11 // pred_check_branch
          %194 = sbr.rel (%p192) target = $region24
        $region23: #{tpu_custom_call.1} parent=11 // pred_region
          _
        $region24: #{tpu_custom_call.1} parent=11 // pred_fallthru
          _
      $region12: #{tpu_custom_call.1} parent=5 // pred_fallthru
        _
      %p195 = scmp.lt.s32.totalorder %s20, 2
      // Predicated region
      $region25: #{tpu_custom_call.1} parent=5 // pred_check
        %p196 = pneg %p195
      $region26: #{tpu_custom_call.1} parent=5 // pred_check_branch
        %198 = sbr.rel (%p196) target = $region28
      $region27: #{tpu_custom_call.1} parent=5 // pred_region
        // Predicated region
        $region29: #{tpu_custom_call.1} parent=27 // pred_check
          %p199 = pneg %p40
        $region30: #{tpu_custom_call.1} parent=27 // pred_check_branch
          %201 = sbr.rel (%p199) target = $region32
        $region31: #{tpu_custom_call.1} parent=27 // pred_region
          %s202 = sand.u32 %s30, 1
          %s203 = scalar_lea.sflag [#allocation3], %s202
          %s204 = sand.u32 %s30, 1
          %s205 = smul.addr %s204, 8
          %s206 = scalar_lea.vmem [#allocation2], %s205
          %s207 = smul.u32 2, %s20
          %s209 = ssub.s32 128, 128
          %210 = vsyncadd %s203, %s209
          %s211 = smul.addr %s207, 64
          %s212 = scalar_lea.hbm %s0, %s211
          %s213 = sshll.u32 %s206, 4
          %s214 = int_to_ptr.vmem [resolvable:$true] %s213
          %219 = dma.hbm_to_vmem [thread:$0]  %s212, 128, %s214, %s203, 64, 64, 4
        $region32: #{tpu_custom_call.1} parent=27 // pred_fallthru
          _
        // Predicated region
        $region33: #{tpu_custom_call.1} parent=27 // pred_check
          %p220 = pneg %p66
        $region34: #{tpu_custom_call.1} parent=27 // pred_check_branch
          %222 = sbr.rel (%p220) target = $region36
        $region35: #{tpu_custom_call.1} parent=27 // pred_region
          %s223 = sand.u32 %s20, 1
          %s224 = scalar_lea.sflag [#allocation6], %s223
          %s225 = sand.u32 %s56, 1
          %s226 = smul.addr %s225, 16
          %s227 = scalar_lea.vmem [#allocation5], %s226
          %s228 = smul.u32 2, %s20
          %s230 = ssub.s32 256, 256
          %231 = vsyncadd %s224, %s230
          %s232 = smul.addr %s228, 128
          %s233 = scalar_lea.hbm %s1, %s232
          %s234 = sshll.u32 %s227, 4
          %s235 = int_to_ptr.vmem [resolvable:$true] %s234
          %240 = dma.hbm_to_vmem [thread:$0]  %s233, 256, %s235, %s224, 128, 128, 8
        $region36: #{tpu_custom_call.1} parent=27 // pred_fallthru
          _
      $region28: #{tpu_custom_call.1} parent=5 // pred_fallthru
        _
      %p241 = scmp.le.s32.totalorder 1, %s20
      %p242 = scmp.lt.s32.totalorder %s20, 3
      %p243 = pnand %p241, %p242
      %p244 = pneg %p243
      // Predicated region
      $region37: #{tpu_custom_call.1} parent=5 // pred_check
        _
      $region38: #{tpu_custom_call.1} parent=5 // pred_check_branch
        %246 = sbr.rel (%p243) target = $region40
      $region39: #{tpu_custom_call.1} parent=5 // pred_region
        %s247 = ssub.s32 %s20, 1
        %s248 = sand.u32 %s33, 1
        %s249 = scalar_lea.sflag [#allocation3], %s248
        %s250 = sand.u32 %s33, 1
        %s251 = smul.addr %s250, 8
        %s252 = scalar_lea.vmem [#allocation2], %s251
        // Predicated region
        $region41: #{tpu_custom_call.1} parent=39 // pred_check
          %p253 = pneg %p46
        $region42: #{tpu_custom_call.1} parent=39 // pred_check_branch
          %255 = sbr.rel (%p253) target = $region44
        $region43: #{tpu_custom_call.1} parent=39 // pred_region
          %256 = dma.done %s249, 128
        $region44: #{tpu_custom_call.1} parent=39 // pred_fallthru
          _
        %s257 = sand.u32 %s25, 1
        %s258 = scalar_lea.sflag [#allocation6], %s257
        %s259 = sand.u32 %s59, 1
        %s260 = smul.addr %s259, 16
        %s261 = scalar_lea.vmem [#allocation5], %s260
        // Predicated region
        $region45: #{tpu_custom_call.1} parent=39 // pred_check
          %p262 = pneg %p72
        $region46: #{tpu_custom_call.1} parent=39 // pred_check_branch
          %264 = sbr.rel (%p262) target = $region48
        $region47: #{tpu_custom_call.1} parent=39 // pred_region
          %265 = dma.done %s258, 256
        $region48: #{tpu_custom_call.1} parent=39 // pred_fallthru
          _
        // Predicated region
        $region49: #{tpu_custom_call.1} parent=39 // pred_check
          %p266 = pneg %p93
        $region50: #{tpu_custom_call.1} parent=39 // pred_check_branch
          %268 = sbr.rel (%p266) target = $region52
        $region51: #{tpu_custom_call.1} parent=39 // pred_region
          %269 = dma.done [#allocation6], 256
        $region52: #{tpu_custom_call.1} parent=39 // pred_fallthru
          _
        %s270 = sand.u32 %s33, 1
        %s271 = scalar_lea.sflag [#allocation3], %s270
        %s272 = sand.u32 %s33, 1
        %s273 = smul.addr %s272, 8
        %s274 = scalar_lea.vmem [#allocation2], %s273
        %p275 = pneg %p46
        %p276 = pneg %p43
        %s277 = sand.u32 %s25, 1
        %s278 = scalar_lea.sflag [#allocation6], %s277
        %s279 = sand.u32 %s59, 1
        %s280 = smul.addr %s279, 16
        %s281 = scalar_lea.vmem [#allocation5], %s280
        %p282 = pneg %p72
        %p283 = pneg %p69
        %p284 = pneg %p93
        %p285 = pneg %p90
        %p286 = pneg %p114
        %p287 = pneg %p111
        %p288 = pneg %p135
        %p289 = pneg %p132
        %p290 = pneg %p161
        %p291 = pneg %p158
        %s292 = sand.u32 %s148, 1
        %s293 = scalar_lea.sflag [#allocation4], %s292
        %s294 = sand.u32 %s148, 1
        %s295 = smul.addr %s294, 16
        %s296 = scalar_lea.vmem [#allocation8], %s295
        %s297 = smul.u32 2, %s25
        %s298 = smul.u32 2, %s25
        %s299 = smul.u32 2, %s25
        %v301 = vld [vmem:[%s252] sm:$0xf]
        %v302 = vld [vmem:[%s252 + $0x4] sm:$0xf]
        %v303 = vld [vmem:[#allocation7] sm:$0xf]
        %v304 = vld [vmem:[#allocation7 + $0x4] sm:$0xf]
        %v305 = vld [vmem:[#allocation7 + $0x8] sm:$0xf]
        %v306 = vld [vmem:[#allocation7 + $0xc] sm:$0xf]
        %v309 = vunpack.c.l.b16 %v301
        %v310 = vunpack.c.l.b16 %v302
        %v311 = vpack.c.b16 %v310, %v309
        %v316 = vunpack.c.l.b16 %v303
        %v317 = vunpack.c.l.b16 %v304
        %v318 = vunpack.c.l.b16 %v305
        %v319 = vunpack.c.l.b16 %v306
        %v320 = vpack.c.b16 %v317, %v316
        %v321 = vpack.c.b16 %v319, %v318
        %vm324 = vcmask 261120
        %v326 = vsel %vm324, %v311, 0
        %328 = vmatprep.subr.bf16.mxu0 0
        %329 = vmatpush1.bf16.msra.mxu0 %v320
        %330 = vmatprep.subr.bf16.mxu0 0
        %331 = vmatpush1.bf16.msra.mxu0 %v321
        %332 = vmatprep.subr.bf16.mxu0 0
        %333 = vmatpush1.bf16.msra.mxu0 0
        %334 = vmatprep.subr.bf16.mxu0 0
        %335 = vmatpush1.bf16.msra.mxu0 0
        %336 = vmatprep.subr.bf16.mxu0 0
        %337 = vmatpush1.bf16.msra.mxu0 0
        %338 = vmatprep.subr.bf16.mxu0 0
        %339 = vmatpush1.bf16.msra.mxu0 0
        %340 = vmatprep.subr.bf16.mxu0 0
        %341 = vmatpush1.bf16.msra.mxu0 0
        %342 = vmatprep.subr.bf16.mxu0 0
        %343 = vmatpush1.bf16.msra.mxu0 0
        %344 = vmatprep.subr.bf16.mxu0 0
        %345 = vmatpush1.bf16.msra.mxu0 0
        %346 = vmatprep.subr.bf16.mxu0 0
        %347 = vmatpush1.bf16.msra.mxu0 0
        %348 = vmatprep.subr.bf16.mxu0 0
        %349 = vmatpush1.bf16.msra.mxu0 0
        %350 = vmatprep.subr.bf16.mxu0 0
        %351 = vmatpush1.bf16.msra.mxu0 0
        %352 = vmatprep.subr.bf16.mxu0 0
        %353 = vmatpush1.bf16.msra.mxu0 0
        %354 = vmatprep.subr.bf16.mxu0 0
        %355 = vmatpush1.bf16.msra.mxu0 0
        %356 = vmatprep.subr.bf16.mxu0 0
        %357 = vmatpush1.bf16.msra.mxu0 0
        %358 = vmatprep.subr.bf16.mxu0 0
        %359 = vmatpush1.bf16.msra.mxu0 0
        %360 = vmatprep.mubr.bf16.mxu0 0
        %361 = vmatmul.mubr.bf16.gmra.mrb[0].mxu0 %v326
        %v362 = vpop.f32.mrb[0].mxu0
        %v363 = vadd.f32 0.0, %v362
        %v364 = vpop.f32.mrb[0].mxu0
        %v365 = vpop.f32.mrb[0].mxu0
        %v366 = vadd.f32 0.0, %v365
        %v367 = vpop.f32.mrb[0].mxu0
        %368 = vdwg.mxu0
        %v369 = vld [vmem:[%s3] sm:$0x1]
        %v371 = vlaneseq
        %v372 = vshrl.u32 %v371, 7
        %v373 = vsub.s32 0, %v372
        %v374 = vrot.slane %v369, %v373
        %v376 = vmul.f32 %v363, %v374
        %v377 = vmul.f32 %v366, %v374
        %v378 = vld [vmem:[%s4] sm:$0x1]
        %v380 = vlaneseq
        %v381 = vshrl.u32 %v380, 7
        %v382 = vsub.s32 0, %v381
        %v383 = vrot.slane %v378, %v382
        %v385 = vadd.f32 %v376, %v383
        %v386 = vadd.f32 %v377, %v383
        %v387 = vld [vmem:[%s261] sm:$0xff]
        %v388 = vld [vmem:[%s261 + $0x8] sm:$0xff]
        %v389 = vmul.f32 %v385, %v387
        %v390 = vmul.f32 %v386, %v388
        %v391 = vlaneseq
        %v392 = vand.u32 %v391, 127
        %vm393 = vcmp.lt.s32.totalorder %v392, 24
        %v394 = vsel %vm393, 1, 0
        %vm395 = vcmp.eq.s32.totalorder %v394, 1
        %v396 = vsel %vm395, %v389, -1e+30
        %v397 = vsel %vm395, %v390, -1e+30
        %398 = vmax.xlane.f32.xlu0 %v396
        %v399 = vpop.xlane.xlu0 %398
        %400 = vmax.xlane.f32.xlu0 %v397
        %v401 = vpop.xlane.xlu0 %400
        %v402 = vsub.f32 %v399, 1.0
        %v403 = vsub.f32 %v401, 1.0
        %v404 = vadd.f32 %v402, %v399
        %v405 = vadd.f32 %v403, %v401
        %v406 = vmul.f32 %v404, 0.5
        %v407 = vmul.f32 %v405, 0.5
        %v408 = vsub.f32 %v396, %v406
        %v409 = vsub.f32 %v397, %v407
        %v410 = vmax.f32 %v408, 0.0
        %v411 = vmax.f32 %v409, 0.0
        %412 = vadd.xlane.f32.xlu0 %v410
        %v413 = vpop.xlane.xlu0 %412
        %414 = vadd.xlane.f32.xlu0 %v411
        %v415 = vpop.xlane.xlu0 %414
        %vm416 = vcmp.gt.f32.partialorder %v413, 1.0
        %vm417 = vcmp.gt.f32.partialorder %v415, 1.0
        %v418 = vsel %vm416, %v406, %v402
        %v419 = vsel %vm417, %v407, %v403
        %v420 = vsel %vm416, %v399, %v406
        %v421 = vsel %vm417, %v401, %v407
        %v422 = vadd.f32 %v418, %v420
        %v423 = vadd.f32 %v419, %v421
        %v424 = vmul.f32 %v422, 0.5
        %v425 = vmul.f32 %v423, 0.5
        %v426 = vsub.f32 %v396, %v424
        %v427 = vsub.f32 %v397, %v425
        %v428 = vmax.f32 %v426, 0.0
        %v429 = vmax.f32 %v427, 0.0
        %430 = vadd.xlane.f32.xlu0 %v428
        %v431 = vpop.xlane.xlu0 %430
        %432 = vadd.xlane.f32.xlu0 %v429
        %v433 = vpop.xlane.xlu0 %432
        %vm434 = vcmp.gt.f32.partialorder %v431, 1.0
        %vm435 = vcmp.gt.f32.partialorder %v433, 1.0
        %v436 = vsel %vm434, %v424, %v418
        %v437 = vsel %vm435, %v425, %v419
        %v438 = vsel %vm434, %v420, %v424
        %v439 = vsel %vm435, %v421, %v425
        %v440 = vadd.f32 %v436, %v438
        %v441 = vadd.f32 %v437, %v439
        %v442 = vmul.f32 %v440, 0.5
        %v443 = vmul.f32 %v441, 0.5
        %v444 = vsub.f32 %v396, %v442
        %v445 = vsub.f32 %v397, %v443
        %v446 = vmax.f32 %v444, 0.0
        %v447 = vmax.f32 %v445, 0.0
        %448 = vadd.xlane.f32.xlu0 %v446
        %v449 = vpop.xlane.xlu0 %448
        %450 = vadd.xlane.f32.xlu0 %v447
        %v451 = vpop.xlane.xlu0 %450
        %vm452 = vcmp.gt.f32.partialorder %v449, 1.0
        %vm453 = vcmp.gt.f32.partialorder %v451, 1.0
        %v454 = vsel %vm452, %v442, %v436
        %v455 = vsel %vm453, %v443, %v437
        %v456 = vsel %vm452, %v438, %v442
        %v457 = vsel %vm453, %v439, %v443
        %v458 = vadd.f32 %v454, %v456
        %v459 = vadd.f32 %v455, %v457
        %v460 = vmul.f32 %v458, 0.5
        %v461 = vmul.f32 %v459, 0.5
        %v462 = vsub.f32 %v396, %v460
        %v463 = vsub.f32 %v397, %v461
        %v464 = vmax.f32 %v462, 0.0
        %v465 = vmax.f32 %v463, 0.0
        %466 = vadd.xlane.f32.xlu0 %v464
        %v467 = vpop.xlane.xlu0 %466
        %468 = vadd.xlane.f32.xlu0 %v465
        %v469 = vpop.xlane.xlu0 %468
        %vm470 = vcmp.gt.f32.partialorder %v467, 1.0
        %vm471 = vcmp.gt.f32.partialorder %v469, 1.0
        %v472 = vsel %vm470, %v460, %v454
        %v473 = vsel %vm471, %v461, %v455
        %v474 = vsel %vm470, %v456, %v460
        %v475 = vsel %vm471, %v457, %v461
        %v476 = vadd.f32 %v472, %v474
        %v477 = vadd.f32 %v473, %v475
        %v478 = vmul.f32 %v476, 0.5
        %v479 = vmul.f32 %v477, 0.5
        %v480 = vsub.f32 %v396, %v478
        %v481 = vsub.f32 %v397, %v479
        %v482 = vmax.f32 %v480, 0.0
        %v483 = vmax.f32 %v481, 0.0
        %484 = vadd.xlane.f32.xlu0 %v482
        %v485 = vpop.xlane.xlu0 %484
        %486 = vadd.xlane.f32.xlu0 %v483
        %v487 = vpop.xlane.xlu0 %486
        %vm488 = vcmp.gt.f32.partialorder %v485, 1.0
        %vm489 = vcmp.gt.f32.partialorder %v487, 1.0
        %v490 = vsel %vm488, %v478, %v472
        %v491 = vsel %vm489, %v479, %v473
        %v492 = vsel %vm488, %v474, %v478
        %v493 = vsel %vm489, %v475, %v479
        %v494 = vadd.f32 %v490, %v492
        %v495 = vadd.f32 %v491, %v493
        %v496 = vmul.f32 %v494, 0.5
        %v497 = vmul.f32 %v495, 0.5
        %v498 = vsub.f32 %v396, %v496
        %v499 = vsub.f32 %v397, %v497
        %v500 = vmax.f32 %v498, 0.0
        %v501 = vmax.f32 %v499, 0.0
        %502 = vadd.xlane.f32.xlu0 %v500
        %v503 = vpop.xlane.xlu0 %502
        %504 = vadd.xlane.f32.xlu0 %v501
        %v505 = vpop.xlane.xlu0 %504
        %vm506 = vcmp.gt.f32.partialorder %v503, 1.0
        %vm507 = vcmp.gt.f32.partialorder %v505, 1.0
        %v508 = vsel %vm506, %v496, %v490
        %v509 = vsel %vm507, %v497, %v491
        %v510 = vsel %vm506, %v492, %v496
        %v511 = vsel %vm507, %v493, %v497
        %v512 = vadd.f32 %v508, %v510
        %v513 = vadd.f32 %v509, %v511
        %v514 = vmul.f32 %v512, 0.5
        %v515 = vmul.f32 %v513, 0.5
        %v516 = vsub.f32 %v396, %v514
        %v517 = vsub.f32 %v397, %v515
        %v518 = vmax.f32 %v516, 0.0
        %v519 = vmax.f32 %v517, 0.0
        %520 = vadd.xlane.f32.xlu0 %v518
        %v521 = vpop.xlane.xlu0 %520
        %522 = vadd.xlane.f32.xlu0 %v519
        %v523 = vpop.xlane.xlu0 %522
        %vm524 = vcmp.gt.f32.partialorder %v521, 1.0
        %vm525 = vcmp.gt.f32.partialorder %v523, 1.0
        %v526 = vsel %vm524, %v514, %v508
        %v527 = vsel %vm525, %v515, %v509
        %v528 = vsel %vm524, %v510, %v514
        %v529 = vsel %vm525, %v511, %v515
        %v530 = vadd.f32 %v526, %v528
        %v531 = vadd.f32 %v527, %v529
        %v532 = vmul.f32 %v530, 0.5
        %v533 = vmul.f32 %v531, 0.5
        %v534 = vsub.f32 %v396, %v532
        %v535 = vsub.f32 %v397, %v533
        %v536 = vmax.f32 %v534, 0.0
        %v537 = vmax.f32 %v535, 0.0
        %538 = vadd.xlane.f32.xlu0 %v536
        %v539 = vpop.xlane.xlu0 %538
        %540 = vadd.xlane.f32.xlu0 %v537
        %v541 = vpop.xlane.xlu0 %540
        %vm542 = vcmp.gt.f32.partialorder %v539, 1.0
        %vm543 = vcmp.gt.f32.partialorder %v541, 1.0
        %v544 = vsel %vm542, %v532, %v526
        %v545 = vsel %vm543, %v533, %v527
        %v546 = vsel %vm542, %v528, %v532
        %v547 = vsel %vm543, %v529, %v533
        %v548 = vadd.f32 %v544, %v546
        %v549 = vadd.f32 %v545, %v547
        %v550 = vmul.f32 %v548, 0.5
        %v551 = vmul.f32 %v549, 0.5
        %v552 = vsub.f32 %v396, %v550
        %v553 = vsub.f32 %v397, %v551
        %v554 = vmax.f32 %v552, 0.0
        %v555 = vmax.f32 %v553, 0.0
        %556 = vadd.xlane.f32.xlu0 %v554
        %v557 = vpop.xlane.xlu0 %556
        %558 = vadd.xlane.f32.xlu0 %v555
        %v559 = vpop.xlane.xlu0 %558
        %vm560 = vcmp.gt.f32.partialorder %v557, 1.0
        %vm561 = vcmp.gt.f32.partialorder %v559, 1.0
        %v562 = vsel %vm560, %v550, %v544
        %v563 = vsel %vm561, %v551, %v545
        %v564 = vsel %vm560, %v546, %v550
        %v565 = vsel %vm561, %v547, %v551
        %v566 = vadd.f32 %v562, %v564
        %v567 = vadd.f32 %v563, %v565
        %v568 = vmul.f32 %v566, 0.5
        %v569 = vmul.f32 %v567, 0.5
        %v570 = vsub.f32 %v396, %v568
        %v571 = vsub.f32 %v397, %v569
        %v572 = vmax.f32 %v570, 0.0
        %v573 = vmax.f32 %v571, 0.0
        %574 = vadd.xlane.f32.xlu0 %v572
        %v575 = vpop.xlane.xlu0 %574
        %576 = vadd.xlane.f32.xlu0 %v573
        %v577 = vpop.xlane.xlu0 %576
        %vm578 = vcmp.gt.f32.partialorder %v575, 1.0
        %vm579 = vcmp.gt.f32.partialorder %v577, 1.0
        %v580 = vsel %vm578, %v568, %v562
        %v581 = vsel %vm579, %v569, %v563
        %v582 = vsel %vm578, %v564, %v568
        %v583 = vsel %vm579, %v565, %v569
        %v584 = vadd.f32 %v580, %v582
        %v585 = vadd.f32 %v581, %v583
        %v586 = vmul.f32 %v584, 0.5
        %v587 = vmul.f32 %v585, 0.5
        %v588 = vsub.f32 %v396, %v586
        %v589 = vsub.f32 %v397, %v587
        %v590 = vmax.f32 %v588, 0.0
        %v591 = vmax.f32 %v589, 0.0
        %592 = vadd.xlane.f32.xlu0 %v590
        %v593 = vpop.xlane.xlu0 %592
        %594 = vadd.xlane.f32.xlu0 %v591
        %v595 = vpop.xlane.xlu0 %594
        %vm596 = vcmp.gt.f32.partialorder %v593, 1.0
        %vm597 = vcmp.gt.f32.partialorder %v595, 1.0
        %v598 = vsel %vm596, %v586, %v580
        %v599 = vsel %vm597, %v587, %v581
        %v600 = vsel %vm596, %v582, %v586
        %v601 = vsel %vm597, %v583, %v587
        %v602 = vadd.f32 %v598, %v600
        %v603 = vadd.f32 %v599, %v601
        %v604 = vmul.f32 %v602, 0.5
        %v605 = vmul.f32 %v603, 0.5
        %v606 = vsub.f32 %v396, %v604
        %v607 = vsub.f32 %v397, %v605
        %v608 = vmax.f32 %v606, 0.0
        %v609 = vmax.f32 %v607, 0.0
        %610 = vadd.xlane.f32.xlu0 %v608
        %v611 = vpop.xlane.xlu0 %610
        %612 = vadd.xlane.f32.xlu0 %v609
        %v613 = vpop.xlane.xlu0 %612
        %vm614 = vcmp.gt.f32.partialorder %v611, 1.0
        %vm615 = vcmp.gt.f32.partialorder %v613, 1.0
        %v616 = vsel %vm614, %v604, %v598
        %v617 = vsel %vm615, %v605, %v599
        %v618 = vsel %vm614, %v600, %v604
        %v619 = vsel %vm615, %v601, %v605
        %v620 = vadd.f32 %v616, %v618
        %v621 = vadd.f32 %v617, %v619
        %v622 = vmul.f32 %v620, 0.5
        %v623 = vmul.f32 %v621, 0.5
        %v624 = vsub.f32 %v396, %v622
        %v625 = vsub.f32 %v397, %v623
        %v626 = vmax.f32 %v624, 0.0
        %v627 = vmax.f32 %v625, 0.0
        %628 = vadd.xlane.f32.xlu0 %v626
        %v629 = vpop.xlane.xlu0 %628
        %630 = vadd.xlane.f32.xlu0 %v627
        %v631 = vpop.xlane.xlu0 %630
        %vm632 = vcmp.gt.f32.partialorder %v629, 1.0
        %vm633 = vcmp.gt.f32.partialorder %v631, 1.0
        %v634 = vsel %vm632, %v622, %v616
        %v635 = vsel %vm633, %v623, %v617
        %v636 = vsel %vm632, %v618, %v622
        %v637 = vsel %vm633, %v619, %v623
        %v638 = vadd.f32 %v634, %v636
        %v639 = vadd.f32 %v635, %v637
        %v640 = vmul.f32 %v638, 0.5
        %v641 = vmul.f32 %v639, 0.5
        %v642 = vsub.f32 %v396, %v640
        %v643 = vsub.f32 %v397, %v641
        %v644 = vmax.f32 %v642, 0.0
        %v645 = vmax.f32 %v643, 0.0
        %646 = vadd.xlane.f32.xlu0 %v644
        %v647 = vpop.xlane.xlu0 %646
        %648 = vadd.xlane.f32.xlu0 %v645
        %v649 = vpop.xlane.xlu0 %648
        %vm650 = vcmp.gt.f32.partialorder %v647, 1.0
        %vm651 = vcmp.gt.f32.partialorder %v649, 1.0
        %v652 = vsel %vm650, %v640, %v634
        %v653 = vsel %vm651, %v641, %v635
        %v654 = vsel %vm650, %v636, %v640
        %v655 = vsel %vm651, %v637, %v641
        %v656 = vadd.f32 %v652, %v654
        %v657 = vadd.f32 %v653, %v655
        %v658 = vmul.f32 %v656, 0.5
        %v659 = vmul.f32 %v657, 0.5
        %v660 = vsub.f32 %v396, %v658
        %v661 = vsub.f32 %v397, %v659
        %v662 = vmax.f32 %v660, 0.0
        %v663 = vmax.f32 %v661, 0.0
        %664 = vadd.xlane.f32.xlu0 %v662
        %v665 = vpop.xlane.xlu0 %664
        %666 = vadd.xlane.f32.xlu0 %v663
        %v667 = vpop.xlane.xlu0 %666
        %vm668 = vcmp.gt.f32.partialorder %v665, 1.0
        %vm669 = vcmp.gt.f32.partialorder %v667, 1.0
        %v670 = vsel %vm668, %v658, %v652
        %v671 = vsel %vm669, %v659, %v653
        %v672 = vsel %vm668, %v654, %v658
        %v673 = vsel %vm669, %v655, %v659
        %v674 = vadd.f32 %v670, %v672
        %v675 = vadd.f32 %v671, %v673
        %v676 = vmul.f32 %v674, 0.5
        %v677 = vmul.f32 %v675, 0.5
        %v678 = vsub.f32 %v396, %v676
        %v679 = vsub.f32 %v397, %v677
        %v680 = vmax.f32 %v678, 0.0
        %v681 = vmax.f32 %v679, 0.0
        %682 = vadd.xlane.f32.xlu0 %v680
        %v683 = vpop.xlane.xlu0 %682
        %684 = vadd.xlane.f32.xlu0 %v681
        %v685 = vpop.xlane.xlu0 %684
        %vm686 = vcmp.gt.f32.partialorder %v683, 1.0
        %vm687 = vcmp.gt.f32.partialorder %v685, 1.0
        %v688 = vsel %vm686, %v676, %v670
        %v689 = vsel %vm687, %v677, %v671
        %v690 = vsel %vm686, %v672, %v676
        %v691 = vsel %vm687, %v673, %v677
        %v692 = vadd.f32 %v688, %v690
        %v693 = vadd.f32 %v689, %v691
        %v694 = vmul.f32 %v692, 0.5
        %v695 = vmul.f32 %v693, 0.5
        %v696 = vsub.f32 %v396, %v694
        %v697 = vsub.f32 %v397, %v695
        %v698 = vmax.f32 %v696, 0.0
        %v699 = vmax.f32 %v697, 0.0
        %700 = vadd.xlane.f32.xlu0 %v698
        %v701 = vpop.xlane.xlu0 %700
        %702 = vadd.xlane.f32.xlu0 %v699
        %v703 = vpop.xlane.xlu0 %702
        %vm704 = vcmp.gt.f32.partialorder %v701, 1.0
        %vm705 = vcmp.gt.f32.partialorder %v703, 1.0
        %v706 = vsel %vm704, %v694, %v688
        %v707 = vsel %vm705, %v695, %v689
        %v708 = vsel %vm704, %v690, %v694
        %v709 = vsel %vm705, %v691, %v695
        %v710 = vadd.f32 %v706, %v708
        %v711 = vadd.f32 %v707, %v709
        %v712 = vmul.f32 %v710, 0.5
        %v713 = vmul.f32 %v711, 0.5
        %v714 = vsub.f32 %v396, %v712
        %v715 = vsub.f32 %v397, %v713
        %v716 = vmax.f32 %v714, 0.0
        %v717 = vmax.f32 %v715, 0.0
        %718 = vadd.xlane.f32.xlu0 %v716
        %v719 = vpop.xlane.xlu0 %718
        %720 = vadd.xlane.f32.xlu0 %v717
        %v721 = vpop.xlane.xlu0 %720
        %vm722 = vcmp.gt.f32.partialorder %v719, 1.0
        %vm723 = vcmp.gt.f32.partialorder %v721, 1.0
        %v724 = vsel %vm722, %v712, %v706
        %v725 = vsel %vm723, %v713, %v707
        %v726 = vsel %vm722, %v708, %v712
        %v727 = vsel %vm723, %v709, %v713
        %v728 = vadd.f32 %v724, %v726
        %v729 = vadd.f32 %v725, %v727
        %v730 = vmul.f32 %v728, 0.5
        %v731 = vmul.f32 %v729, 0.5
        %v732 = vsub.f32 %v396, %v730
        %v733 = vsub.f32 %v397, %v731
        %v734 = vmax.f32 %v732, 0.0
        %v735 = vmax.f32 %v733, 0.0
        %736 = vadd.xlane.f32.xlu0 %v734
        %v737 = vpop.xlane.xlu0 %736
        %738 = vadd.xlane.f32.xlu0 %v735
        %v739 = vpop.xlane.xlu0 %738
        %vm740 = vcmp.gt.f32.partialorder %v737, 1.0
        %vm741 = vcmp.gt.f32.partialorder %v739, 1.0
        %v742 = vsel %vm740, %v730, %v724
        %v743 = vsel %vm741, %v731, %v725
        %v744 = vsel %vm740, %v726, %v730
        %v745 = vsel %vm741, %v727, %v731
        %v746 = vadd.f32 %v742, %v744
        %v747 = vadd.f32 %v743, %v745
        %v748 = vmul.f32 %v746, 0.5
        %v749 = vmul.f32 %v747, 0.5
        %v750 = vsub.f32 %v396, %v748
        %v751 = vsub.f32 %v397, %v749
        %v752 = vmax.f32 %v750, 0.0
        %v753 = vmax.f32 %v751, 0.0
        %754 = vadd.xlane.f32.xlu0 %v752
        %v755 = vpop.xlane.xlu0 %754
        %756 = vadd.xlane.f32.xlu0 %v753
        %v757 = vpop.xlane.xlu0 %756
        %vm758 = vcmp.gt.f32.partialorder %v755, 1.0
        %vm759 = vcmp.gt.f32.partialorder %v757, 1.0
        %v760 = vsel %vm758, %v748, %v742
        %v761 = vsel %vm759, %v749, %v743
        %v762 = vsel %vm758, %v744, %v748
        %v763 = vsel %vm759, %v745, %v749
        %v764 = vadd.f32 %v760, %v762
        %v765 = vadd.f32 %v761, %v763
        %v766 = vmul.f32 %v764, 0.5
        %v767 = vmul.f32 %v765, 0.5
        %v768 = vsub.f32 %v396, %v766
        %v769 = vsub.f32 %v397, %v767
        %v770 = vmax.f32 %v768, 0.0
        %v771 = vmax.f32 %v769, 0.0
        %772 = vadd.xlane.f32.xlu0 %v770
        %v773 = vpop.xlane.xlu0 %772
        %774 = vadd.xlane.f32.xlu0 %v771
        %v775 = vpop.xlane.xlu0 %774
        %vm776 = vcmp.gt.f32.partialorder %v773, 1.0
        %vm777 = vcmp.gt.f32.partialorder %v775, 1.0
        %v778 = vsel %vm776, %v766, %v760
        %v779 = vsel %vm777, %v767, %v761
        %v780 = vsel %vm776, %v762, %v766
        %v781 = vsel %vm777, %v763, %v767
        %v782 = vadd.f32 %v778, %v780
        %v783 = vadd.f32 %v779, %v781
        %v784 = vmul.f32 %v782, 0.5
        %v785 = vmul.f32 %v783, 0.5
        %v786 = vsub.f32 %v396, %v784
        %v787 = vsub.f32 %v397, %v785
        %v788 = vmax.f32 %v786, 0.0
        %v789 = vmax.f32 %v787, 0.0
        %790 = vadd.xlane.f32.xlu0 %v788
        %v791 = vpop.xlane.xlu0 %790
        %792 = vadd.xlane.f32.xlu0 %v789
        %v793 = vpop.xlane.xlu0 %792
        %vm794 = vcmp.gt.f32.partialorder %v791, 1.0
        %vm795 = vcmp.gt.f32.partialorder %v793, 1.0
        %v796 = vsel %vm794, %v784, %v778
        %v797 = vsel %vm795, %v785, %v779
        %v798 = vsel %vm794, %v780, %v784
        %v799 = vsel %vm795, %v781, %v785
        %v800 = vadd.f32 %v796, %v798
        %v801 = vadd.f32 %v797, %v799
        %v802 = vmul.f32 %v800, 0.5
        %v803 = vmul.f32 %v801, 0.5
        %v804 = vsub.f32 %v396, %v802
        %v805 = vsub.f32 %v397, %v803
        %v806 = vmax.f32 %v804, 0.0
        %v807 = vmax.f32 %v805, 0.0
        %808 = vadd.xlane.f32.xlu0 %v806
        %v809 = vpop.xlane.xlu0 %808
        %810 = vadd.xlane.f32.xlu0 %v807
        %v811 = vpop.xlane.xlu0 %810
        %vm812 = vcmp.gt.f32.partialorder %v809, 1.0
        %vm813 = vcmp.gt.f32.partialorder %v811, 1.0
        %v814 = vsel %vm812, %v802, %v796
        %v815 = vsel %vm813, %v803, %v797
        %v816 = vsel %vm812, %v798, %v802
        %v817 = vsel %vm813, %v799, %v803
        %v818 = vadd.f32 %v814, %v816
        %v819 = vadd.f32 %v815, %v817
        %v820 = vmul.f32 %v818, 0.5
        %v821 = vmul.f32 %v819, 0.5
        %v822 = vsub.f32 %v396, %v820
        %v823 = vsub.f32 %v397, %v821
        %v824 = vmax.f32 %v822, 0.0
        %v825 = vmax.f32 %v823, 0.0
        %826 = vadd.xlane.f32.xlu0 %v824
        %v827 = vpop.xlane.xlu0 %826
        %828 = vadd.xlane.f32.xlu0 %v825
        %v829 = vpop.xlane.xlu0 %828
        %vm830 = vcmp.gt.f32.partialorder %v827, 1.0
        %vm831 = vcmp.gt.f32.partialorder %v829, 1.0
        %v832 = vsel %vm830, %v820, %v814
        %v833 = vsel %vm831, %v821, %v815
        %v834 = vsel %vm830, %v816, %v820
        %v835 = vsel %vm831, %v817, %v821
        %v836 = vadd.f32 %v832, %v834
        %v837 = vadd.f32 %v833, %v835
        %v838 = vmul.f32 %v836, 0.5
        %v839 = vmul.f32 %v837, 0.5
        %v840 = vsub.f32 %v396, %v838
        %v841 = vsub.f32 %v397, %v839
        %v842 = vmax.f32 %v840, 0.0
        %v843 = vmax.f32 %v841, 0.0
        %844 = vadd.xlane.f32.xlu0 %v842
        %v845 = vpop.xlane.xlu0 %844
        %846 = vadd.xlane.f32.xlu0 %v843
        %v847 = vpop.xlane.xlu0 %846
        %vm848 = vcmp.gt.f32.partialorder %v845, 1.0
        %vm849 = vcmp.gt.f32.partialorder %v847, 1.0
        %v850 = vsel %vm848, %v838, %v832
        %v851 = vsel %vm849, %v839, %v833
        %v852 = vsel %vm848, %v834, %v838
        %v853 = vsel %vm849, %v835, %v839
        %v854 = vadd.f32 %v850, %v852
        %v855 = vadd.f32 %v851, %v853
        %v856 = vmul.f32 %v854, 0.5
        %v857 = vmul.f32 %v855, 0.5
        %v858 = vsub.f32 %v396, %v856
        %v859 = vsub.f32 %v397, %v857
        %v860 = vmax.f32 %v858, 0.0
        %v861 = vmax.f32 %v859, 0.0
        %862 = vadd.xlane.f32.xlu0 %v860
        %v863 = vpop.xlane.xlu0 %862
        %864 = vadd.xlane.f32.xlu0 %v861
        %v865 = vpop.xlane.xlu0 %864
        %vm866 = vcmp.gt.f32.partialorder %v863, 1.0
        %vm867 = vcmp.gt.f32.partialorder %v865, 1.0
        %v868 = vsel %vm866, %v856, %v850
        %v869 = vsel %vm867, %v857, %v851
        %v870 = vsel %vm866, %v852, %v856
        %v871 = vsel %vm867, %v853, %v857
        %v872 = vadd.f32 %v868, %v870
        %v873 = vadd.f32 %v869, %v871
        %v874 = vmul.f32 %v872, 0.5
        %v875 = vmul.f32 %v873, 0.5
        %v876 = vsub.f32 %v396, %v874
        %v877 = vsub.f32 %v397, %v875
        %v878 = vmax.f32 %v876, 0.0
        %v879 = vmax.f32 %v877, 0.0
        %880 = vadd.xlane.f32.xlu0 %v878
        %v881 = vpop.xlane.xlu0 %880
        %882 = vadd.xlane.f32.xlu0 %v879
        %v883 = vpop.xlane.xlu0 %882
        %vm884 = vcmp.gt.f32.partialorder %v881, 1.0
        %vm885 = vcmp.gt.f32.partialorder %v883, 1.0
        %v886 = vsel %vm884, %v874, %v868
        %v887 = vsel %vm885, %v875, %v869
        %v888 = vsel %vm884, %v870, %v874
        %v889 = vsel %vm885, %v871, %v875
        %v890 = vadd.f32 %v886, %v888
        %v891 = vadd.f32 %v887, %v889
        %v892 = vmul.f32 %v890, 0.5
        %v893 = vmul.f32 %v891, 0.5
        %v894 = vsub.f32 %v396, %v892
        %v895 = vsub.f32 %v397, %v893
        %v896 = vmax.f32 %v894, 0.0
        %v897 = vmax.f32 %v895, 0.0
        %898 = vadd.xlane.f32.xlu0 %v896
        %v899 = vpop.xlane.xlu0 %898
        %900 = vadd.xlane.f32.xlu0 %v897
        %v901 = vpop.xlane.xlu0 %900
        %vm902 = vcmp.gt.f32.partialorder %v899, 1.0
        %vm903 = vcmp.gt.f32.partialorder %v901, 1.0
        %v904 = vsel %vm902, %v892, %v886
        %v905 = vsel %vm903, %v893, %v887
        %v906 = vsel %vm902, %v888, %v892
        %v907 = vsel %vm903, %v889, %v893
        %v908 = vadd.f32 %v904, %v906
        %v909 = vadd.f32 %v905, %v907
        %v910 = vmul.f32 %v908, 0.5
        %v911 = vmul.f32 %v909, 0.5
        %v912 = vsub.f32 %v396, %v910
        %v913 = vsub.f32 %v397, %v911
        %v914 = vmax.f32 %v912, 0.0
        %v915 = vmax.f32 %v913, 0.0
        %916 = vadd.xlane.f32.xlu0 %v914
        %v917 = vpop.xlane.xlu0 %916
        %918 = vadd.xlane.f32.xlu0 %v915
        %v919 = vpop.xlane.xlu0 %918
        %vm920 = vcmp.gt.f32.partialorder %v917, 1.0
        %vm921 = vcmp.gt.f32.partialorder %v919, 1.0
        %v922 = vsel %vm920, %v910, %v904
        %v923 = vsel %vm921, %v911, %v905
        %v924 = vsel %vm920, %v906, %v910
        %v925 = vsel %vm921, %v907, %v911
        %v926 = vadd.f32 %v922, %v924
        %v927 = vadd.f32 %v923, %v925
        %v928 = vmul.f32 %v926, 0.5
        %v929 = vmul.f32 %v927, 0.5
        %v930 = vsub.f32 %v396, %v928
        %v931 = vsub.f32 %v397, %v929
        %v932 = vmax.f32 %v930, 0.0
        %v933 = vmax.f32 %v931, 0.0
        %934 = vadd.xlane.f32.xlu0 %v932
        %v935 = vpop.xlane.xlu0 %934
        %936 = vadd.xlane.f32.xlu0 %v933
        %v937 = vpop.xlane.xlu0 %936
        %vm938 = vcmp.gt.f32.partialorder %v935, 1.0
        %vm939 = vcmp.gt.f32.partialorder %v937, 1.0
        %v940 = vsel %vm938, %v928, %v922
        %v941 = vsel %vm939, %v929, %v923
        %vm942 = vcmp.gt.f32.partialorder %v396, %v940
        %vm943 = vcmp.gt.f32.partialorder %v397, %v941
        %v944 = vsel %vm942, 1, 0
        %v945 = vsel %vm943, 1, 0
        %v946 = vcvt.s32.f32 %v944
        %v947 = vcvt.s32.f32 %v945
        %948 = vadd.xlane.f32.xlu0 %v946
        %v949 = vpop.xlane.xlu0 %948
        %950 = vadd.xlane.f32.xlu0 %v947
        %v951 = vpop.xlane.xlu0 %950
        %v952 = vmul.f32 %v946, %v396
        %v953 = vmul.f32 %v947, %v397
        %954 = vadd.xlane.f32.xlu0 %v952
        %v955 = vpop.xlane.xlu0 %954
        %956 = vadd.xlane.f32.xlu0 %v953
        %v957 = vpop.xlane.xlu0 %956
        %v958 = vsub.f32 %v955, 1.0
        %v959 = vsub.f32 %v957, 1.0
        %v960 = vrcp.pop %v949
        %v961 = vmul.f32 %v958, %v960
        %v962 = vrcp.pop %v951
        %v963 = vmul.f32 %v959, %v962
        %v964 = vsub.f32 %v396, %v961
        %v965 = vsub.f32 %v397, %v963
        %v966 = vmax.f32 %v964, 0.0
        %v967 = vmax.f32 %v965, 0.0
        %968 = vst [vmem:[%s296] sm:$0xff] %v966
        %969 = vst [vmem:[%s296 + $0x8] sm:$0xff] %v967
        %s970 = sand.u32 %s148, 1
        %s971 = scalar_lea.sflag [#allocation4], %s970
        %s972 = sand.u32 %s148, 1
        %s973 = smul.addr %s972, 16
        %s974 = scalar_lea.vmem [#allocation8], %s973
        // Predicated region
        $region53: #{tpu_custom_call.1} parent=39 // pred_check
          %p975 = pneg %p158
        $region54: #{tpu_custom_call.1} parent=39 // pred_check_branch
          %977 = sbr.rel (%p975) target = $region56
        $region55: #{tpu_custom_call.1} parent=39 // pred_region
          %s978 = smul.u32 2, %s25
          %s980 = ssub.s32 256, 256
          %981 = vsyncadd %s971, %s980
          %s982 = smul.addr %s978, 128
          %s983 = scalar_lea.hbm %s5, %s982
          %s984 = sshll.u32 %s974, 4
          %s985 = int_to_ptr.vmem [resolvable:$true] %s984
          %990 = dma.vmem_to_hbm [thread:$0]  %s985, 256, %s983, %s971, 128, 128, 8
        $region56: #{tpu_custom_call.1} parent=39 // pred_fallthru
          _
      $region40: #{tpu_custom_call.1} parent=5 // pred_fallthru
        _
      %p991 = scmp.le.s32.totalorder 2, %s20
      // Predicated region
      $region57: #{tpu_custom_call.1} parent=5 // pred_check
        %p992 = pneg %p991
      $region58: #{tpu_custom_call.1} parent=5 // pred_check_branch
        %994 = sbr.rel (%p992) target = $region60
      $region59: #{tpu_custom_call.1} parent=5 // pred_region
        %s995 = ssub.s32 %s20, 2
        // Predicated region
        $region61: #{tpu_custom_call.1} parent=59 // pred_check
          %p996 = pneg %p164
        $region62: #{tpu_custom_call.1} parent=59 // pred_check_branch
          %998 = sbr.rel (%p996) target = $region64
        $region63: #{tpu_custom_call.1} parent=59 // pred_region
          %s999 = sand.u32 %s149, 1
          %s1000 = scalar_lea.sflag [#allocation4], %s999
          %s1001 = sand.u32 %s149, 1
          %s1002 = smul.addr %s1001, 16
          %s1003 = scalar_lea.vmem [#allocation8], %s1002
          %1004 = dma.done %s1000, 256
        $region64: #{tpu_custom_call.1} parent=59 // pred_fallthru
          _
      $region60: #{tpu_custom_call.1} parent=5 // pred_fallthru
        _
    $region6: #{tpu_custom_call.1} parent=1 // loop_footer
      %s24 = sadd.s32 1, %s20
    $region7: #{tpu_custom_call.1} parent=1 // loop_footer_branch
      %19 = sbr.rel target = $region3
    $region8: #{tpu_custom_call.1} parent=1 // loop_exit
      _
    %1005 = vsyncpa [#allocation3], 1
    %s1006 = scalar_lea.sflag [#allocation3], 1
    %1007 = vsyncpa %s1006, 1
    %1008 = vsyncpa [#allocation6], 1
    %s1009 = scalar_lea.sflag [#allocation6], 1
    %1010 = vsyncpa %s1009, 1
    %1011 = vsyncpa [#allocation4], 1
    %s1012 = scalar_lea.sflag [#allocation4], 1
    %1013 = vsyncpa %s1012, 1

</llo_original>
